<compile_context>
chip_gen: v6e
topology: v6e:2x2x1
jax: 0.10.0
libtpu: 0.0.40
codegen_flags: <defaults>
</compile_context>

<pallas_src>
import jax
import jax.numpy as jnp
from jax.experimental import pallas as pl
from jax.experimental.pallas import tpu as pltpu


# ----------------------------------------------------------------------------
# Fused forward kernel (one batch tile per grid step)
# ----------------------------------------------------------------------------
def _make_fused_kernel(n_static, S, D, NT, tile_b, out_lanes):
    f32 = jnp.float32
    bf16 = jnp.bfloat16

    def kernel(x_enc_ref, x_static_ref, task_ref,
               vlb_w_ref, vlb_b_ref, wihb_w_ref, lstm_bb_ref, whh_ref,
               *rest):
        static_refs = rest[:2 * n_static]
        (f0_w_ref, f0_b_ref, f1_w_ref, f1_b_ref, f2_w_ref, f2_b_ref,
         mt_w1_ref, mt_b1_ref, mt_w2_ref, mt_b2_ref,
         o_ref, hs_ref) = rest[2 * n_static:]

        # ---- valuelinear (Linear(enc_in, d_model) + ReLU), hoisted over all S
        #      timesteps via the block-diagonal [S*E, S*D] weight.
        vl = jnp.dot(x_enc_ref[...].astype(bf16), vlb_w_ref[...],
                     preferred_element_type=f32) + vlb_b_ref[...]
        vl = jnp.maximum(vl, 0.0)                                   # [Tb, S*D]

        # ---- LSTM input projection hoisted out of the recurrence
        #      (block-diag W_ih; g-gate columns pre-scaled x2).
        gates_x = jnp.dot(vl.astype(bf16), wihb_w_ref[...],
                          preferred_element_type=f32) + lstm_bb_ref[...]  # [Tb, S*4D]

        w_hh = whh_ref[...]                                         # [D, 4D] bf16
        h = jnp.zeros((tile_b, D), f32)
        c = jnp.zeros((tile_b, D), f32)
        for t in range(S):  # fully unrolled; serial chain only through h, c
            g = gates_x[:, t * 4 * D:(t + 1) * 4 * D] + jnp.dot(
                h.astype(bf16), w_hh, preferred_element_type=f32)   # [Tb, 4D]
            sg = jax.nn.sigmoid(g)            # single whole-block EUP pass
            i_g = sg[:, 0 * D:1 * D]
            f_g = sg[:, 1 * D:2 * D]
            g_g = 2.0 * sg[:, 2 * D:3 * D] - 1.0   # tanh(x) = 2*sigmoid(2x)-1
            o_g = sg[:, 3 * D:4 * D]
            c = f_g * c + i_g * g_g
            h = o_g * jnp.tanh(c)
            hs_ref[:, t * D:(t + 1) * D] = h
        # out_ts[b, t*D + d] == h_t[b, d]  ==  PyTorch out.reshape(B, S*D)
        out_ts = hs_ref[...]                                        # [Tb, S*D]

        # ---- static MLP: L0, then (ReLU -> dropout(identity) -> Li).
        xs = x_static_ref[...]
        for li in range(n_static):
            if li > 0:
                xs = jnp.maximum(xs, 0.0)
            xs = (jnp.dot(xs.astype(bf16), static_refs[2 * li][...],
                          preferred_element_type=f32)
                  + static_refs[2 * li + 1][...])

        # ---- gated fusion (raw linear gate, matching the PyTorch source;
        #      fusion[2] is applied twice to the same input in the source, so
        #      computing it once is identical).
        x_ts = (jnp.dot(out_ts.astype(bf16), f0_w_ref[...],
                        preferred_element_type=f32) + f0_b_ref[...])
        x_st = (jnp.dot(xs.astype(bf16), f1_w_ref[...],
                        preferred_element_type=f32) + f1_b_ref[...])
        gate = (jnp.dot((x_ts + x_st).astype(bf16), f2_w_ref[...],
                        preferred_element_type=f32) + f2_b_ref[...])
        fused = jnp.concatenate([gate * x_ts, (1.0 - gate) * x_st], axis=1)

        # ---- multitask head (stand-in) + in-kernel per-sample task select.
        # TODO(synk): multitask_MLP is not defined in the provided source; the
        #   stand-in is Linear(2*dim_max, d_model) -> ReLU -> Linear(d_model,
        #   num_tasks) followed by per-sample head selection via batch_task.
        hid = jnp.maximum(
            jnp.dot(fused.astype(bf16), mt_w1_ref[...],
                    preferred_element_type=f32) + mt_b1_ref[...], 0.0)
        heads = (jnp.dot(hid.astype(bf16), mt_w2_ref[...],
                         preferred_element_type=f32) + mt_b2_ref[...])  # [Tb, NT]
        task = task_ref[...]                                        # [Tb, 1] int32
        onehot = jax.lax.broadcasted_iota(jnp.int32, (tile_b, NT), 1) == task
        sel = jnp.sum(jnp.where(onehot, heads, 0.0), axis=1, keepdims=True)
        # Lane-dense output slab: selected value broadcast across lanes.
        o_ref[...] = jnp.broadcast_to(sel, (tile_b, out_lanes))

    return kernel


# ----------------------------------------------------------------------------
# Parameter init (PyTorch-style uniform fan-in)
# ----------------------------------------------------------------------------
def _uniform(key, shape, bound):
    return jax.random.uniform(key, shape, jnp.float32, -bound, bound)


def init_params(key, cfg):
    D, S, E = cfg["d_model"], cfg["seq_len"], cfg["enc_in"]
    SI, SD, SL = cfg["static_in"], cfg["static_mlp_d"], cfg["static_mlp_layers"]
    dim_out_ts = D * S
    dim_max = max(dim_out_ts, dim_out_ts)   # degenerate, but matches the source
    dim_mlpinput = 2 * dim_max
    NT = cfg["num_tasks"]

    keys = iter(jax.random.split(key, 64))
    p = {}
    b = 1.0 / jnp.sqrt(E)
    p["vl_w"] = _uniform(next(keys), (D, E), b)
    p["vl_b"] = _uniform(next(keys), (D,), b)
    b = 1.0 / jnp.sqrt(D)
    p["w_ih"] = _uniform(next(keys), (4 * D, D), b)
    p["w_hh"] = _uniform(next(keys), (4 * D, D), b)
    p["b_ih"] = _uniform(next(keys), (4 * D,), b)
    p["b_hh"] = _uniform(next(keys), (4 * D,), b)
    p["static_w"], p["static_b"] = [], []
    b = 1.0 / jnp.sqrt(SI)
    p["static_w"].append(_uniform(next(keys), (SD, SI), b))
    p["static_b"].append(_uniform(next(keys), (SD,), b))
    b = 1.0 / jnp.sqrt(SD)
    for _ in range(SL):
        p["static_w"].append(_uniform(next(keys), (SD, SD), b))
        p["static_b"].append(_uniform(next(keys), (SD,), b))
    b = 1.0 / jnp.sqrt(dim_out_ts)
    p["f0_w"] = _uniform(next(keys), (dim_max, dim_out_ts), b)
    p["f0_b"] = _uniform(next(keys), (dim_max,), b)
    b = 1.0 / jnp.sqrt(SD)
    p["f1_w"] = _uniform(next(keys), (dim_max, SD), b)
    p["f1_b"] = _uniform(next(keys), (dim_max,), b)
    b = 1.0 / jnp.sqrt(dim_max)
    p["f2_w"] = _uniform(next(keys), (dim_max, dim_max), b)
    p["f2_b"] = _uniform(next(keys), (dim_max,), b)
    b = 1.0 / jnp.sqrt(dim_mlpinput)
    p["mt_w1"] = _uniform(next(keys), (D, dim_mlpinput), b)
    p["mt_b1"] = _uniform(next(keys), (D,), b)
    b = 1.0 / jnp.sqrt(D)
    p["mt_w2"] = _uniform(next(keys), (NT, D), b)
    p["mt_b2"] = _uniform(next(keys), (NT,), b)
    return p


# ----------------------------------------------------------------------------
# One-time preparation: transposes, g-gate pre-scale, block-diag hoist weights,
# bf16 matmul operands (biases stay f32, added after the f32-accumulated dot).
# ----------------------------------------------------------------------------
def prepare_params(p, cfg):
    S, D = cfg["seq_len"], cfg["d_model"]
    f32, bf16 = jnp.float32, jnp.bfloat16

    # g-gate pre-scale so tanh(x) = 2*sigmoid(2x) - 1 uses the shared sigmoid.
    scale = jnp.ones((4 * D,), f32).at[2 * D:3 * D].set(2.0)
    wih_t = p["w_ih"].T * scale[None, :]            # [D, 4D]
    whh_t = p["w_hh"].T * scale[None, :]            # [D, 4D]
    lstm_b = (p["b_ih"] + p["b_hh"]) * scale        # [4D]

    eye_s = jnp.eye(S, dtype=f32)
    vlb_w = jnp.kron(eye_s, p["vl_w"].T)            # [S*E, S*D] block-diag
    vlb_b = jnp.tile(p["vl_b"], S).reshape(1, S * D)
    wihb_w = jnp.kron(eye_s, wih_t)                 # [S*D, S*4D] block-diag
    lstm_bb = jnp.tile(lstm_b, S).reshape(1, S * 4 * D)

    prep = {
        "vlb_w": vlb_w.astype(bf16), "vlb_b": vlb_b.astype(f32),
        "wihb_w": wihb_w.astype(bf16), "lstm_bb": lstm_bb.astype(f32),
        "whh": whh_t.astype(bf16),
        "static_w": [w.T.astype(bf16) for w in p["static_w"]],
        "static_b": [b.reshape(1, -1).astype(f32) for b in p["static_b"]],
        "f0_w": p["f0_w"].T.astype(bf16), "f0_b": p["f0_b"].reshape(1, -1).astype(f32),
        "f1_w": p["f1_w"].T.astype(bf16), "f1_b": p["f1_b"].reshape(1, -1).astype(f32),
        "f2_w": p["f2_w"].T.astype(bf16), "f2_b": p["f2_b"].reshape(1, -1).astype(f32),
        "mt_w1": p["mt_w1"].T.astype(bf16), "mt_b1": p["mt_b1"].reshape(1, -1).astype(f32),
        "mt_w2": p["mt_w2"].T.astype(bf16), "mt_b2": p["mt_b2"].reshape(1, -1).astype(f32),
    }
    return prep


# ----------------------------------------------------------------------------
# Forward pass (mirrors Model.forward) — single fused, batch-tiled pallas_call
# ----------------------------------------------------------------------------
def forward(prep, x_enc, x_static, batch_task, cfg):
    B, S, E = x_enc.shape
    D = cfg["d_model"]
    NT = cfg["num_tasks"]
    SI = cfg["static_in"]
    n_static = len(prep["static_w"])

    # Batch tile: multiple of 8 (f32 sublane), capped at 128 MXU rows.
    TILE_B = min(128, ((B + 7) // 8) * 8)
    B_pad = ((B + TILE_B - 1) // TILE_B) * TILE_B
    pad = B_pad - B

    # Batch-major layouts only; no host-side time transpose needed.
    x_enc_flat = jnp.pad(x_enc.astype(jnp.float32).reshape(B, S * E),
                         ((0, pad), (0, 0)))                        # [B_pad, S*E]
    x_static_p = jnp.pad(x_static.astype(jnp.float32), ((0, pad), (0, 0)))
    task_p = jnp.pad(batch_task.astype(jnp.int32), (0, pad)).reshape(B_pad, 1)

    OUT_LANES = 128
    kernel = _make_fused_kernel(n_static, S, D, NT, TILE_B, OUT_LANES)

    def batch_spec(n):
        return pl.BlockSpec((TILE_B, n), lambda i: (i, 0))

    def full_spec(shape):
        return pl.BlockSpec(shape, lambda i: (0, 0))   # weights: VMEM-resident

    inputs = [x_enc_flat, x_static_p, task_p,
              prep["vlb_w"], prep["vlb_b"], prep["wihb_w"], prep["lstm_bb"],
              prep["whh"]]
    in_specs = [batch_spec(S * E), batch_spec(SI), batch_spec(1)]
    in_specs += [full_spec(a.shape) for a in inputs[3:]]
    for w, b in zip(prep["static_w"], prep["static_b"]):
        inputs += [w, b]
        in_specs += [full_spec(w.shape), full_spec(b.shape)]
    for name in ("f0_w", "f0_b", "f1_w", "f1_b", "f2_w", "f2_b",
                 "mt_w1", "mt_b1", "mt_w2", "mt_b2"):
        inputs.append(prep[name])
        in_specs.append(full_spec(prep[name].shape))

    out_full = pl.pallas_call(
        kernel,
        out_shape=jax.ShapeDtypeStruct((B_pad, OUT_LANES), jnp.float32),
        grid=(B_pad // TILE_B,),
        in_specs=in_specs,
        out_specs=pl.BlockSpec((TILE_B, OUT_LANES), lambda i: (i, 0)),
        scratch_shapes=[pltpu.VMEM((TILE_B, S * D), jnp.float32)],
        compiler_params=pltpu.CompilerParams(
            dimension_semantics=("parallel",)),
    )(*inputs)

    return out_full[:B, :1]


# ----------------------------------------------------------------------------
if __name__ == "__main__":
    cfg = dict(seq_len=8, enc_in=4, d_model=32,
               static_in=6, static_mlp_d=32, static_mlp_layers=2,
               num_tasks=3)
    B = 4

    key = jax.random.PRNGKey(0)
    k_p, k_x, k_s = jax.random.split(key, 3)
    params = init_params(k_p, cfg)
    prep = prepare_params(params, cfg)

    x_enc = jax.random.normal(k_x, (B, cfg["seq_len"], cfg["enc_in"]), jnp.float32)
    x_static = jax.random.normal(k_s, (B, cfg["static_in"]), jnp.float32)
    batch_task = jnp.array([0, 1, 2, 0], dtype=jnp.int32)

    @jax.jit
    def fwd(prep_, xe, xs, bt):
        return forward(prep_, xe, xs, bt, cfg)

    y = fwd(prep, x_enc, x_static, batch_task)
    jax.block_until_ready(y)
    assert y.shape == (B, 1)
    assert bool(jnp.all(jnp.isfinite(y)))
    print("KERNEL_OK")
</pallas_src>

<mosaic_0001>
module attributes {stable_mosaic.version = 11 : i64} {
  func.func @kernel(%arg0: i32, %arg1: memref<8x32xf32, #tpu.memory_space<vmem>>, %arg2: memref<8x6xf32, #tpu.memory_space<vmem>>, %arg3: memref<8x1xi32, #tpu.memory_space<vmem>>, %arg4: memref<32x256xbf16, #tpu.memory_space<vmem>>, %arg5: memref<1x256xf32, #tpu.memory_space<vmem>>, %arg6: memref<256x1024xbf16, #tpu.memory_space<vmem>>, %arg7: memref<1x1024xf32, #tpu.memory_space<vmem>>, %arg8: memref<32x128xbf16, #tpu.memory_space<vmem>>, %arg9: memref<6x32xbf16, #tpu.memory_space<vmem>>, %arg10: memref<1x32xf32, #tpu.memory_space<vmem>>, %arg11: memref<32x32xbf16, #tpu.memory_space<vmem>>, %arg12: memref<1x32xf32, #tpu.memory_space<vmem>>, %arg13: memref<32x32xbf16, #tpu.memory_space<vmem>>, %arg14: memref<1x32xf32, #tpu.memory_space<vmem>>, %arg15: memref<256x256xbf16, #tpu.memory_space<vmem>>, %arg16: memref<1x256xf32, #tpu.memory_space<vmem>>, %arg17: memref<32x256xbf16, #tpu.memory_space<vmem>>, %arg18: memref<1x256xf32, #tpu.memory_space<vmem>>, %arg19: memref<256x256xbf16, #tpu.memory_space<vmem>>, %arg20: memref<1x256xf32, #tpu.memory_space<vmem>>, %arg21: memref<512x32xbf16, #tpu.memory_space<vmem>>, %arg22: memref<1x32xf32, #tpu.memory_space<vmem>>, %arg23: memref<32x3xbf16, #tpu.memory_space<vmem>>, %arg24: memref<1x3xf32, #tpu.memory_space<vmem>>, %arg25: memref<8x128xf32, #tpu.memory_space<vmem>>, %arg26: memref<8x256xf32, #tpu.memory_space<vmem>>) attributes {dimension_semantics = [#tpu.dimension_semantics<parallel>], iteration_bounds = array<i64: 1>, scalar_prefetch = 0 : i64, scratch_operands = 1 : i64, tpu.core_type = #tpu.core_type<tc>, window_params = [{transform_indices = @transform_0, window_bounds = array<i64: 8, 32>}, {transform_indices = @transform_1, window_bounds = array<i64: 8, 6>}, {transform_indices = @transform_2, window_bounds = array<i64: 8, 1>}, {pipeline_mode = #tpu.pipeline_mode<synchronous>, transform_indices = @transform_3, window_bounds = array<i64: 32, 256>}, {pipeline_mode = #tpu.pipeline_mode<synchronous>, transform_indices = @transform_4, window_bounds = array<i64: 1, 256>}, {pipeline_mode = #tpu.pipeline_mode<synchronous>, transform_indices = @transform_5, window_bounds = array<i64: 256, 1024>}, {pipeline_mode = #tpu.pipeline_mode<synchronous>, transform_indices = @transform_6, window_bounds = array<i64: 1, 1024>}, {pipeline_mode = #tpu.pipeline_mode<synchronous>, transform_indices = @transform_7, window_bounds = array<i64: 32, 128>}, {pipeline_mode = #tpu.pipeline_mode<synchronous>, transform_indices = @transform_8, window_bounds = array<i64: 6, 32>}, {pipeline_mode = #tpu.pipeline_mode<synchronous>, transform_indices = @transform_9, window_bounds = array<i64: 1, 32>}, {pipeline_mode = #tpu.pipeline_mode<synchronous>, transform_indices = @transform_10, window_bounds = array<i64: 32, 32>}, {pipeline_mode = #tpu.pipeline_mode<synchronous>, transform_indices = @transform_11, window_bounds = array<i64: 1, 32>}, {pipeline_mode = #tpu.pipeline_mode<synchronous>, transform_indices = @transform_12, window_bounds = array<i64: 32, 32>}, {pipeline_mode = #tpu.pipeline_mode<synchronous>, transform_indices = @transform_13, window_bounds = array<i64: 1, 32>}, {pipeline_mode = #tpu.pipeline_mode<synchronous>, transform_indices = @transform_14, window_bounds = array<i64: 256, 256>}, {pipeline_mode = #tpu.pipeline_mode<synchronous>, transform_indices = @transform_15, window_bounds = array<i64: 1, 256>}, {pipeline_mode = #tpu.pipeline_mode<synchronous>, transform_indices = @transform_16, window_bounds = array<i64: 32, 256>}, {pipeline_mode = #tpu.pipeline_mode<synchronous>, transform_indices = @transform_17, window_bounds = array<i64: 1, 256>}, {pipeline_mode = #tpu.pipeline_mode<synchronous>, transform_indices = @transform_18, window_bounds = array<i64: 256, 256>}, {pipeline_mode = #tpu.pipeline_mode<synchronous>, transform_indices = @transform_19, window_bounds = array<i64: 1, 256>}, {pipeline_mode = #tpu.pipeline_mode<synchronous>, transform_indices = @transform_20, window_bounds = array<i64: 512, 32>}, {pipeline_mode = #tpu.pipeline_mode<synchronous>, transform_indices = @transform_21, window_bounds = array<i64: 1, 32>}, {pipeline_mode = #tpu.pipeline_mode<synchronous>, transform_indices = @transform_22, window_bounds = array<i64: 32, 3>}, {pipeline_mode = #tpu.pipeline_mode<synchronous>, transform_indices = @transform_23, window_bounds = array<i64: 1, 3>}, {transform_indices = @transform_24, window_bounds = array<i64: 8, 128>}]} {
    %c0 = arith.constant 0 : index
    %c0_0 = arith.constant 0 : index
    %0 = vector.load %arg1[%c0, %c0_0] : memref<8x32xf32, #tpu.memory_space<vmem>>, vector<8x32xf32>
    %1 = arith.truncf %0 : vector<8x32xf32> to vector<8x32xbf16>
    %c0_1 = arith.constant 0 : index
    %c0_2 = arith.constant 0 : index
    %2 = vector.load %arg4[%c0_1, %c0_2] : memref<32x256xbf16, #tpu.memory_space<vmem>>, vector<32x256xbf16>
    %cst = arith.constant dense<0.000000e+00> : vector<8x256xf32>
    %3 = tpu.matmul %1, %2, %cst {dimension_numbers = #tpu.dot_dimension_numbers<[1], [0], [0], [1], [0, 0, 1, 1], [], []>} : vector<8x32xbf16>, vector<32x256xbf16>, vector<8x256xf32> -> vector<8x256xf32>
    %c0_3 = arith.constant 0 : index
    %c0_4 = arith.constant 0 : index
    %4 = vector.load %arg5[%c0_3, %c0_4] : memref<1x256xf32, #tpu.memory_space<vmem>>, vector<1x256xf32>
    %5 = vector.broadcast %4 : vector<1x256xf32> to vector<8x256xf32>
    %6 = arith.addf %3, %5 : vector<8x256xf32>
    %cst_5 = arith.constant 0.000000e+00 : f32
    %7 = vector.broadcast %cst_5 : f32 to vector<8x256xf32>
    %8 = arith.maximumf %6, %7 : vector<8x256xf32>
    %9 = arith.truncf %8 : vector<8x256xf32> to vector<8x256xbf16>
    %c0_6 = arith.constant 0 : index
    %c0_7 = arith.constant 0 : index
    %10 = vector.load %arg6[%c0_6, %c0_7] : memref<256x1024xbf16, #tpu.memory_space<vmem>>, vector<256x1024xbf16>
    %cst_8 = arith.constant dense<0.000000e+00> : vector<8x1024xf32>
    %11 = tpu.matmul %9, %10, %cst_8 {dimension_numbers = #tpu.dot_dimension_numbers<[1], [0], [0], [1], [0, 0, 1, 1], [], []>} : vector<8x256xbf16>, vector<256x1024xbf16>, vector<8x1024xf32> -> vector<8x1024xf32>
    %c0_9 = arith.constant 0 : index
    %c0_10 = arith.constant 0 : index
    %12 = vector.load %arg7[%c0_9, %c0_10] : memref<1x1024xf32, #tpu.memory_space<vmem>>, vector<1x1024xf32>
    %13 = vector.broadcast %12 : vector<1x1024xf32> to vector<8x1024xf32>
    %14 = arith.addf %11, %13 : vector<8x1024xf32>
    %c0_11 = arith.constant 0 : index
    %c0_12 = arith.constant 0 : index
    %15 = vector.load %arg8[%c0_11, %c0_12] : memref<32x128xbf16, #tpu.memory_space<vmem>>, vector<32x128xbf16>
    %cst_13 = arith.constant 0.000000e+00 : f32
    %16 = vector.broadcast %cst_13 : f32 to vector<8x32xf32>
    %cst_14 = arith.constant 0.000000e+00 : f32
    %17 = vector.broadcast %cst_14 : f32 to vector<8x32xf32>
    %18 = vector.extract_strided_slice %14 {offsets = [0, 0], sizes = [8, 128], strides = [1, 1]} : vector<8x1024xf32> to vector<8x128xf32>
    %19 = arith.truncf %16 : vector<8x32xf32> to vector<8x32xbf16>
    %cst_15 = arith.constant dense<0.000000e+00> : vector<8x128xf32>
    %20 = tpu.matmul %19, %15, %cst_15 {dimension_numbers = #tpu.dot_dimension_numbers<[1], [0], [0], [1], [0, 0, 1, 1], [], []>} : vector<8x32xbf16>, vector<32x128xbf16>, vector<8x128xf32> -> vector<8x128xf32>
    %21 = arith.addf %18, %20 : vector<8x128xf32>
    %22 = arith.negf %21 : vector<8x128xf32>
    %23 = math.exp %22 : vector<8x128xf32>
    %cst_16 = arith.constant 1.000000e+00 : f32
    %24 = vector.broadcast %cst_16 : f32 to vector<8x128xf32>
    %25 = arith.addf %24, %23 : vector<8x128xf32>
    %26 = arith.divf %24, %25 : vector<8x128xf32>
    %27 = vector.extract_strided_slice %26 {offsets = [0, 0], sizes = [8, 32], strides = [1, 1]} : vector<8x128xf32> to vector<8x32xf32>
    %28 = vector.extract_strided_slice %26 {offsets = [0, 32], sizes = [8, 32], strides = [1, 1]} : vector<8x128xf32> to vector<8x32xf32>
    %29 = vector.extract_strided_slice %26 {offsets = [0, 64], sizes = [8, 32], strides = [1, 1]} : vector<8x128xf32> to vector<8x32xf32>
    %cst_17 = arith.constant 2.000000e+00 : f32
    %30 = vector.broadcast %cst_17 : f32 to vector<8x32xf32>
    %31 = arith.mulf %30, %29 : vector<8x32xf32>
    %cst_18 = arith.constant 1.000000e+00 : f32
    %32 = vector.broadcast %cst_18 : f32 to vector<8x32xf32>
    %33 = arith.subf %31, %32 : vector<8x32xf32>
    %34 = vector.extract_strided_slice %26 {offsets = [0, 96], sizes = [8, 32], strides = [1, 1]} : vector<8x128xf32> to vector<8x32xf32>
    %35 = arith.mulf %28, %17 : vector<8x32xf32>
    %36 = arith.mulf %27, %33 : vector<8x32xf32>
    %37 = arith.addf %35, %36 : vector<8x32xf32>
    %38 = math.tanh %37 : vector<8x32xf32>
    %39 = arith.mulf %34, %38 : vector<8x32xf32>
    %c0_19 = arith.constant 0 : index
    %c0_20 = arith.constant 0 : index
    %40 = vector.load %arg26[%c0_19, %c0_20] : memref<8x256xf32, #tpu.memory_space<vmem>>, vector<8x32xf32>
    tpu.vector_store %arg26[%c0_19, %c0_20], %39 {strides = array<i32>} : memref<8x256xf32, #tpu.memory_space<vmem>>, vector<8x32xf32>,
    %41 = vector.extract_strided_slice %14 {offsets = [0, 128], sizes = [8, 128], strides = [1, 1]} : vector<8x1024xf32> to vector<8x128xf32>
    %42 = arith.truncf %39 : vector<8x32xf32> to vector<8x32xbf16>
    %cst_21 = arith.constant dense<0.000000e+00> : vector<8x128xf32>
    %43 = tpu.matmul %42, %15, %cst_21 {dimension_numbers = #tpu.dot_dimension_numbers<[1], [0], [0], [1], [0, 0, 1, 1], [], []>} : vector<8x32xbf16>, vector<32x128xbf16>, vector<8x128xf32> -> vector<8x128xf32>
    %44 = arith.addf %41, %43 : vector<8x128xf32>
    %45 = arith.negf %44 : vector<8x128xf32>
    %46 = math.exp %45 : vector<8x128xf32>
    %cst_22 = arith.constant 1.000000e+00 : f32
    %47 = vector.broadcast %cst_22 : f32 to vector<8x128xf32>
    %48 = arith.addf %47, %46 : vector<8x128xf32>
    %49 = arith.divf %47, %48 : vector<8x128xf32>
    %50 = vector.extract_strided_slice %49 {offsets = [0, 0], sizes = [8, 32], strides = [1, 1]} : vector<8x128xf32> to vector<8x32xf32>
    %51 = vector.extract_strided_slice %49 {offsets = [0, 32], sizes = [8, 32], strides = [1, 1]} : vector<8x128xf32> to vector<8x32xf32>
    %52 = vector.extract_strided_slice %49 {offsets = [0, 64], sizes = [8, 32], strides = [1, 1]} : vector<8x128xf32> to vector<8x32xf32>
    %cst_23 = arith.constant 2.000000e+00 : f32
    %53 = vector.broadcast %cst_23 : f32 to vector<8x32xf32>
    %54 = arith.mulf %53, %52 : vector<8x32xf32>
    %cst_24 = arith.constant 1.000000e+00 : f32
    %55 = vector.broadcast %cst_24 : f32 to vector<8x32xf32>
    %56 = arith.subf %54, %55 : vector<8x32xf32>
    %57 = vector.extract_strided_slice %49 {offsets = [0, 96], sizes = [8, 32], strides = [1, 1]} : vector<8x128xf32> to vector<8x32xf32>
    %58 = arith.mulf %51, %37 : vector<8x32xf32>
    %59 = arith.mulf %50, %56 : vector<8x32xf32>
    %60 = arith.addf %58, %59 : vector<8x32xf32>
    %61 = math.tanh %60 : vector<8x32xf32>
    %62 = arith.mulf %57, %61 : vector<8x32xf32>
    %c0_25 = arith.constant 0 : index
    %c32 = arith.constant 32 : index
    %63 = vector.load %arg26[%c0_25, %c32] : memref<8x256xf32, #tpu.memory_space<vmem>>, vector<8x32xf32>
    tpu.vector_store %arg26[%c0_25, %c32], %62 {strides = array<i32>} : memref<8x256xf32, #tpu.memory_space<vmem>>, vector<8x32xf32>,
    %64 = vector.extract_strided_slice %14 {offsets = [0, 256], sizes = [8, 128], strides = [1, 1]} : vector<8x1024xf32> to vector<8x128xf32>
    %65 = arith.truncf %62 : vector<8x32xf32> to vector<8x32xbf16>
    %cst_26 = arith.constant dense<0.000000e+00> : vector<8x128xf32>
    %66 = tpu.matmul %65, %15, %cst_26 {dimension_numbers = #tpu.dot_dimension_numbers<[1], [0], [0], [1], [0, 0, 1, 1], [], []>} : vector<8x32xbf16>, vector<32x128xbf16>, vector<8x128xf32> -> vector<8x128xf32>
    %67 = arith.addf %64, %66 : vector<8x128xf32>
    %68 = arith.negf %67 : vector<8x128xf32>
    %69 = math.exp %68 : vector<8x128xf32>
    %cst_27 = arith.constant 1.000000e+00 : f32
    %70 = vector.broadcast %cst_27 : f32 to vector<8x128xf32>
    %71 = arith.addf %70, %69 : vector<8x128xf32>
    %72 = arith.divf %70, %71 : vector<8x128xf32>
    %73 = vector.extract_strided_slice %72 {offsets = [0, 0], sizes = [8, 32], strides = [1, 1]} : vector<8x128xf32> to vector<8x32xf32>
    %74 = vector.extract_strided_slice %72 {offsets = [0, 32], sizes = [8, 32], strides = [1, 1]} : vector<8x128xf32> to vector<8x32xf32>
    %75 = vector.extract_strided_slice %72 {offsets = [0, 64], sizes = [8, 32], strides = [1, 1]} : vector<8x128xf32> to vector<8x32xf32>
    %cst_28 = arith.constant 2.000000e+00 : f32
    %76 = vector.broadcast %cst_28 : f32 to vector<8x32xf32>
    %77 = arith.mulf %76, %75 : vector<8x32xf32>
    %cst_29 = arith.constant 1.000000e+00 : f32
    %78 = vector.broadcast %cst_29 : f32 to vector<8x32xf32>
    %79 = arith.subf %77, %78 : vector<8x32xf32>
    %80 = vector.extract_strided_slice %72 {offsets = [0, 96], sizes = [8, 32], strides = [1, 1]} : vector<8x128xf32> to vector<8x32xf32>
    %81 = arith.mulf %74, %60 : vector<8x32xf32>
    %82 = arith.mulf %73, %79 : vector<8x32xf32>
    %83 = arith.addf %81, %82 : vector<8x32xf32>
    %84 = math.tanh %83 : vector<8x32xf32>
    %85 = arith.mulf %80, %84 : vector<8x32xf32>
    %c0_30 = arith.constant 0 : index
    %c64 = arith.constant 64 : index
    %86 = vector.load %arg26[%c0_30, %c64] : memref<8x256xf32, #tpu.memory_space<vmem>>, vector<8x32xf32>
    tpu.vector_store %arg26[%c0_30, %c64], %85 {strides = array<i32>} : memref<8x256xf32, #tpu.memory_space<vmem>>, vector<8x32xf32>,
    %87 = vector.extract_strided_slice %14 {offsets = [0, 384], sizes = [8, 128], strides = [1, 1]} : vector<8x1024xf32> to vector<8x128xf32>
    %88 = arith.truncf %85 : vector<8x32xf32> to vector<8x32xbf16>
    %cst_31 = arith.constant dense<0.000000e+00> : vector<8x128xf32>
    %89 = tpu.matmul %88, %15, %cst_31 {dimension_numbers = #tpu.dot_dimension_numbers<[1], [0], [0], [1], [0, 0, 1, 1], [], []>} : vector<8x32xbf16>, vector<32x128xbf16>, vector<8x128xf32> -> vector<8x128xf32>
    %90 = arith.addf %87, %89 : vector<8x128xf32>
    %91 = arith.negf %90 : vector<8x128xf32>
    %92 = math.exp %91 : vector<8x128xf32>
    %cst_32 = arith.constant 1.000000e+00 : f32
    %93 = vector.broadcast %cst_32 : f32 to vector<8x128xf32>
    %94 = arith.addf %93, %92 : vector<8x128xf32>
    %95 = arith.divf %93, %94 : vector<8x128xf32>
    %96 = vector.extract_strided_slice %95 {offsets = [0, 0], sizes = [8, 32], strides = [1, 1]} : vector<8x128xf32> to vector<8x32xf32>
    %97 = vector.extract_strided_slice %95 {offsets = [0, 32], sizes = [8, 32], strides = [1, 1]} : vector<8x128xf32> to vector<8x32xf32>
    %98 = vector.extract_strided_slice %95 {offsets = [0, 64], sizes = [8, 32], strides = [1, 1]} : vector<8x128xf32> to vector<8x32xf32>
    %cst_33 = arith.constant 2.000000e+00 : f32
    %99 = vector.broadcast %cst_33 : f32 to vector<8x32xf32>
    %100 = arith.mulf %99, %98 : vector<8x32xf32>
    %cst_34 = arith.constant 1.000000e+00 : f32
    %101 = vector.broadcast %cst_34 : f32 to vector<8x32xf32>
    %102 = arith.subf %100, %101 : vector<8x32xf32>
    %103 = vector.extract_strided_slice %95 {offsets = [0, 96], sizes = [8, 32], strides = [1, 1]} : vector<8x128xf32> to vector<8x32xf32>
    %104 = arith.mulf %97, %83 : vector<8x32xf32>
    %105 = arith.mulf %96, %102 : vector<8x32xf32>
    %106 = arith.addf %104, %105 : vector<8x32xf32>
    %107 = math.tanh %106 : vector<8x32xf32>
    %108 = arith.mulf %103, %107 : vector<8x32xf32>
    %c0_35 = arith.constant 0 : index
    %c96 = arith.constant 96 : index
    %109 = vector.load %arg26[%c0_35, %c96] : memref<8x256xf32, #tpu.memory_space<vmem>>, vector<8x32xf32>
    tpu.vector_store %arg26[%c0_35, %c96], %108 {strides = array<i32>} : memref<8x256xf32, #tpu.memory_space<vmem>>, vector<8x32xf32>,
    %110 = vector.extract_strided_slice %14 {offsets = [0, 512], sizes = [8, 128], strides = [1, 1]} : vector<8x1024xf32> to vector<8x128xf32>
    %111 = arith.truncf %108 : vector<8x32xf32> to vector<8x32xbf16>
    %cst_36 = arith.constant dense<0.000000e+00> : vector<8x128xf32>
    %112 = tpu.matmul %111, %15, %cst_36 {dimension_numbers = #tpu.dot_dimension_numbers<[1], [0], [0], [1], [0, 0, 1, 1], [], []>} : vector<8x32xbf16>, vector<32x128xbf16>, vector<8x128xf32> -> vector<8x128xf32>
    %113 = arith.addf %110, %112 : vector<8x128xf32>
    %114 = arith.negf %113 : vector<8x128xf32>
    %115 = math.exp %114 : vector<8x128xf32>
    %cst_37 = arith.constant 1.000000e+00 : f32
    %116 = vector.broadcast %cst_37 : f32 to vector<8x128xf32>
    %117 = arith.addf %116, %115 : vector<8x128xf32>
    %118 = arith.divf %116, %117 : vector<8x128xf32>
    %119 = vector.extract_strided_slice %118 {offsets = [0, 0], sizes = [8, 32], strides = [1, 1]} : vector<8x128xf32> to vector<8x32xf32>
    %120 = vector.extract_strided_slice %118 {offsets = [0, 32], sizes = [8, 32], strides = [1, 1]} : vector<8x128xf32> to vector<8x32xf32>
    %121 = vector.extract_strided_slice %118 {offsets = [0, 64], sizes = [8, 32], strides = [1, 1]} : vector<8x128xf32> to vector<8x32xf32>
    %cst_38 = arith.constant 2.000000e+00 : f32
    %122 = vector.broadcast %cst_38 : f32 to vector<8x32xf32>
    %123 = arith.mulf %122, %121 : vector<8x32xf32>
    %cst_39 = arith.constant 1.000000e+00 : f32
    %124 = vector.broadcast %cst_39 : f32 to vector<8x32xf32>
    %125 = arith.subf %123, %124 : vector<8x32xf32>
    %126 = vector.extract_strided_slice %118 {offsets = [0, 96], sizes = [8, 32], strides = [1, 1]} : vector<8x128xf32> to vector<8x32xf32>
    %127 = arith.mulf %120, %106 : vector<8x32xf32>
    %128 = arith.mulf %119, %125 : vector<8x32xf32>
    %129 = arith.addf %127, %128 : vector<8x32xf32>
    %130 = math.tanh %129 : vector<8x32xf32>
    %131 = arith.mulf %126, %130 : vector<8x32xf32>
    %c0_40 = arith.constant 0 : index
    %c128 = arith.constant 128 : index
    %132 = vector.load %arg26[%c0_40, %c128] : memref<8x256xf32, #tpu.memory_space<vmem>>, vector<8x32xf32>
    tpu.vector_store %arg26[%c0_40, %c128], %131 {strides = array<i32>} : memref<8x256xf32, #tpu.memory_space<vmem>>, vector<8x32xf32>,
    %133 = vector.extract_strided_slice %14 {offsets = [0, 640], sizes = [8, 128], strides = [1, 1]} : vector<8x1024xf32> to vector<8x128xf32>
    %134 = arith.truncf %131 : vector<8x32xf32> to vector<8x32xbf16>
    %cst_41 = arith.constant dense<0.000000e+00> : vector<8x128xf32>
    %135 = tpu.matmul %134, %15, %cst_41 {dimension_numbers = #tpu.dot_dimension_numbers<[1], [0], [0], [1], [0, 0, 1, 1], [], []>} : vector<8x32xbf16>, vector<32x128xbf16>, vector<8x128xf32> -> vector<8x128xf32>
    %136 = arith.addf %133, %135 : vector<8x128xf32>
    %137 = arith.negf %136 : vector<8x128xf32>
    %138 = math.exp %137 : vector<8x128xf32>
    %cst_42 = arith.constant 1.000000e+00 : f32
    %139 = vector.broadcast %cst_42 : f32 to vector<8x128xf32>
    %140 = arith.addf %139, %138 : vector<8x128xf32>
    %141 = arith.divf %139, %140 : vector<8x128xf32>
    %142 = vector.extract_strided_slice %141 {offsets = [0, 0], sizes = [8, 32], strides = [1, 1]} : vector<8x128xf32> to vector<8x32xf32>
    %143 = vector.extract_strided_slice %141 {offsets = [0, 32], sizes = [8, 32], strides = [1, 1]} : vector<8x128xf32> to vector<8x32xf32>
    %144 = vector.extract_strided_slice %141 {offsets = [0, 64], sizes = [8, 32], strides = [1, 1]} : vector<8x128xf32> to vector<8x32xf32>
    %cst_43 = arith.constant 2.000000e+00 : f32
    %145 = vector.broadcast %cst_43 : f32 to vector<8x32xf32>
    %146 = arith.mulf %145, %144 : vector<8x32xf32>
    %cst_44 = arith.constant 1.000000e+00 : f32
    %147 = vector.broadcast %cst_44 : f32 to vector<8x32xf32>
    %148 = arith.subf %146, %147 : vector<8x32xf32>
    %149 = vector.extract_strided_slice %141 {offsets = [0, 96], sizes = [8, 32], strides = [1, 1]} : vector<8x128xf32> to vector<8x32xf32>
    %150 = arith.mulf %143, %129 : vector<8x32xf32>
    %151 = arith.mulf %142, %148 : vector<8x32xf32>
    %152 = arith.addf %150, %151 : vector<8x32xf32>
    %153 = math.tanh %152 : vector<8x32xf32>
    %154 = arith.mulf %149, %153 : vector<8x32xf32>
    %c0_45 = arith.constant 0 : index
    %c160 = arith.constant 160 : index
    %155 = vector.load %arg26[%c0_45, %c160] : memref<8x256xf32, #tpu.memory_space<vmem>>, vector<8x32xf32>
    tpu.vector_store %arg26[%c0_45, %c160], %154 {strides = array<i32>} : memref<8x256xf32, #tpu.memory_space<vmem>>, vector<8x32xf32>,
    %156 = vector.extract_strided_slice %14 {offsets = [0, 768], sizes = [8, 128], strides = [1, 1]} : vector<8x1024xf32> to vector<8x128xf32>
    %157 = arith.truncf %154 : vector<8x32xf32> to vector<8x32xbf16>
    %cst_46 = arith.constant dense<0.000000e+00> : vector<8x128xf32>
    %158 = tpu.matmul %157, %15, %cst_46 {dimension_numbers = #tpu.dot_dimension_numbers<[1], [0], [0], [1], [0, 0, 1, 1], [], []>} : vector<8x32xbf16>, vector<32x128xbf16>, vector<8x128xf32> -> vector<8x128xf32>
    %159 = arith.addf %156, %158 : vector<8x128xf32>
    %160 = arith.negf %159 : vector<8x128xf32>
    %161 = math.exp %160 : vector<8x128xf32>
    %cst_47 = arith.constant 1.000000e+00 : f32
    %162 = vector.broadcast %cst_47 : f32 to vector<8x128xf32>
    %163 = arith.addf %162, %161 : vector<8x128xf32>
    %164 = arith.divf %162, %163 : vector<8x128xf32>
    %165 = vector.extract_strided_slice %164 {offsets = [0, 0], sizes = [8, 32], strides = [1, 1]} : vector<8x128xf32> to vector<8x32xf32>
    %166 = vector.extract_strided_slice %164 {offsets = [0, 32], sizes = [8, 32], strides = [1, 1]} : vector<8x128xf32> to vector<8x32xf32>
    %167 = vector.extract_strided_slice %164 {offsets = [0, 64], sizes = [8, 32], strides = [1, 1]} : vector<8x128xf32> to vector<8x32xf32>
    %cst_48 = arith.constant 2.000000e+00 : f32
    %168 = vector.broadcast %cst_48 : f32 to vector<8x32xf32>
    %169 = arith.mulf %168, %167 : vector<8x32xf32>
    %cst_49 = arith.constant 1.000000e+00 : f32
    %170 = vector.broadcast %cst_49 : f32 to vector<8x32xf32>
    %171 = arith.subf %169, %170 : vector<8x32xf32>
    %172 = vector.extract_strided_slice %164 {offsets = [0, 96], sizes = [8, 32], strides = [1, 1]} : vector<8x128xf32> to vector<8x32xf32>
    %173 = arith.mulf %166, %152 : vector<8x32xf32>
    %174 = arith.mulf %165, %171 : vector<8x32xf32>
    %175 = arith.addf %173, %174 : vector<8x32xf32>
    %176 = math.tanh %175 : vector<8x32xf32>
    %177 = arith.mulf %172, %176 : vector<8x32xf32>
    %c0_50 = arith.constant 0 : index
    %c192 = arith.constant 192 : index
    %178 = vector.load %arg26[%c0_50, %c192] : memref<8x256xf32, #tpu.memory_space<vmem>>, vector<8x32xf32>
    tpu.vector_store %arg26[%c0_50, %c192], %177 {strides = array<i32>} : memref<8x256xf32, #tpu.memory_space<vmem>>, vector<8x32xf32>,
    %179 = vector.extract_strided_slice %14 {offsets = [0, 896], sizes = [8, 128], strides = [1, 1]} : vector<8x1024xf32> to vector<8x128xf32>
    %180 = arith.truncf %177 : vector<8x32xf32> to vector<8x32xbf16>
    %cst_51 = arith.constant dense<0.000000e+00> : vector<8x128xf32>
    %181 = tpu.matmul %180, %15, %cst_51 {dimension_numbers = #tpu.dot_dimension_numbers<[1], [0], [0], [1], [0, 0, 1, 1], [], []>} : vector<8x32xbf16>, vector<32x128xbf16>, vector<8x128xf32> -> vector<8x128xf32>
    %182 = arith.addf %179, %181 : vector<8x128xf32>
    %183 = arith.negf %182 : vector<8x128xf32>
    %184 = math.exp %183 : vector<8x128xf32>
    %cst_52 = arith.constant 1.000000e+00 : f32
    %185 = vector.broadcast %cst_52 : f32 to vector<8x128xf32>
    %186 = arith.addf %185, %184 : vector<8x128xf32>
    %187 = arith.divf %185, %186 : vector<8x128xf32>
    %188 = vector.extract_strided_slice %187 {offsets = [0, 0], sizes = [8, 32], strides = [1, 1]} : vector<8x128xf32> to vector<8x32xf32>
    %189 = vector.extract_strided_slice %187 {offsets = [0, 32], sizes = [8, 32], strides = [1, 1]} : vector<8x128xf32> to vector<8x32xf32>
    %190 = vector.extract_strided_slice %187 {offsets = [0, 64], sizes = [8, 32], strides = [1, 1]} : vector<8x128xf32> to vector<8x32xf32>
    %cst_53 = arith.constant 2.000000e+00 : f32
    %191 = vector.broadcast %cst_53 : f32 to vector<8x32xf32>
    %192 = arith.mulf %191, %190 : vector<8x32xf32>
    %cst_54 = arith.constant 1.000000e+00 : f32
    %193 = vector.broadcast %cst_54 : f32 to vector<8x32xf32>
    %194 = arith.subf %192, %193 : vector<8x32xf32>
    %195 = vector.extract_strided_slice %187 {offsets = [0, 96], sizes = [8, 32], strides = [1, 1]} : vector<8x128xf32> to vector<8x32xf32>
    %196 = arith.mulf %189, %175 : vector<8x32xf32>
    %197 = arith.mulf %188, %194 : vector<8x32xf32>
    %198 = arith.addf %196, %197 : vector<8x32xf32>
    %199 = math.tanh %198 : vector<8x32xf32>
    %200 = arith.mulf %195, %199 : vector<8x32xf32>
    %c0_55 = arith.constant 0 : index
    %c224 = arith.constant 224 : index
    %201 = vector.load %arg26[%c0_55, %c224] : memref<8x256xf32, #tpu.memory_space<vmem>>, vector<8x32xf32>
    tpu.vector_store %arg26[%c0_55, %c224], %200 {strides = array<i32>} : memref<8x256xf32, #tpu.memory_space<vmem>>, vector<8x32xf32>,
    %c0_56 = arith.constant 0 : index
    %c0_57 = arith.constant 0 : index
    %202 = vector.load %arg26[%c0_56, %c0_57] : memref<8x256xf32, #tpu.memory_space<vmem>>, vector<8x256xf32>
    %c0_58 = arith.constant 0 : index
    %c0_59 = arith.constant 0 : index
    %203 = vector.load %arg2[%c0_58, %c0_59] : memref<8x6xf32, #tpu.memory_space<vmem>>, vector<8x6xf32>
    %204 = arith.truncf %203 : vector<8x6xf32> to vector<8x6xbf16>
    %c0_60 = arith.constant 0 : index
    %c0_61 = arith.constant 0 : index
    %205 = vector.load %arg9[%c0_60, %c0_61] : memref<6x32xbf16, #tpu.memory_space<vmem>>, vector<6x32xbf16>
    %cst_62 = arith.constant dense<0.000000e+00> : vector<8x32xf32>
    %206 = tpu.matmul %204, %205, %cst_62 {dimension_numbers = #tpu.dot_dimension_numbers<[1], [0], [0], [1], [0, 0, 1, 1], [], []>} : vector<8x6xbf16>, vector<6x32xbf16>, vector<8x32xf32> -> vector<8x32xf32>
    %c0_63 = arith.constant 0 : index
    %c0_64 = arith.constant 0 : index
    %207 = vector.load %arg10[%c0_63, %c0_64] : memref<1x32xf32, #tpu.memory_space<vmem>>, vector<1x32xf32>
    %208 = vector.broadcast %207 : vector<1x32xf32> to vector<8x32xf32>
    %209 = arith.addf %206, %208 : vector<8x32xf32>
    %cst_65 = arith.constant 0.000000e+00 : f32
    %210 = vector.broadcast %cst_65 : f32 to vector<8x32xf32>
    %211 = arith.maximumf %209, %210 : vector<8x32xf32>
    %212 = arith.truncf %211 : vector<8x32xf32> to vector<8x32xbf16>
    %c0_66 = arith.constant 0 : index
    %c0_67 = arith.constant 0 : index
    %213 = vector.load %arg11[%c0_66, %c0_67] : memref<32x32xbf16, #tpu.memory_space<vmem>>, vector<32x32xbf16>
    %cst_68 = arith.constant dense<0.000000e+00> : vector<8x32xf32>
    %214 = tpu.matmul %212, %213, %cst_68 {dimension_numbers = #tpu.dot_dimension_numbers<[1], [0], [0], [1], [0, 0, 1, 1], [], []>} : vector<8x32xbf16>, vector<32x32xbf16>, vector<8x32xf32> -> vector<8x32xf32>
    %c0_69 = arith.constant 0 : index
    %c0_70 = arith.constant 0 : index
    %215 = vector.load %arg12[%c0_69, %c0_70] : memref<1x32xf32, #tpu.memory_space<vmem>>, vector<1x32xf32>
    %216 = vector.broadcast %215 : vector<1x32xf32> to vector<8x32xf32>
    %217 = arith.addf %214, %216 : vector<8x32xf32>
    %cst_71 = arith.constant 0.000000e+00 : f32
    %218 = vector.broadcast %cst_71 : f32 to vector<8x32xf32>
    %219 = arith.maximumf %217, %218 : vector<8x32xf32>
    %220 = arith.truncf %219 : vector<8x32xf32> to vector<8x32xbf16>
    %c0_72 = arith.constant 0 : index
    %c0_73 = arith.constant 0 : index
    %221 = vector.load %arg13[%c0_72, %c0_73] : memref<32x32xbf16, #tpu.memory_space<vmem>>, vector<32x32xbf16>
    %cst_74 = arith.constant dense<0.000000e+00> : vector<8x32xf32>
    %222 = tpu.matmul %220, %221, %cst_74 {dimension_numbers = #tpu.dot_dimension_numbers<[1], [0], [0], [1], [0, 0, 1, 1], [], []>} : vector<8x32xbf16>, vector<32x32xbf16>, vector<8x32xf32> -> vector<8x32xf32>
    %c0_75 = arith.constant 0 : index
    %c0_76 = arith.constant 0 : index
    %223 = vector.load %arg14[%c0_75, %c0_76] : memref<1x32xf32, #tpu.memory_space<vmem>>, vector<1x32xf32>
    %224 = vector.broadcast %223 : vector<1x32xf32> to vector<8x32xf32>
    %225 = arith.addf %222, %224 : vector<8x32xf32>
    %226 = arith.truncf %202 : vector<8x256xf32> to vector<8x256xbf16>
    %c0_77 = arith.constant 0 : index
    %c0_78 = arith.constant 0 : index
    %227 = vector.load %arg15[%c0_77, %c0_78] : memref<256x256xbf16, #tpu.memory_space<vmem>>, vector<256x256xbf16>
    %cst_79 = arith.constant dense<0.000000e+00> : vector<8x256xf32>
    %228 = tpu.matmul %226, %227, %cst_79 {dimension_numbers = #tpu.dot_dimension_numbers<[1], [0], [0], [1], [0, 0, 1, 1], [], []>} : vector<8x256xbf16>, vector<256x256xbf16>, vector<8x256xf32> -> vector<8x256xf32>
    %c0_80 = arith.constant 0 : index
    %c0_81 = arith.constant 0 : index
    %229 = vector.load %arg16[%c0_80, %c0_81] : memref<1x256xf32, #tpu.memory_space<vmem>>, vector<1x256xf32>
    %230 = vector.broadcast %229 : vector<1x256xf32> to vector<8x256xf32>
    %231 = arith.addf %228, %230 : vector<8x256xf32>
    %232 = arith.truncf %225 : vector<8x32xf32> to vector<8x32xbf16>
    %c0_82 = arith.constant 0 : index
    %c0_83 = arith.constant 0 : index
    %233 = vector.load %arg17[%c0_82, %c0_83] : memref<32x256xbf16, #tpu.memory_space<vmem>>, vector<32x256xbf16>
    %cst_84 = arith.constant dense<0.000000e+00> : vector<8x256xf32>
    %234 = tpu.matmul %232, %233, %cst_84 {dimension_numbers = #tpu.dot_dimension_numbers<[1], [0], [0], [1], [0, 0, 1, 1], [], []>} : vector<8x32xbf16>, vector<32x256xbf16>, vector<8x256xf32> -> vector<8x256xf32>
    %c0_85 = arith.constant 0 : index
    %c0_86 = arith.constant 0 : index
    %235 = vector.load %arg18[%c0_85, %c0_86] : memref<1x256xf32, #tpu.memory_space<vmem>>, vector<1x256xf32>
    %236 = vector.broadcast %235 : vector<1x256xf32> to vector<8x256xf32>
    %237 = arith.addf %234, %236 : vector<8x256xf32>
    %238 = arith.addf %231, %237 : vector<8x256xf32>
    %239 = arith.truncf %238 : vector<8x256xf32> to vector<8x256xbf16>
    %c0_87 = arith.constant 0 : index
    %c0_88 = arith.constant 0 : index
    %240 = vector.load %arg19[%c0_87, %c0_88] : memref<256x256xbf16, #tpu.memory_space<vmem>>, vector<256x256xbf16>
    %cst_89 = arith.constant dense<0.000000e+00> : vector<8x256xf32>
    %241 = tpu.matmul %239, %240, %cst_89 {dimension_numbers = #tpu.dot_dimension_numbers<[1], [0], [0], [1], [0, 0, 1, 1], [], []>} : vector<8x256xbf16>, vector<256x256xbf16>, vector<8x256xf32> -> vector<8x256xf32>
    %c0_90 = arith.constant 0 : index
    %c0_91 = arith.constant 0 : index
    %242 = vector.load %arg20[%c0_90, %c0_91] : memref<1x256xf32, #tpu.memory_space<vmem>>, vector<1x256xf32>
    %243 = vector.broadcast %242 : vector<1x256xf32> to vector<8x256xf32>
    %244 = arith.addf %241, %243 : vector<8x256xf32>
    %245 = arith.mulf %244, %231 : vector<8x256xf32>
    %cst_92 = arith.constant 1.000000e+00 : f32
    %246 = vector.broadcast %cst_92 : f32 to vector<8x256xf32>
    %247 = arith.subf %246, %244 : vector<8x256xf32>
    %248 = arith.mulf %247, %237 : vector<8x256xf32>
    %249 = tpu.concatenate %245, %248 in 1 : vector<8x256xf32>, vector<8x256xf32> -> vector<8x512xf32>
    %250 = arith.truncf %249 : vector<8x512xf32> to vector<8x512xbf16>
    %c0_93 = arith.constant 0 : index
    %c0_94 = arith.constant 0 : index
    %251 = vector.load %arg21[%c0_93, %c0_94] : memref<512x32xbf16, #tpu.memory_space<vmem>>, vector<512x32xbf16>
    %cst_95 = arith.constant dense<0.000000e+00> : vector<8x32xf32>
    %252 = tpu.matmul %250, %251, %cst_95 {dimension_numbers = #tpu.dot_dimension_numbers<[1], [0], [0], [1], [0, 0, 1, 1], [], []>} : vector<8x512xbf16>, vector<512x32xbf16>, vector<8x32xf32> -> vector<8x32xf32>
    %c0_96 = arith.constant 0 : index
    %c0_97 = arith.constant 0 : index
    %253 = vector.load %arg22[%c0_96, %c0_97] : memref<1x32xf32, #tpu.memory_space<vmem>>, vector<1x32xf32>
    %254 = vector.broadcast %253 : vector<1x32xf32> to vector<8x32xf32>
    %255 = arith.addf %252, %254 : vector<8x32xf32>
    %cst_98 = arith.constant 0.000000e+00 : f32
    %256 = vector.broadcast %cst_98 : f32 to vector<8x32xf32>
    %257 = arith.maximumf %255, %256 : vector<8x32xf32>
    %258 = arith.truncf %257 : vector<8x32xf32> to vector<8x32xbf16>
    %c0_99 = arith.constant 0 : index
    %c0_100 = arith.constant 0 : index
    %259 = vector.load %arg23[%c0_99, %c0_100] : memref<32x3xbf16, #tpu.memory_space<vmem>>, vector<32x3xbf16>
    %cst_101 = arith.constant dense<0.000000e+00> : vector<8x3xf32>
    %260 = tpu.matmul %258, %259, %cst_101 {dimension_numbers = #tpu.dot_dimension_numbers<[1], [0], [0], [1], [0, 0, 1, 1], [], []>} : vector<8x32xbf16>, vector<32x3xbf16>, vector<8x3xf32> -> vector<8x3xf32>
    %c0_102 = arith.constant 0 : index
    %c0_103 = arith.constant 0 : index
    %261 = vector.load %arg24[%c0_102, %c0_103] : memref<1x3xf32, #tpu.memory_space<vmem>>, vector<1x3xf32>
    %262 = vector.broadcast %261 : vector<1x3xf32> to vector<8x3xf32>
    %263 = arith.addf %260, %262 : vector<8x3xf32>
    %c0_104 = arith.constant 0 : index
    %c0_105 = arith.constant 0 : index
    %264 = vector.load %arg3[%c0_104, %c0_105] : memref<8x1xi32, #tpu.memory_space<vmem>>, vector<8x1xi32>
    %265 = tpu.iota {dimensions = array<i32: 1>} : vector<8x3xi32>
    %266 = vector.broadcast %264 : vector<8x1xi32> to vector<8x3xi32>
    %267 = arith.cmpi eq, %265, %266 : vector<8x3xi32>
    %cst_106 = arith.constant 0.000000e+00 : f32
    %268 = vector.broadcast %cst_106 : f32 to vector<8x3xf32>
    %269 = arith.select %267, %263, %268 : vector<8x3xi1>, vector<8x3xf32>
    %cst_107 = arith.constant dense<0.000000e+00> : vector<8xf32>
    %270 = vector.multi_reduction <add>, %269, %cst_107 [1] : vector<8x3xf32> to vector<8xf32>
    %271 = vector.shape_cast %270 : vector<8xf32> to vector<8x1xf32>
    %272 = vector.shape_cast %271 : vector<8x1xf32> to vector<8x1xf32>
    %273 = vector.broadcast %272 : vector<8x1xf32> to vector<8x128xf32>
    %c0_108 = arith.constant 0 : index
    %c0_109 = arith.constant 0 : index
    %274 = vector.load %arg25[%c0_108, %c0_109] : memref<8x128xf32, #tpu.memory_space<vmem>>, vector<8x128xf32>
    tpu.vector_store %arg25[%c0_108, %c0_109], %273 {strides = array<i32>} : memref<8x128xf32, #tpu.memory_space<vmem>>, vector<8x128xf32>,
    return
  }
  func.func @transform_0(%arg0: i32) -> (i32, i32) {
    %c0_i32 = arith.constant 0 : i32
    %c0_i32_0 = arith.constant 0 : i32
    return %arg0, %c0_i32 : i32, i32
  }
  func.func @transform_1(%arg0: i32) -> (i32, i32) {
    %c0_i32 = arith.constant 0 : i32
    %c0_i32_0 = arith.constant 0 : i32
    return %arg0, %c0_i32 : i32, i32
  }
  func.func @transform_2(%arg0: i32) -> (i32, i32) {
    %c0_i32 = arith.constant 0 : i32
    %c0_i32_0 = arith.constant 0 : i32
    return %arg0, %c0_i32 : i32, i32
  }
  func.func @transform_3(%arg0: i32) -> (i32, i32) {
    %c0_i32 = arith.constant 0 : i32
    %c0_i32_0 = arith.constant 0 : i32
    %c0_i32_1 = arith.constant 0 : i32
    return %c0_i32, %c0_i32_0 : i32, i32
  }
  func.func @transform_4(%arg0: i32) -> (i32, i32) {
    %c0_i32 = arith.constant 0 : i32
    %c0_i32_0 = arith.constant 0 : i32
    %c0_i32_1 = arith.constant 0 : i32
    return %c0_i32, %c0_i32_0 : i32, i32
  }
  func.func @transform_5(%arg0: i32) -> (i32, i32) {
    %c0_i32 = arith.constant 0 : i32
    %c0_i32_0 = arith.constant 0 : i32
    %c0_i32_1 = arith.constant 0 : i32
    return %c0_i32, %c0_i32_0 : i32, i32
  }
  func.func @transform_6(%arg0: i32) -> (i32, i32) {
    %c0_i32 = arith.constant 0 : i32
    %c0_i32_0 = arith.constant 0 : i32
    %c0_i32_1 = arith.constant 0 : i32
    return %c0_i32, %c0_i32_0 : i32, i32
  }
  func.func @transform_7(%arg0: i32) -> (i32, i32) {
    %c0_i32 = arith.constant 0 : i32
    %c0_i32_0 = arith.constant 0 : i32
    %c0_i32_1 = arith.constant 0 : i32
    return %c0_i32, %c0_i32_0 : i32, i32
  }
  func.func @transform_8(%arg0: i32) -> (i32, i32) {
    %c0_i32 = arith.constant 0 : i32
    %c0_i32_0 = arith.constant 0 : i32
    %c0_i32_1 = arith.constant 0 : i32
    return %c0_i32, %c0_i32_0 : i32, i32
  }
  func.func @transform_9(%arg0: i32) -> (i32, i32) {
    %c0_i32 = arith.constant 0 : i32
    %c0_i32_0 = arith.constant 0 : i32
    %c0_i32_1 = arith.constant 0 : i32
    return %c0_i32, %c0_i32_0 : i32, i32
  }
  func.func @transform_10(%arg0: i32) -> (i32, i32) {
    %c0_i32 = arith.constant 0 : i32
    %c0_i32_0 = arith.constant 0 : i32
    %c0_i32_1 = arith.constant 0 : i32
    return %c0_i32, %c0_i32_0 : i32, i32
  }
  func.func @transform_11(%arg0: i32) -> (i32, i32) {
    %c0_i32 = arith.constant 0 : i32
    %c0_i32_0 = arith.constant 0 : i32
    %c0_i32_1 = arith.constant 0 : i32
    return %c0_i32, %c0_i32_0 : i32, i32
  }
  func.func @transform_12(%arg0: i32) -> (i32, i32) {
    %c0_i32 = arith.constant 0 : i32
    %c0_i32_0 = arith.constant 0 : i32
    %c0_i32_1 = arith.constant 0 : i32
    return %c0_i32, %c0_i32_0 : i32, i32
  }
  func.func @transform_13(%arg0: i32) -> (i32, i32) {
    %c0_i32 = arith.constant 0 : i32
    %c0_i32_0 = arith.constant 0 : i32
    %c0_i32_1 = arith.constant 0 : i32
    return %c0_i32, %c0_i32_0 : i32, i32
  }
  func.func @transform_14(%arg0: i32) -> (i32, i32) {
    %c0_i32 = arith.constant 0 : i32
    %c0_i32_0 = arith.constant 0 : i32
    %c0_i32_1 = arith.constant 0 : i32
    return %c0_i32, %c0_i32_0 : i32, i32
  }
  func.func @transform_15(%arg0: i32) -> (i32, i32) {
    %c0_i32 = arith.constant 0 : i32
    %c0_i32_0 = arith.constant 0 : i32
    %c0_i32_1 = arith.constant 0 : i32
    return %c0_i32, %c0_i32_0 : i32, i32
  }
  func.func @transform_16(%arg0: i32) -> (i32, i32) {
    %c0_i32 = arith.constant 0 : i32
    %c0_i32_0 = arith.constant 0 : i32
    %c0_i32_1 = arith.constant 0 : i32
    return %c0_i32, %c0_i32_0 : i32, i32
  }
  func.func @transform_17(%arg0: i32) -> (i32, i32) {
    %c0_i32 = arith.constant 0 : i32
    %c0_i32_0 = arith.constant 0 : i32
    %c0_i32_1 = arith.constant 0 : i32
    return %c0_i32, %c0_i32_0 : i32, i32
  }
  func.func @transform_18(%arg0: i32) -> (i32, i32) {
    %c0_i32 = arith.constant 0 : i32
    %c0_i32_0 = arith.constant 0 : i32
    %c0_i32_1 = arith.constant 0 : i32
    return %c0_i32, %c0_i32_0 : i32, i32
  }
  func.func @transform_19(%arg0: i32) -> (i32, i32) {
    %c0_i32 = arith.constant 0 : i32
    %c0_i32_0 = arith.constant 0 : i32
    %c0_i32_1 = arith.constant 0 : i32
    return %c0_i32, %c0_i32_0 : i32, i32
  }
  func.func @transform_20(%arg0: i32) -> (i32, i32) {
    %c0_i32 = arith.constant 0 : i32
    %c0_i32_0 = arith.constant 0 : i32
    %c0_i32_1 = arith.constant 0 : i32
    return %c0_i32, %c0_i32_0 : i32, i32
  }
  func.func @transform_21(%arg0: i32) -> (i32, i32) {
    %c0_i32 = arith.constant 0 : i32
    %c0_i32_0 = arith.constant 0 : i32
    %c0_i32_1 = arith.constant 0 : i32
    return %c0_i32, %c0_i32_0 : i32, i32
  }
  func.func @transform_22(%arg0: i32) -> (i32, i32) {
    %c0_i32 = arith.constant 0 : i32
    %c0_i32_0 = arith.constant 0 : i32
    %c0_i32_1 = arith.constant 0 : i32
    return %c0_i32, %c0_i32_0 : i32, i32
  }
  func.func @transform_23(%arg0: i32) -> (i32, i32) {
    %c0_i32 = arith.constant 0 : i32
    %c0_i32_0 = arith.constant 0 : i32
    %c0_i32_1 = arith.constant 0 : i32
    return %c0_i32, %c0_i32_0 : i32, i32
  }
  func.func @transform_24(%arg0: i32) -> (i32, i32) {
    %c0_i32 = arith.constant 0 : i32
    %c0_i32_0 = arith.constant 0 : i32
    return %arg0, %c0_i32 : i32, i32
  }
}

</mosaic_0001>

<llo_original>
// kernel: fwd.1
$region0: #{fwd.1}
  #allocation0 [shape = 'u32[]', space=smem, size = 0x4, offset = 0x4, fixed_abs, tag = 'smem constant byte address 0x4 - core index']
  #allocation1 [shape = 'u32[144,128]{1,0:T(1,128)}', space=vmem, size = 0x12000, scoped, tag = 'internal scratch']
  #allocation2 [shape = 'f32[8,256]{1,0:T(8,128)}', space=vmem, size = 0x2000, scoped, tag = 'scratch operand']
  %s0 = inlined_call_operand.vmem [shape: f32[8,32], index: 0, kind: input, shape index: {}]
  %s1 = inlined_call_operand.vmem [shape: f32[8,6], index: 1, kind: input, shape index: {}]
  %s2 = inlined_call_operand.vmem [shape: s32[8,1], index: 2, kind: input, shape index: {}]
  %s3 = inlined_call_operand.vmem [shape: bf16[32,256], index: 3, kind: input, shape index: {}]
  %s4 = inlined_call_operand.vmem [shape: f32[1,256], index: 4, kind: input, shape index: {}]
  %s5 = inlined_call_operand.hbm [shape: bf16[256,1024], index: 5, kind: input, shape index: {}]
  %s6 = inlined_call_operand.vmem [shape: f32[1,1024], index: 6, kind: input, shape index: {}]
  %s7 = inlined_call_operand.vmem [shape: bf16[32,128], index: 7, kind: input, shape index: {}]
  %s8 = inlined_call_operand.vmem [shape: bf16[6,32], index: 8, kind: input, shape index: {}]
  %s9 = inlined_call_operand.vmem [shape: f32[1,32], index: 9, kind: input, shape index: {}]
  %s10 = inlined_call_operand.vmem [shape: bf16[32,32], index: 10, kind: input, shape index: {}]
  %s11 = inlined_call_operand.vmem [shape: f32[1,32], index: 11, kind: input, shape index: {}]
  %s12 = inlined_call_operand.vmem [shape: bf16[32,32], index: 12, kind: input, shape index: {}]
  %s13 = inlined_call_operand.vmem [shape: f32[1,32], index: 13, kind: input, shape index: {}]
  %s14 = inlined_call_operand.vmem [shape: bf16[256,256], index: 14, kind: input, shape index: {}]
  %s15 = inlined_call_operand.hbm [shape: f32[1,256], index: 15, kind: input, shape index: {}]
  %s16 = inlined_call_operand.vmem [shape: bf16[32,256], index: 16, kind: input, shape index: {}]
  %s17 = inlined_call_operand.hbm [shape: f32[1,256], index: 17, kind: input, shape index: {}]
  %s18 = inlined_call_operand.hbm [shape: bf16[256,256], index: 18, kind: input, shape index: {}]
  %s19 = inlined_call_operand.hbm [shape: f32[1,256], index: 19, kind: input, shape index: {}]
  %s20 = inlined_call_operand.vmem [shape: bf16[512,32], index: 20, kind: input, shape index: {}]
  %s21 = inlined_call_operand.hbm [shape: f32[1,32], index: 21, kind: input, shape index: {}]
  %s22 = inlined_call_operand.vmem [shape: bf16[32,3], index: 22, kind: input, shape index: {}]
  %s23 = inlined_call_operand.vmem [shape: f32[1,3], index: 23, kind: input, shape index: {}]
  %s24 = inlined_call_operand.vmem [shape: f32[8,128], index: 24, kind: output, shape index: {}]
  %s25 = sld [smem:[#allocation0]]
  $region130: #{fwd.1} parent=0
    _
  %s27 = ssub.s32 1, %s25
  %s28 = scalar_select 0, %s27, %s25
  $region1: #{fwd.1} parent=0
    #allocation3 [shape = 'u8[524288]{0}', space=vmem, size = 0x80000, scoped, tag = 'input window, operand 5, single buffered']
    #allocation4 [shape = 's32[1]{0}', space=sflag, size = 0x4, scoped, tag = 'scoped memory for fwd.1']
    #allocation5 [shape = 'u8[1024]{0}', space=vmem, size = 0x400, scoped, tag = 'input window, operand 15, single buffered']
    #allocation6 [shape = 's32[1]{0}', space=sflag, size = 0x4, scoped, tag = 'scoped memory for fwd.1']
    #allocation7 [shape = 'u8[1024]{0}', space=vmem, size = 0x400, scoped, tag = 'input window, operand 17, single buffered']
    #allocation8 [shape = 'u8[131072]{0}', space=vmem, size = 0x20000, scoped, tag = 'input window, operand 18, single buffered']
    #allocation9 [shape = 's32[1]{0}', space=sflag, size = 0x4, scoped, tag = 'scoped memory for fwd.1']
    #allocation10 [shape = 'u8[1024]{0}', space=vmem, size = 0x400, scoped, tag = 'input window, operand 19, single buffered']
    #allocation11 [shape = 'u8[512]{0}', space=vmem, size = 0x400, scoped, tag = 'input window, operand 21, single buffered']
    #allocation12 [shape = 's32[1]{0}', space=sflag, size = 0x4, scoped, tag = 'scoped memory for fwd.1']
    %29 = vsyncpa [#allocation4], 0
    %30 = vsyncpa [#allocation6], 0
    %31 = vsyncpa [#allocation9], 0
    %32 = vsyncpa [#allocation12], 0
    // Predicated region
    $region2: #{fwd.1} parent=1 // pred_check
      _
    $region3: #{fwd.1} parent=1 // pred_check_branch
      %34 = sbr.rel (0) target = $region5
    $region4: #{fwd.1} parent=1 // pred_region
      _
    $region5: #{fwd.1} parent=1 // pred_fallthru
      _
    // Predicated region
    $region6: #{fwd.1} parent=1 // pred_check
      _
    $region7: #{fwd.1} parent=1 // pred_check_branch
      %36 = sbr.rel (0) target = $region9
    $region8: #{fwd.1} parent=1 // pred_region
      _
    $region9: #{fwd.1} parent=1 // pred_fallthru
      _
    // Predicated region
    $region10: #{fwd.1} parent=1 // pred_check
      _
    $region11: #{fwd.1} parent=1 // pred_check_branch
      %38 = sbr.rel (0) target = $region13
    $region12: #{fwd.1} parent=1 // pred_region
      _
    $region13: #{fwd.1} parent=1 // pred_fallthru
      _
    // Predicated region
    $region14: #{fwd.1} parent=1 // pred_check
      _
    $region15: #{fwd.1} parent=1 // pred_check_branch
      %40 = sbr.rel (0) target = $region17
    $region16: #{fwd.1} parent=1 // pred_region
      _
    $region17: #{fwd.1} parent=1 // pred_fallthru
      _
    // Predicated region
    $region18: #{fwd.1} parent=1 // pred_check
      _
    $region19: #{fwd.1} parent=1 // pred_check_branch
      %42 = sbr.rel (0) target = $region21
    $region20: #{fwd.1} parent=1 // pred_region
      _
    $region21: #{fwd.1} parent=1 // pred_fallthru
      _
    // Predicated region
    $region22: #{fwd.1} parent=1 // pred_check
      _
    $region23: #{fwd.1} parent=1 // pred_check_branch
      %44 = sbr.rel (0) target = $region25
    $region24: #{fwd.1} parent=1 // pred_region
      %s46 = ssub.s32 16384, 16384
      %47 = vsyncadd [#allocation4], %s46
      %s48 = sshll.u32 [#allocation3], 4
      %s49 = int_to_ptr.vmem [resolvable:$true] %s48
      %54 = dma.hbm_to_vmem [thread:$0]  %s5, 16384, %s49, [#allocation4], 512, 512, 32
    $region25: #{fwd.1} parent=1 // pred_fallthru
      _
    // Predicated region
    $region26: #{fwd.1} parent=1 // pred_check
      _
    $region27: #{fwd.1} parent=1 // pred_check_branch
      %56 = sbr.rel (0) target = $region29
    $region28: #{fwd.1} parent=1 // pred_region
      _
    $region29: #{fwd.1} parent=1 // pred_fallthru
      _
    // Predicated region
    $region30: #{fwd.1} parent=1 // pred_check
      _
    $region31: #{fwd.1} parent=1 // pred_check_branch
      %58 = sbr.rel (0) target = $region33
    $region32: #{fwd.1} parent=1 // pred_region
      _
    $region33: #{fwd.1} parent=1 // pred_fallthru
      _
    // Predicated region
    $region34: #{fwd.1} parent=1 // pred_check
      _
    $region35: #{fwd.1} parent=1 // pred_check_branch
      %60 = sbr.rel (0) target = $region37
    $region36: #{fwd.1} parent=1 // pred_region
      _
    $region37: #{fwd.1} parent=1 // pred_fallthru
      _
    // Predicated region
    $region38: #{fwd.1} parent=1 // pred_check
      _
    $region39: #{fwd.1} parent=1 // pred_check_branch
      %62 = sbr.rel (0) target = $region41
    $region40: #{fwd.1} parent=1 // pred_region
      _
    $region41: #{fwd.1} parent=1 // pred_fallthru
      _
    // Predicated region
    $region42: #{fwd.1} parent=1 // pred_check
      _
    $region43: #{fwd.1} parent=1 // pred_check_branch
      %64 = sbr.rel (0) target = $region45
    $region44: #{fwd.1} parent=1 // pred_region
      _
    $region45: #{fwd.1} parent=1 // pred_fallthru
      _
    // Predicated region
    $region46: #{fwd.1} parent=1 // pred_check
      _
    $region47: #{fwd.1} parent=1 // pred_check_branch
      %66 = sbr.rel (0) target = $region49
    $region48: #{fwd.1} parent=1 // pred_region
      _
    $region49: #{fwd.1} parent=1 // pred_fallthru
      _
    // Predicated region
    $region50: #{fwd.1} parent=1 // pred_check
      _
    $region51: #{fwd.1} parent=1 // pred_check_branch
      %68 = sbr.rel (0) target = $region53
    $region52: #{fwd.1} parent=1 // pred_region
      _
    $region53: #{fwd.1} parent=1 // pred_fallthru
      _
    // Predicated region
    $region54: #{fwd.1} parent=1 // pred_check
      _
    $region55: #{fwd.1} parent=1 // pred_check_branch
      %70 = sbr.rel (0) target = $region57
    $region56: #{fwd.1} parent=1 // pred_region
      _
    $region57: #{fwd.1} parent=1 // pred_fallthru
      _
    // Predicated region
    $region58: #{fwd.1} parent=1 // pred_check
      _
    $region59: #{fwd.1} parent=1 // pred_check_branch
      %72 = sbr.rel (0) target = $region61
    $region60: #{fwd.1} parent=1 // pred_region
      _
    $region61: #{fwd.1} parent=1 // pred_fallthru
      _
    // Predicated region
    $region62: #{fwd.1} parent=1 // pred_check
      _
    $region63: #{fwd.1} parent=1 // pred_check_branch
      %74 = sbr.rel (0) target = $region65
    $region64: #{fwd.1} parent=1 // pred_region
      %s76 = ssub.s32 32, 32
      %77 = vsyncadd [#allocation6], %s76
      %s79 = sshll.u32 [#allocation5], 4
      %s80 = int_to_ptr.vmem [resolvable:$true] %s79
      %82 = dma.hbm_to_vmem [thread:$0]  %s15, 32, %s80, [#allocation6]
    $region65: #{fwd.1} parent=1 // pred_fallthru
      _
    // Predicated region
    $region66: #{fwd.1} parent=1 // pred_check
      _
    $region67: #{fwd.1} parent=1 // pred_check_branch
      %84 = sbr.rel (0) target = $region69
    $region68: #{fwd.1} parent=1 // pred_region
      _
    $region69: #{fwd.1} parent=1 // pred_fallthru
      _
    // Predicated region
    $region70: #{fwd.1} parent=1 // pred_check
      _
    $region71: #{fwd.1} parent=1 // pred_check_branch
      %86 = sbr.rel (0) target = $region73
    $region72: #{fwd.1} parent=1 // pred_region
      %s88 = ssub.s32 32, 32
      %89 = vsyncadd [#allocation6], %s88
      %s91 = sshll.u32 [#allocation7], 4
      %s92 = int_to_ptr.vmem [resolvable:$true] %s91
      %94 = dma.hbm_to_vmem [thread:$0]  %s17, 32, %s92, [#allocation6]
    $region73: #{fwd.1} parent=1 // pred_fallthru
      _
    // Predicated region
    $region74: #{fwd.1} parent=1 // pred_check
      _
    $region75: #{fwd.1} parent=1 // pred_check_branch
      %96 = sbr.rel (0) target = $region77
    $region76: #{fwd.1} parent=1 // pred_region
      %s98 = ssub.s32 4096, 4096
      %99 = vsyncadd [#allocation9], %s98
      %s100 = sshll.u32 [#allocation8], 4
      %s101 = int_to_ptr.vmem [resolvable:$true] %s100
      %106 = dma.hbm_to_vmem [thread:$0]  %s18, 4096, %s101, [#allocation9], 128, 128, 8
    $region77: #{fwd.1} parent=1 // pred_fallthru
      _
    // Predicated region
    $region78: #{fwd.1} parent=1 // pred_check
      _
    $region79: #{fwd.1} parent=1 // pred_check_branch
      %108 = sbr.rel (0) target = $region81
    $region80: #{fwd.1} parent=1 // pred_region
      %s110 = ssub.s32 32, 32
      %111 = vsyncadd [#allocation9], %s110
      %s113 = sshll.u32 [#allocation10], 4
      %s114 = int_to_ptr.vmem [resolvable:$true] %s113
      %116 = dma.hbm_to_vmem [thread:$0]  %s19, 32, %s114, [#allocation9]
    $region81: #{fwd.1} parent=1 // pred_fallthru
      _
    // Predicated region
    $region82: #{fwd.1} parent=1 // pred_check
      _
    $region83: #{fwd.1} parent=1 // pred_check_branch
      %118 = sbr.rel (0) target = $region85
    $region84: #{fwd.1} parent=1 // pred_region
      _
    $region85: #{fwd.1} parent=1 // pred_fallthru
      _
    // Predicated region
    $region86: #{fwd.1} parent=1 // pred_check
      _
    $region87: #{fwd.1} parent=1 // pred_check_branch
      %120 = sbr.rel (0) target = $region89
    $region88: #{fwd.1} parent=1 // pred_region
      %s122 = ssub.s32 16, 16
      %123 = vsyncadd [#allocation12], %s122
      %s125 = sshll.u32 [#allocation11], 4
      %s126 = int_to_ptr.vmem [resolvable:$true] %s125
      %128 = dma.hbm_to_vmem [thread:$0]  %s21, 16, %s126, [#allocation12]
    $region89: #{fwd.1} parent=1 // pred_fallthru
      _
    // Predicated region
    $region90: #{fwd.1} parent=1 // pred_check
      _
    $region91: #{fwd.1} parent=1 // pred_check_branch
      %130 = sbr.rel (0) target = $region93
    $region92: #{fwd.1} parent=1 // pred_region
      _
    $region93: #{fwd.1} parent=1 // pred_fallthru
      _
    // Predicated region
    $region94: #{fwd.1} parent=1 // pred_check
      _
    $region95: #{fwd.1} parent=1 // pred_check_branch
      %132 = sbr.rel (0) target = $region97
    $region96: #{fwd.1} parent=1 // pred_region
      _
    $region97: #{fwd.1} parent=1 // pred_fallthru
      _
    // Predicated region
    $region98: #{fwd.1} parent=1 // pred_check
      _
    $region99: #{fwd.1} parent=1 // pred_check_branch
      %134 = sbr.rel (0) target = $region101
    $region100: #{fwd.1} parent=1 // pred_region
      %135 = dma.done [#allocation4], 16384
    $region101: #{fwd.1} parent=1 // pred_fallthru
      _
    // Predicated region
    $region102: #{fwd.1} parent=1 // pred_check
      _
    $region103: #{fwd.1} parent=1 // pred_check_branch
      %137 = sbr.rel (0) target = $region105
    $region104: #{fwd.1} parent=1 // pred_region
      %138 = dma.done [#allocation6], 32
    $region105: #{fwd.1} parent=1 // pred_fallthru
      _
    // Predicated region
    $region106: #{fwd.1} parent=1 // pred_check
      _
    $region107: #{fwd.1} parent=1 // pred_check_branch
      %140 = sbr.rel (0) target = $region109
    $region108: #{fwd.1} parent=1 // pred_region
      %141 = dma.done [#allocation6], 32
    $region109: #{fwd.1} parent=1 // pred_fallthru
      _
    // Predicated region
    $region110: #{fwd.1} parent=1 // pred_check
      _
    $region111: #{fwd.1} parent=1 // pred_check_branch
      %143 = sbr.rel (0) target = $region113
    $region112: #{fwd.1} parent=1 // pred_region
      %144 = dma.done [#allocation9], 4096
    $region113: #{fwd.1} parent=1 // pred_fallthru
      _
    // Predicated region
    $region114: #{fwd.1} parent=1 // pred_check
      _
    $region115: #{fwd.1} parent=1 // pred_check_branch
      %146 = sbr.rel (0) target = $region117
    $region116: #{fwd.1} parent=1 // pred_region
      %147 = dma.done [#allocation9], 32
    $region117: #{fwd.1} parent=1 // pred_fallthru
      _
    // Predicated region
    $region118: #{fwd.1} parent=1 // pred_check
      _
    $region119: #{fwd.1} parent=1 // pred_check_branch
      %149 = sbr.rel (0) target = $region121
    $region120: #{fwd.1} parent=1 // pred_region
      %150 = dma.done [#allocation12], 16
    $region121: #{fwd.1} parent=1 // pred_fallthru
      _
    %v152 = vld [vmem:[%s0] sm:$0xff]
    %v153 = vpack.c.bf16 %v152, %v152
    %v154 = vld [vmem:[%s3] sm:$0xff]
    %v155 = vld [vmem:[%s3 + $0x8] sm:$0xff]
    %v156 = vld [vmem:[%s3 + $0x10] sm:$0xff]
    %v157 = vld [vmem:[%s3 + $0x18] sm:$0xff]
    %v158 = vld [vmem:[%s4] sm:$0x3]
    %v160 = vlaneseq
    %v161 = vshrl.u32 %v160, 7
    %v162 = vsub.s32 0, %v161
    %v163 = vrot.slane %v158, %v162
    %v164 = vlaneseq
    %v165 = vshrl.u32 %v164, 7
    %v166 = vsub.s32 1, %v165
    %v167 = vrot.slane %v158, %v166
    %v174 = vunpack.c.l.b16 %v154
    %v175 = vunpack.c.h.b16 %v154
    %v176 = vunpack.c.l.b16 %v155
    %v177 = vunpack.c.h.b16 %v155
    %v178 = vunpack.c.l.b16 %v156
    %v179 = vunpack.c.h.b16 %v156
    %v180 = vunpack.c.l.b16 %v157
    %v181 = vunpack.c.h.b16 %v157
    %v182 = vpack.c.b16 %v176, %v174
    %v183 = vpack.c.b16 %v177, %v175
    %v184 = vpack.c.b16 %v180, %v178
    %v185 = vpack.c.b16 %v181, %v179
    %vm190 = vcmask 261120
    %v192 = vsel %vm190, %v153, 0
    %194 = vmatprep.subr.bf16.mxu0 0
    %195 = vmatpush1.bf16.msra.mxu0 0
    %196 = vmatprep.subr.bf16.mxu0 0
    %197 = vmatpush1.bf16.msra.mxu0 0
    %198 = vmatprep.subr.bf16.mxu0 0
    %199 = vmatpush1.bf16.msra.mxu0 0
    %200 = vmatprep.subr.bf16.mxu0 0
    %201 = vmatpush1.bf16.msra.mxu0 0
    %202 = vmatprep.subr.bf16.mxu0 0
    %203 = vmatpush1.bf16.msra.mxu0 0
    %204 = vmatprep.subr.bf16.mxu0 0
    %205 = vmatpush1.bf16.msra.mxu0 0
    %206 = vmatprep.subr.bf16.mxu0 %v185
    %207 = vmatpush1.bf16.msra.mxu0 %v184
    %208 = vmatprep.subr.bf16.mxu0 %v183
    %209 = vmatpush1.bf16.msra.mxu0 %v182
    %210 = vmatprep.subr.bf16.mxu0 0
    %211 = vmatpush2.bf16.msra.mxu0 0
    %212 = vmatprep.subr.bf16.mxu0 0
    %213 = vmatpush2.bf16.msra.mxu0 0
    %214 = vmatprep.subr.bf16.mxu0 0
    %215 = vmatpush2.bf16.msra.mxu0 0
    %216 = vmatprep.subr.bf16.mxu0 0
    %217 = vmatpush2.bf16.msra.mxu0 0
    %218 = vmatprep.subr.bf16.mxu0 0
    %219 = vmatpush2.bf16.msra.mxu0 0
    %220 = vmatprep.subr.bf16.mxu0 0
    %221 = vmatpush2.bf16.msra.mxu0 0
    %222 = vmatprep.subr.bf16.mxu0 0
    %223 = vmatpush2.bf16.msra.mxu0 0
    %224 = vmatprep.subr.bf16.mxu0 0
    %225 = vmatpush2.bf16.msra.mxu0 0
    %226 = vmatprep.mubr.bf16.mxu0 0
    %227 = vmatmul.mubr.bf16.gmra.mxu0 %v192
    %v228 = vpop.f32.mrf.mxu0
    %v229 = vadd.f32 %v163, %v228
    %v230 = vpop.f32.mrf.mxu0
    %v231 = vadd.f32 %v167, %v230
    %v232 = vpop.f32.mrf.mxu0
    %v233 = vpop.f32.mrf.mxu0
    %234 = vdwg.mxu0
    %v235 = vmax.f32 %v229, 0.0
    %v236 = vmax.f32 %v231, 0.0
    %v237 = vpack.c.bf16 %v235, %v235
    %v238 = vpack.c.bf16 %v236, %v236
    %v239 = vld [vmem:[#allocation3] sm:$0xff]
    %v240 = vld [vmem:[#allocation3 + $0x8] sm:$0xff]
    %v241 = vld [vmem:[#allocation3 + $0x10] sm:$0xff]
    %v242 = vld [vmem:[#allocation3 + $0x18] sm:$0xff]
    %v243 = vld [vmem:[#allocation3 + $0x20] sm:$0xff]
    %v244 = vld [vmem:[#allocation3 + $0x28] sm:$0xff]
    %v245 = vld [vmem:[#allocation3 + $0x30] sm:$0xff]
    %v246 = vld [vmem:[#allocation3 + $0x38] sm:$0xff]
    %v247 = vld [vmem:[#allocation3 + $0x40] sm:$0xff]
    %v248 = vld [vmem:[#allocation3 + $0x48] sm:$0xff]
    %v249 = vld [vmem:[#allocation3 + $0x50] sm:$0xff]
    %v250 = vld [vmem:[#allocation3 + $0x58] sm:$0xff]
    %v251 = vld [vmem:[#allocation3 + $0x60] sm:$0xff]
    %v252 = vld [vmem:[#allocation3 + $0x68] sm:$0xff]
    %v253 = vld [vmem:[#allocation3 + $0x70] sm:$0xff]
    %v254 = vld [vmem:[#allocation3 + $0x78] sm:$0xff]
    %v255 = vld [vmem:[#allocation3 + $0x80] sm:$0xff]
    %v256 = vld [vmem:[#allocation3 + $0x88] sm:$0xff]
    %v257 = vld [vmem:[#allocation3 + $0x90] sm:$0xff]
    %v258 = vld [vmem:[#allocation3 + $0x98] sm:$0xff]
    %v259 = vld [vmem:[#allocation3 + $0xa0] sm:$0xff]
    %v260 = vld [vmem:[#allocation3 + $0xa8] sm:$0xff]
    %v261 = vld [vmem:[#allocation3 + $0xb0] sm:$0xff]
    %v262 = vld [vmem:[#allocation3 + $0xb8] sm:$0xff]
    %v263 = vld [vmem:[#allocation3 + $0xc0] sm:$0xff]
    %v264 = vld [vmem:[#allocation3 + $0xc8] sm:$0xff]
    %v265 = vld [vmem:[#allocation3 + $0xd0] sm:$0xff]
    %v266 = vld [vmem:[#allocation3 + $0xd8] sm:$0xff]
    %v267 = vld [vmem:[#allocation3 + $0xe0] sm:$0xff]
    %v268 = vld [vmem:[#allocation3 + $0xe8] sm:$0xff]
    %v269 = vld [vmem:[#allocation3 + $0xf0] sm:$0xff]
    %v270 = vld [vmem:[#allocation3 + $0xf8] sm:$0xff]
    %v271 = vld [vmem:[#allocation3 + $0x100] sm:$0xff]
    %v272 = vld [vmem:[#allocation3 + $0x108] sm:$0xff]
    %v273 = vld [vmem:[#allocation3 + $0x110] sm:$0xff]
    %v274 = vld [vmem:[#allocation3 + $0x118] sm:$0xff]
    %v275 = vld [vmem:[#allocation3 + $0x120] sm:$0xff]
    %v276 = vld [vmem:[#allocation3 + $0x128] sm:$0xff]
    %v277 = vld [vmem:[#allocation3 + $0x130] sm:$0xff]
    %v278 = vld [vmem:[#allocation3 + $0x138] sm:$0xff]
    %v279 = vld [vmem:[#allocation3 + $0x140] sm:$0xff]
    %v280 = vld [vmem:[#allocation3 + $0x148] sm:$0xff]
    %v281 = vld [vmem:[#allocation3 + $0x150] sm:$0xff]
    %v282 = vld [vmem:[#allocation3 + $0x158] sm:$0xff]
    %v283 = vld [vmem:[#allocation3 + $0x160] sm:$0xff]
    %v284 = vld [vmem:[#allocation3 + $0x168] sm:$0xff]
    %v285 = vld [vmem:[#allocation3 + $0x170] sm:$0xff]
    %v286 = vld [vmem:[#allocation3 + $0x178] sm:$0xff]
    %v287 = vld [vmem:[#allocation3 + $0x180] sm:$0xff]
    %v288 = vld [vmem:[#allocation3 + $0x188] sm:$0xff]
    %v289 = vld [vmem:[#allocation3 + $0x190] sm:$0xff]
    %v290 = vld [vmem:[#allocation3 + $0x198] sm:$0xff]
    %v291 = vld [vmem:[#allocation3 + $0x1a0] sm:$0xff]
    %v292 = vld [vmem:[#allocation3 + $0x1a8] sm:$0xff]
    %v293 = vld [vmem:[#allocation3 + $0x1b0] sm:$0xff]
    %v294 = vld [vmem:[#allocation3 + $0x1b8] sm:$0xff]
    %v295 = vld [vmem:[#allocation3 + $0x1c0] sm:$0xff]
    %v296 = vld [vmem:[#allocation3 + $0x1c8] sm:$0xff]
    %v297 = vld [vmem:[#allocation3 + $0x1d0] sm:$0xff]
    %v298 = vld [vmem:[#allocation3 + $0x1d8] sm:$0xff]
    %v299 = vld [vmem:[#allocation3 + $0x1e0] sm:$0xff]
    %v300 = vld [vmem:[#allocation3 + $0x1e8] sm:$0xff]
    %v301 = vld [vmem:[#allocation3 + $0x1f0] sm:$0xff]
    %v302 = vld [vmem:[#allocation3 + $0x1f8] sm:$0xff]
    %v303 = vld [vmem:[#allocation3 + $0x200] sm:$0xff]
    %v304 = vld [vmem:[#allocation3 + $0x208] sm:$0xff]
    %v305 = vld [vmem:[#allocation3 + $0x210] sm:$0xff]
    %v306 = vld [vmem:[#allocation3 + $0x218] sm:$0xff]
    %v307 = vld [vmem:[#allocation3 + $0x220] sm:$0xff]
    %v308 = vld [vmem:[#allocation3 + $0x228] sm:$0xff]
    %v309 = vld [vmem:[#allocation3 + $0x230] sm:$0xff]
    %v310 = vld [vmem:[#allocation3 + $0x238] sm:$0xff]
    %v311 = vld [vmem:[#allocation3 + $0x240] sm:$0xff]
    %v312 = vld [vmem:[#allocation3 + $0x248] sm:$0xff]
    %v313 = vld [vmem:[#allocation3 + $0x250] sm:$0xff]
    %v314 = vld [vmem:[#allocation3 + $0x258] sm:$0xff]
    %v315 = vld [vmem:[#allocation3 + $0x260] sm:$0xff]
    %v316 = vld [vmem:[#allocation3 + $0x268] sm:$0xff]
    %v317 = vld [vmem:[#allocation3 + $0x270] sm:$0xff]
    %v318 = vld [vmem:[#allocation3 + $0x278] sm:$0xff]
    %v319 = vld [vmem:[#allocation3 + $0x280] sm:$0xff]
    %v320 = vld [vmem:[#allocation3 + $0x288] sm:$0xff]
    %v321 = vld [vmem:[#allocation3 + $0x290] sm:$0xff]
    %v322 = vld [vmem:[#allocation3 + $0x298] sm:$0xff]
    %v323 = vld [vmem:[#allocation3 + $0x2a0] sm:$0xff]
    %v324 = vld [vmem:[#allocation3 + $0x2a8] sm:$0xff]
    %v325 = vld [vmem:[#allocation3 + $0x2b0] sm:$0xff]
    %v326 = vld [vmem:[#allocation3 + $0x2b8] sm:$0xff]
    %v327 = vld [vmem:[#allocation3 + $0x2c0] sm:$0xff]
    %v328 = vld [vmem:[#allocation3 + $0x2c8] sm:$0xff]
    %v329 = vld [vmem:[#allocation3 + $0x2d0] sm:$0xff]
    %v330 = vld [vmem:[#allocation3 + $0x2d8] sm:$0xff]
    %v331 = vld [vmem:[#allocation3 + $0x2e0] sm:$0xff]
    %v332 = vld [vmem:[#allocation3 + $0x2e8] sm:$0xff]
    %v333 = vld [vmem:[#allocation3 + $0x2f0] sm:$0xff]
    %v334 = vld [vmem:[#allocation3 + $0x2f8] sm:$0xff]
    %v335 = vld [vmem:[#allocation3 + $0x300] sm:$0xff]
    %v336 = vld [vmem:[#allocation3 + $0x308] sm:$0xff]
    %v337 = vld [vmem:[#allocation3 + $0x310] sm:$0xff]
    %v338 = vld [vmem:[#allocation3 + $0x318] sm:$0xff]
    %v339 = vld [vmem:[#allocation3 + $0x320] sm:$0xff]
    %v340 = vld [vmem:[#allocation3 + $0x328] sm:$0xff]
    %v341 = vld [vmem:[#allocation3 + $0x330] sm:$0xff]
    %v342 = vld [vmem:[#allocation3 + $0x338] sm:$0xff]
    %v343 = vld [vmem:[#allocation3 + $0x340] sm:$0xff]
    %v344 = vld [vmem:[#allocation3 + $0x348] sm:$0xff]
    %v345 = vld [vmem:[#allocation3 + $0x350] sm:$0xff]
    %v346 = vld [vmem:[#allocation3 + $0x358] sm:$0xff]
    %v347 = vld [vmem:[#allocation3 + $0x360] sm:$0xff]
    %v348 = vld [vmem:[#allocation3 + $0x368] sm:$0xff]
    %v349 = vld [vmem:[#allocation3 + $0x370] sm:$0xff]
    %v350 = vld [vmem:[#allocation3 + $0x378] sm:$0xff]
    %v351 = vld [vmem:[#allocation3 + $0x380] sm:$0xff]
    %v352 = vld [vmem:[#allocation3 + $0x388] sm:$0xff]
    %v353 = vld [vmem:[#allocation3 + $0x390] sm:$0xff]
    %v354 = vld [vmem:[#allocation3 + $0x398] sm:$0xff]
    %v355 = vld [vmem:[#allocation3 + $0x3a0] sm:$0xff]
    %v356 = vld [vmem:[#allocation3 + $0x3a8] sm:$0xff]
    %v357 = vld [vmem:[#allocation3 + $0x3b0] sm:$0xff]
    %v358 = vld [vmem:[#allocation3 + $0x3b8] sm:$0xff]
    %v359 = vld [vmem:[#allocation3 + $0x3c0] sm:$0xff]
    %v360 = vld [vmem:[#allocation3 + $0x3c8] sm:$0xff]
    %v361 = vld [vmem:[#allocation3 + $0x3d0] sm:$0xff]
    %v362 = vld [vmem:[#allocation3 + $0x3d8] sm:$0xff]
    %v363 = vld [vmem:[#allocation3 + $0x3e0] sm:$0xff]
    %v364 = vld [vmem:[#allocation3 + $0x3e8] sm:$0xff]
    %v365 = vld [vmem:[#allocation3 + $0x3f0] sm:$0xff]
    %v366 = vld [vmem:[#allocation3 + $0x3f8] sm:$0xff]
    %v367 = vld [vmem:[%s6] sm:$0xff]
    %v369 = vlaneseq
    %v370 = vshrl.u32 %v369, 7
    %v371 = vsub.s32 0, %v370
    %v372 = vrot.slane %v367, %v371
    %v373 = vlaneseq
    %v374 = vshrl.u32 %v373, 7
    %v375 = vsub.s32 1, %v374
    %v376 = vrot.slane %v367, %v375
    %v377 = vlaneseq
    %v378 = vshrl.u32 %v377, 7
    %v379 = vsub.s32 2, %v378
    %v380 = vrot.slane %v367, %v379
    %v381 = vlaneseq
    %v382 = vshrl.u32 %v381, 7
    %v383 = vsub.s32 3, %v382
    %v384 = vrot.slane %v367, %v383
    %v385 = vlaneseq
    %v386 = vshrl.u32 %v385, 7
    %v387 = vsub.s32 4, %v386
    %v388 = vrot.slane %v367, %v387
    %v389 = vlaneseq
    %v390 = vshrl.u32 %v389, 7
    %v391 = vsub.s32 5, %v390
    %v392 = vrot.slane %v367, %v391
    %v393 = vlaneseq
    %v394 = vshrl.u32 %v393, 7
    %v395 = vsub.s32 6, %v394
    %v396 = vrot.slane %v367, %v395
    %v397 = vlaneseq
    %v398 = vshrl.u32 %v397, 7
    %v399 = vsub.s32 7, %v398
    %v400 = vrot.slane %v367, %v399
    %v537 = vunpack.c.l.b16 %v239
    %v538 = vunpack.c.h.b16 %v239
    %v539 = vunpack.c.l.b16 %v240
    %v540 = vunpack.c.h.b16 %v240
    %v541 = vunpack.c.l.b16 %v241
    %v542 = vunpack.c.h.b16 %v241
    %v543 = vunpack.c.l.b16 %v242
    %v544 = vunpack.c.h.b16 %v242
    %v545 = vunpack.c.l.b16 %v243
    %v546 = vunpack.c.h.b16 %v243
    %v547 = vunpack.c.l.b16 %v244
    %v548 = vunpack.c.h.b16 %v244
    %v549 = vunpack.c.l.b16 %v245
    %v550 = vunpack.c.h.b16 %v245
    %v551 = vunpack.c.l.b16 %v246
    %v552 = vunpack.c.h.b16 %v246
    %v553 = vunpack.c.l.b16 %v247
    %v554 = vunpack.c.h.b16 %v247
    %v555 = vunpack.c.l.b16 %v248
    %v556 = vunpack.c.h.b16 %v248
    %v557 = vunpack.c.l.b16 %v249
    %v558 = vunpack.c.h.b16 %v249
    %v559 = vunpack.c.l.b16 %v250
    %v560 = vunpack.c.h.b16 %v250
    %v561 = vunpack.c.l.b16 %v251
    %v562 = vunpack.c.h.b16 %v251
    %v563 = vunpack.c.l.b16 %v252
    %v564 = vunpack.c.h.b16 %v252
    %v565 = vunpack.c.l.b16 %v253
    %v566 = vunpack.c.h.b16 %v253
    %v567 = vunpack.c.l.b16 %v254
    %v568 = vunpack.c.h.b16 %v254
    %v569 = vunpack.c.l.b16 %v255
    %v570 = vunpack.c.h.b16 %v255
    %v571 = vunpack.c.l.b16 %v256
    %v572 = vunpack.c.h.b16 %v256
    %v573 = vunpack.c.l.b16 %v257
    %v574 = vunpack.c.h.b16 %v257
    %v575 = vunpack.c.l.b16 %v258
    %v576 = vunpack.c.h.b16 %v258
    %v577 = vunpack.c.l.b16 %v259
    %v578 = vunpack.c.h.b16 %v259
    %v579 = vunpack.c.l.b16 %v260
    %v580 = vunpack.c.h.b16 %v260
    %v581 = vunpack.c.l.b16 %v261
    %v582 = vunpack.c.h.b16 %v261
    %v583 = vunpack.c.l.b16 %v262
    %v584 = vunpack.c.h.b16 %v262
    %v585 = vunpack.c.l.b16 %v263
    %v586 = vunpack.c.h.b16 %v263
    %v587 = vunpack.c.l.b16 %v264
    %v588 = vunpack.c.h.b16 %v264
    %v589 = vunpack.c.l.b16 %v265
    %v590 = vunpack.c.h.b16 %v265
    %v591 = vunpack.c.l.b16 %v266
    %v592 = vunpack.c.h.b16 %v266
    %v593 = vunpack.c.l.b16 %v267
    %v594 = vunpack.c.h.b16 %v267
    %v595 = vunpack.c.l.b16 %v268
    %v596 = vunpack.c.h.b16 %v268
    %v597 = vunpack.c.l.b16 %v269
    %v598 = vunpack.c.h.b16 %v269
    %v599 = vunpack.c.l.b16 %v270
    %v600 = vunpack.c.h.b16 %v270
    %v601 = vunpack.c.l.b16 %v271
    %v602 = vunpack.c.h.b16 %v271
    %v603 = vunpack.c.l.b16 %v272
    %v604 = vunpack.c.h.b16 %v272
    %v605 = vunpack.c.l.b16 %v273
    %v606 = vunpack.c.h.b16 %v273
    %v607 = vunpack.c.l.b16 %v274
    %v608 = vunpack.c.h.b16 %v274
    %v609 = vunpack.c.l.b16 %v275
    %v610 = vunpack.c.h.b16 %v275
    %v611 = vunpack.c.l.b16 %v276
    %v612 = vunpack.c.h.b16 %v276
    %v613 = vunpack.c.l.b16 %v277
    %v614 = vunpack.c.h.b16 %v277
    %v615 = vunpack.c.l.b16 %v278
    %v616 = vunpack.c.h.b16 %v278
    %v617 = vunpack.c.l.b16 %v279
    %v618 = vunpack.c.h.b16 %v279
    %v619 = vunpack.c.l.b16 %v280
    %v620 = vunpack.c.h.b16 %v280
    %v621 = vunpack.c.l.b16 %v281
    %v622 = vunpack.c.h.b16 %v281
    %v623 = vunpack.c.l.b16 %v282
    %v624 = vunpack.c.h.b16 %v282
    %v625 = vunpack.c.l.b16 %v283
    %v626 = vunpack.c.h.b16 %v283
    %v627 = vunpack.c.l.b16 %v284
    %v628 = vunpack.c.h.b16 %v284
    %v629 = vunpack.c.l.b16 %v285
    %v630 = vunpack.c.h.b16 %v285
    %v631 = vunpack.c.l.b16 %v286
    %v632 = vunpack.c.h.b16 %v286
    %v633 = vunpack.c.l.b16 %v287
    %v634 = vunpack.c.h.b16 %v287
    %v635 = vunpack.c.l.b16 %v288
    %v636 = vunpack.c.h.b16 %v288
    %v637 = vunpack.c.l.b16 %v289
    %v638 = vunpack.c.h.b16 %v289
    %v639 = vunpack.c.l.b16 %v290
    %v640 = vunpack.c.h.b16 %v290
    %v641 = vunpack.c.l.b16 %v291
    %v642 = vunpack.c.h.b16 %v291
    %v643 = vunpack.c.l.b16 %v292
    %v644 = vunpack.c.h.b16 %v292
    %v645 = vunpack.c.l.b16 %v293
    %v646 = vunpack.c.h.b16 %v293
    %v647 = vunpack.c.l.b16 %v294
    %v648 = vunpack.c.h.b16 %v294
    %v649 = vunpack.c.l.b16 %v295
    %v650 = vunpack.c.h.b16 %v295
    %v651 = vunpack.c.l.b16 %v296
    %v652 = vunpack.c.h.b16 %v296
    %v653 = vunpack.c.l.b16 %v297
    %v654 = vunpack.c.h.b16 %v297
    %v655 = vunpack.c.l.b16 %v298
    %v656 = vunpack.c.h.b16 %v298
    %v657 = vunpack.c.l.b16 %v299
    %v658 = vunpack.c.h.b16 %v299
    %v659 = vunpack.c.l.b16 %v300
    %v660 = vunpack.c.h.b16 %v300
    %v661 = vunpack.c.l.b16 %v301
    %v662 = vunpack.c.h.b16 %v301
    %v663 = vunpack.c.l.b16 %v302
    %v664 = vunpack.c.h.b16 %v302
    %v665 = vunpack.c.l.b16 %v303
    %v666 = vunpack.c.h.b16 %v303
    %v667 = vunpack.c.l.b16 %v304
    %v668 = vunpack.c.h.b16 %v304
    %v669 = vunpack.c.l.b16 %v305
    %v670 = vunpack.c.h.b16 %v305
    %v671 = vunpack.c.l.b16 %v306
    %v672 = vunpack.c.h.b16 %v306
    %v673 = vunpack.c.l.b16 %v307
    %v674 = vunpack.c.h.b16 %v307
    %v675 = vunpack.c.l.b16 %v308
    %v676 = vunpack.c.h.b16 %v308
    %v677 = vunpack.c.l.b16 %v309
    %v678 = vunpack.c.h.b16 %v309
    %v679 = vunpack.c.l.b16 %v310
    %v680 = vunpack.c.h.b16 %v310
    %v681 = vunpack.c.l.b16 %v311
    %v682 = vunpack.c.h.b16 %v311
    %v683 = vunpack.c.l.b16 %v312
    %v684 = vunpack.c.h.b16 %v312
    %v685 = vunpack.c.l.b16 %v313
    %v686 = vunpack.c.h.b16 %v313
    %v687 = vunpack.c.l.b16 %v314
    %v688 = vunpack.c.h.b16 %v314
    %v689 = vunpack.c.l.b16 %v315
    %v690 = vunpack.c.h.b16 %v315
    %v691 = vunpack.c.l.b16 %v316
    %v692 = vunpack.c.h.b16 %v316
    %v693 = vunpack.c.l.b16 %v317
    %v694 = vunpack.c.h.b16 %v317
    %v695 = vunpack.c.l.b16 %v318
    %v696 = vunpack.c.h.b16 %v318
    %v697 = vunpack.c.l.b16 %v319
    %v698 = vunpack.c.h.b16 %v319
    %v699 = vunpack.c.l.b16 %v320
    %v700 = vunpack.c.h.b16 %v320
    %v701 = vunpack.c.l.b16 %v321
    %v702 = vunpack.c.h.b16 %v321
    %v703 = vunpack.c.l.b16 %v322
    %v704 = vunpack.c.h.b16 %v322
    %v705 = vunpack.c.l.b16 %v323
    %v706 = vunpack.c.h.b16 %v323
    %v707 = vunpack.c.l.b16 %v324
    %v708 = vunpack.c.h.b16 %v324
    %v709 = vunpack.c.l.b16 %v325
    %v710 = vunpack.c.h.b16 %v325
    %v711 = vunpack.c.l.b16 %v326
    %v712 = vunpack.c.h.b16 %v326
    %v713 = vunpack.c.l.b16 %v327
    %v714 = vunpack.c.h.b16 %v327
    %v715 = vunpack.c.l.b16 %v328
    %v716 = vunpack.c.h.b16 %v328
    %v717 = vunpack.c.l.b16 %v329
    %v718 = vunpack.c.h.b16 %v329
    %v719 = vunpack.c.l.b16 %v330
    %v720 = vunpack.c.h.b16 %v330
    %v721 = vunpack.c.l.b16 %v331
    %v722 = vunpack.c.h.b16 %v331
    %v723 = vunpack.c.l.b16 %v332
    %v724 = vunpack.c.h.b16 %v332
    %v725 = vunpack.c.l.b16 %v333
    %v726 = vunpack.c.h.b16 %v333
    %v727 = vunpack.c.l.b16 %v334
    %v728 = vunpack.c.h.b16 %v334
    %v729 = vunpack.c.l.b16 %v335
    %v730 = vunpack.c.h.b16 %v335
    %v731 = vunpack.c.l.b16 %v336
    %v732 = vunpack.c.h.b16 %v336
    %v733 = vunpack.c.l.b16 %v337
    %v734 = vunpack.c.h.b16 %v337
    %v735 = vunpack.c.l.b16 %v338
    %v736 = vunpack.c.h.b16 %v338
    %v737 = vunpack.c.l.b16 %v339
    %v738 = vunpack.c.h.b16 %v339
    %v739 = vunpack.c.l.b16 %v340
    %v740 = vunpack.c.h.b16 %v340
    %v741 = vunpack.c.l.b16 %v341
    %v742 = vunpack.c.h.b16 %v341
    %v743 = vunpack.c.l.b16 %v342
    %v744 = vunpack.c.h.b16 %v342
    %v745 = vunpack.c.l.b16 %v343
    %v746 = vunpack.c.h.b16 %v343
    %v747 = vunpack.c.l.b16 %v344
    %v748 = vunpack.c.h.b16 %v344
    %v749 = vunpack.c.l.b16 %v345
    %v750 = vunpack.c.h.b16 %v345
    %v751 = vunpack.c.l.b16 %v346
    %v752 = vunpack.c.h.b16 %v346
    %v753 = vunpack.c.l.b16 %v347
    %v754 = vunpack.c.h.b16 %v347
    %v755 = vunpack.c.l.b16 %v348
    %v756 = vunpack.c.h.b16 %v348
    %v757 = vunpack.c.l.b16 %v349
    %v758 = vunpack.c.h.b16 %v349
    %v759 = vunpack.c.l.b16 %v350
    %v760 = vunpack.c.h.b16 %v350
    %v761 = vunpack.c.l.b16 %v351
    %v762 = vunpack.c.h.b16 %v351
    %v763 = vunpack.c.l.b16 %v352
    %v764 = vunpack.c.h.b16 %v352
    %v765 = vunpack.c.l.b16 %v353
    %v766 = vunpack.c.h.b16 %v353
    %v767 = vunpack.c.l.b16 %v354
    %v768 = vunpack.c.h.b16 %v354
    %v769 = vunpack.c.l.b16 %v355
    %v770 = vunpack.c.h.b16 %v355
    %v771 = vunpack.c.l.b16 %v356
    %v772 = vunpack.c.h.b16 %v356
    %v773 = vunpack.c.l.b16 %v357
    %v774 = vunpack.c.h.b16 %v357
    %v775 = vunpack.c.l.b16 %v358
    %v776 = vunpack.c.h.b16 %v358
    %v777 = vunpack.c.l.b16 %v359
    %v778 = vunpack.c.h.b16 %v359
    %v779 = vunpack.c.l.b16 %v360
    %v780 = vunpack.c.h.b16 %v360
    %v781 = vunpack.c.l.b16 %v361
    %v782 = vunpack.c.h.b16 %v361
    %v783 = vunpack.c.l.b16 %v362
    %v784 = vunpack.c.h.b16 %v362
    %v785 = vunpack.c.l.b16 %v363
    %v786 = vunpack.c.h.b16 %v363
    %v787 = vunpack.c.l.b16 %v364
    %v788 = vunpack.c.h.b16 %v364
    %v789 = vunpack.c.l.b16 %v365
    %v790 = vunpack.c.h.b16 %v365
    %v791 = vunpack.c.l.b16 %v366
    %v792 = vunpack.c.h.b16 %v366
    %v793 = vpack.c.b16 %v545, %v537
    %v794 = vpack.c.b16 %v546, %v538
    %v795 = vpack.c.b16 %v547, %v539
    %v796 = vpack.c.b16 %v548, %v540
    %v797 = vpack.c.b16 %v549, %v541
    %v798 = vpack.c.b16 %v550, %v542
    %v799 = vpack.c.b16 %v551, %v543
    %v800 = vpack.c.b16 %v552, %v544
    %v801 = vpack.c.b16 %v561, %v553
    %v802 = vpack.c.b16 %v562, %v554
    %v803 = vpack.c.b16 %v563, %v555
    %v804 = vpack.c.b16 %v564, %v556
    %v805 = vpack.c.b16 %v565, %v557
    %v806 = vpack.c.b16 %v566, %v558
    %v807 = vpack.c.b16 %v567, %v559
    %v808 = vpack.c.b16 %v568, %v560
    %v809 = vpack.c.b16 %v577, %v569
    %v810 = vpack.c.b16 %v578, %v570
    %v811 = vpack.c.b16 %v579, %v571
    %v812 = vpack.c.b16 %v580, %v572
    %v813 = vpack.c.b16 %v581, %v573
    %v814 = vpack.c.b16 %v582, %v574
    %v815 = vpack.c.b16 %v583, %v575
    %v816 = vpack.c.b16 %v584, %v576
    %v817 = vpack.c.b16 %v593, %v585
    %v818 = vpack.c.b16 %v594, %v586
    %v819 = vpack.c.b16 %v595, %v587
    %v820 = vpack.c.b16 %v596, %v588
    %v821 = vpack.c.b16 %v597, %v589
    %v822 = vpack.c.b16 %v598, %v590
    %v823 = vpack.c.b16 %v599, %v591
    %v824 = vpack.c.b16 %v600, %v592
    %v825 = vpack.c.b16 %v609, %v601
    %v826 = vpack.c.b16 %v610, %v602
    %v827 = vpack.c.b16 %v611, %v603
    %v828 = vpack.c.b16 %v612, %v604
    %v829 = vpack.c.b16 %v613, %v605
    %v830 = vpack.c.b16 %v614, %v606
    %v831 = vpack.c.b16 %v615, %v607
    %v832 = vpack.c.b16 %v616, %v608
    %v833 = vpack.c.b16 %v625, %v617
    %v834 = vpack.c.b16 %v626, %v618
    %v835 = vpack.c.b16 %v627, %v619
    %v836 = vpack.c.b16 %v628, %v620
    %v837 = vpack.c.b16 %v629, %v621
    %v838 = vpack.c.b16 %v630, %v622
    %v839 = vpack.c.b16 %v631, %v623
    %v840 = vpack.c.b16 %v632, %v624
    %v841 = vpack.c.b16 %v641, %v633
    %v842 = vpack.c.b16 %v642, %v634
    %v843 = vpack.c.b16 %v643, %v635
    %v844 = vpack.c.b16 %v644, %v636
    %v845 = vpack.c.b16 %v645, %v637
    %v846 = vpack.c.b16 %v646, %v638
    %v847 = vpack.c.b16 %v647, %v639
    %v848 = vpack.c.b16 %v648, %v640
    %v849 = vpack.c.b16 %v657, %v649
    %v850 = vpack.c.b16 %v658, %v650
    %v851 = vpack.c.b16 %v659, %v651
    %v852 = vpack.c.b16 %v660, %v652
    %v853 = vpack.c.b16 %v661, %v653
    %v854 = vpack.c.b16 %v662, %v654
    %v855 = vpack.c.b16 %v663, %v655
    %v856 = vpack.c.b16 %v664, %v656
    %v857 = vpack.c.b16 %v673, %v665
    %v858 = vpack.c.b16 %v674, %v666
    %v859 = vpack.c.b16 %v675, %v667
    %v860 = vpack.c.b16 %v676, %v668
    %v861 = vpack.c.b16 %v677, %v669
    %v862 = vpack.c.b16 %v678, %v670
    %v863 = vpack.c.b16 %v679, %v671
    %v864 = vpack.c.b16 %v680, %v672
    %v865 = vpack.c.b16 %v689, %v681
    %v866 = vpack.c.b16 %v690, %v682
    %v867 = vpack.c.b16 %v691, %v683
    %v868 = vpack.c.b16 %v692, %v684
    %v869 = vpack.c.b16 %v693, %v685
    %v870 = vpack.c.b16 %v694, %v686
    %v871 = vpack.c.b16 %v695, %v687
    %v872 = vpack.c.b16 %v696, %v688
    %v873 = vpack.c.b16 %v705, %v697
    %v874 = vpack.c.b16 %v706, %v698
    %v875 = vpack.c.b16 %v707, %v699
    %v876 = vpack.c.b16 %v708, %v700
    %v877 = vpack.c.b16 %v709, %v701
    %v878 = vpack.c.b16 %v710, %v702
    %v879 = vpack.c.b16 %v711, %v703
    %v880 = vpack.c.b16 %v712, %v704
    %v881 = vpack.c.b16 %v721, %v713
    %v882 = vpack.c.b16 %v722, %v714
    %v883 = vpack.c.b16 %v723, %v715
    %v884 = vpack.c.b16 %v724, %v716
    %v885 = vpack.c.b16 %v725, %v717
    %v886 = vpack.c.b16 %v726, %v718
    %v887 = vpack.c.b16 %v727, %v719
    %v888 = vpack.c.b16 %v728, %v720
    %v889 = vpack.c.b16 %v737, %v729
    %v890 = vpack.c.b16 %v738, %v730
    %v891 = vpack.c.b16 %v739, %v731
    %v892 = vpack.c.b16 %v740, %v732
    %v893 = vpack.c.b16 %v741, %v733
    %v894 = vpack.c.b16 %v742, %v734
    %v895 = vpack.c.b16 %v743, %v735
    %v896 = vpack.c.b16 %v744, %v736
    %v897 = vpack.c.b16 %v753, %v745
    %v898 = vpack.c.b16 %v754, %v746
    %v899 = vpack.c.b16 %v755, %v747
    %v900 = vpack.c.b16 %v756, %v748
    %v901 = vpack.c.b16 %v757, %v749
    %v902 = vpack.c.b16 %v758, %v750
    %v903 = vpack.c.b16 %v759, %v751
    %v904 = vpack.c.b16 %v760, %v752
    %v905 = vpack.c.b16 %v769, %v761
    %v906 = vpack.c.b16 %v770, %v762
    %v907 = vpack.c.b16 %v771, %v763
    %v908 = vpack.c.b16 %v772, %v764
    %v909 = vpack.c.b16 %v773, %v765
    %v910 = vpack.c.b16 %v774, %v766
    %v911 = vpack.c.b16 %v775, %v767
    %v912 = vpack.c.b16 %v776, %v768
    %v913 = vpack.c.b16 %v785, %v777
    %v914 = vpack.c.b16 %v786, %v778
    %v915 = vpack.c.b16 %v787, %v779
    %v916 = vpack.c.b16 %v788, %v780
    %v917 = vpack.c.b16 %v789, %v781
    %v918 = vpack.c.b16 %v790, %v782
    %v919 = vpack.c.b16 %v791, %v783
    %v920 = vpack.c.b16 %v792, %v784
    %1049 = vmatprep.subr.bf16.mxu0 %v850
    %1050 = vmatpush1.bf16.msra.mxu0 %v849
    %1051 = vmatprep.subr.bf16.mxu0 %v842
    %1052 = vmatpush1.bf16.msra.mxu0 %v841
    %1053 = vmatprep.subr.bf16.mxu0 %v834
    %1054 = vmatpush1.bf16.msra.mxu0 %v833
    %1055 = vmatprep.subr.bf16.mxu0 %v826
    %1056 = vmatpush1.bf16.msra.mxu0 %v825
    %1057 = vmatprep.subr.bf16.mxu0 %v818
    %1058 = vmatpush1.bf16.msra.mxu0 %v817
    %1059 = vmatprep.subr.bf16.mxu0 %v810
    %1060 = vmatpush1.bf16.msra.mxu0 %v809
    %1061 = vmatprep.subr.bf16.mxu0 %v802
    %1062 = vmatpush1.bf16.msra.mxu0 %v801
    %1063 = vmatprep.subr.bf16.mxu0 %v794
    %1064 = vmatpush1.bf16.msra.mxu0 %v793
    %1065 = vmatprep.subr.bf16.mxu0 %v914
    %1066 = vmatpush2.bf16.msra.mxu0 %v913
    %1067 = vmatprep.subr.bf16.mxu0 %v906
    %1068 = vmatpush2.bf16.msra.mxu0 %v905
    %1069 = vmatprep.subr.bf16.mxu0 %v898
    %1070 = vmatpush2.bf16.msra.mxu0 %v897
    %1071 = vmatprep.subr.bf16.mxu0 %v890
    %1072 = vmatpush2.bf16.msra.mxu0 %v889
    %1073 = vmatprep.subr.bf16.mxu0 %v882
    %1074 = vmatpush2.bf16.msra.mxu0 %v881
    %1075 = vmatprep.subr.bf16.mxu0 %v874
    %1076 = vmatpush2.bf16.msra.mxu0 %v873
    %1077 = vmatprep.subr.bf16.mxu0 %v866
    %1078 = vmatpush2.bf16.msra.mxu0 %v865
    %1079 = vmatprep.subr.bf16.mxu0 %v858
    %1080 = vmatpush2.bf16.msra.mxu0 %v857
    %1081 = vmatprep.mubr.bf16.mxu0 %v238
    %1082 = vmatmul.mubr.bf16.gmra.mxu0 %v237
    %v1083 = vpop.f32.mrf.mxu0
    %v1084 = vadd.f32 %v372, %v1083
    %v1085 = vpop.f32.mrf.mxu0
    %v1086 = vadd.f32 %v376, %v1085
    %v1087 = vpop.f32.mrf.mxu0
    %v1088 = vpop.f32.mrf.mxu0
    %1089 = vdwg.mxu0
    %1090 = vmatprep.subr.bf16.mxu0 %v852
    %1091 = vmatpush1.bf16.msra.mxu0 %v851
    %1092 = vmatprep.subr.bf16.mxu0 %v844
    %1093 = vmatpush1.bf16.msra.mxu0 %v843
    %1094 = vmatprep.subr.bf16.mxu0 %v836
    %1095 = vmatpush1.bf16.msra.mxu0 %v835
    %1096 = vmatprep.subr.bf16.mxu0 %v828
    %1097 = vmatpush1.bf16.msra.mxu0 %v827
    %1098 = vmatprep.subr.bf16.mxu0 %v820
    %1099 = vmatpush1.bf16.msra.mxu0 %v819
    %1100 = vmatprep.subr.bf16.mxu0 %v812
    %1101 = vmatpush1.bf16.msra.mxu0 %v811
    %1102 = vmatprep.subr.bf16.mxu0 %v804
    %1103 = vmatpush1.bf16.msra.mxu0 %v803
    %1104 = vmatprep.subr.bf16.mxu0 %v796
    %1105 = vmatpush1.bf16.msra.mxu0 %v795
    %1106 = vmatprep.subr.bf16.mxu0 %v916
    %1107 = vmatpush2.bf16.msra.mxu0 %v915
    %1108 = vmatprep.subr.bf16.mxu0 %v908
    %1109 = vmatpush2.bf16.msra.mxu0 %v907
    %1110 = vmatprep.subr.bf16.mxu0 %v900
    %1111 = vmatpush2.bf16.msra.mxu0 %v899
    %1112 = vmatprep.subr.bf16.mxu0 %v892
    %1113 = vmatpush2.bf16.msra.mxu0 %v891
    %1114 = vmatprep.subr.bf16.mxu0 %v884
    %1115 = vmatpush2.bf16.msra.mxu0 %v883
    %1116 = vmatprep.subr.bf16.mxu0 %v876
    %1117 = vmatpush2.bf16.msra.mxu0 %v875
    %1118 = vmatprep.subr.bf16.mxu0 %v868
    %1119 = vmatpush2.bf16.msra.mxu0 %v867
    %1120 = vmatprep.subr.bf16.mxu0 %v860
    %1121 = vmatpush2.bf16.msra.mxu0 %v859
    %1122 = vmatprep.mubr.bf16.mxu0 %v238
    %1123 = vmatmul.mubr.bf16.gmra.mxu0 %v237
    %v1124 = vpop.f32.mrf.mxu0
    %v1125 = vadd.f32 %v380, %v1124
    %v1126 = vpop.f32.mrf.mxu0
    %v1127 = vadd.f32 %v384, %v1126
    %v1128 = vpop.f32.mrf.mxu0
    %v1129 = vpop.f32.mrf.mxu0
    %1130 = vdwg.mxu0
    %1131 = vmatprep.subr.bf16.mxu0 %v854
    %1132 = vmatpush1.bf16.msra.mxu0 %v853
    %1133 = vmatprep.subr.bf16.mxu0 %v846
    %1134 = vmatpush1.bf16.msra.mxu0 %v845
    %1135 = vmatprep.subr.bf16.mxu0 %v838
    %1136 = vmatpush1.bf16.msra.mxu0 %v837
    %1137 = vmatprep.subr.bf16.mxu0 %v830
    %1138 = vmatpush1.bf16.msra.mxu0 %v829
    %1139 = vmatprep.subr.bf16.mxu0 %v822
    %1140 = vmatpush1.bf16.msra.mxu0 %v821
    %1141 = vmatprep.subr.bf16.mxu0 %v814
    %1142 = vmatpush1.bf16.msra.mxu0 %v813
    %1143 = vmatprep.subr.bf16.mxu0 %v806
    %1144 = vmatpush1.bf16.msra.mxu0 %v805
    %1145 = vmatprep.subr.bf16.mxu0 %v798
    %1146 = vmatpush1.bf16.msra.mxu0 %v797
    %1147 = vmatprep.subr.bf16.mxu0 %v918
    %1148 = vmatpush2.bf16.msra.mxu0 %v917
    %1149 = vmatprep.subr.bf16.mxu0 %v910
    %1150 = vmatpush2.bf16.msra.mxu0 %v909
    %1151 = vmatprep.subr.bf16.mxu0 %v902
    %1152 = vmatpush2.bf16.msra.mxu0 %v901
    %1153 = vmatprep.subr.bf16.mxu0 %v894
    %1154 = vmatpush2.bf16.msra.mxu0 %v893
    %1155 = vmatprep.subr.bf16.mxu0 %v886
    %1156 = vmatpush2.bf16.msra.mxu0 %v885
    %1157 = vmatprep.subr.bf16.mxu0 %v878
    %1158 = vmatpush2.bf16.msra.mxu0 %v877
    %1159 = vmatprep.subr.bf16.mxu0 %v870
    %1160 = vmatpush2.bf16.msra.mxu0 %v869
    %1161 = vmatprep.subr.bf16.mxu0 %v862
    %1162 = vmatpush2.bf16.msra.mxu0 %v861
    %1163 = vmatprep.mubr.bf16.mxu0 %v238
    %1164 = vmatmul.mubr.bf16.gmra.mxu0 %v237
    %v1165 = vpop.f32.mrf.mxu0
    %v1166 = vadd.f32 %v388, %v1165
    %v1167 = vpop.f32.mrf.mxu0
    %v1168 = vadd.f32 %v392, %v1167
    %v1169 = vpop.f32.mrf.mxu0
    %v1170 = vpop.f32.mrf.mxu0
    %1171 = vdwg.mxu0
    %1172 = vmatprep.subr.bf16.mxu0 %v856
    %1173 = vmatpush1.bf16.msra.mxu0 %v855
    %1174 = vmatprep.subr.bf16.mxu0 %v848
    %1175 = vmatpush1.bf16.msra.mxu0 %v847
    %1176 = vmatprep.subr.bf16.mxu0 %v840
    %1177 = vmatpush1.bf16.msra.mxu0 %v839
    %1178 = vmatprep.subr.bf16.mxu0 %v832
    %1179 = vmatpush1.bf16.msra.mxu0 %v831
    %1180 = vmatprep.subr.bf16.mxu0 %v824
    %1181 = vmatpush1.bf16.msra.mxu0 %v823
    %1182 = vmatprep.subr.bf16.mxu0 %v816
    %1183 = vmatpush1.bf16.msra.mxu0 %v815
    %1184 = vmatprep.subr.bf16.mxu0 %v808
    %1185 = vmatpush1.bf16.msra.mxu0 %v807
    %1186 = vmatprep.subr.bf16.mxu0 %v800
    %1187 = vmatpush1.bf16.msra.mxu0 %v799
    %1188 = vmatprep.subr.bf16.mxu0 %v920
    %1189 = vmatpush2.bf16.msra.mxu0 %v919
    %1190 = vmatprep.subr.bf16.mxu0 %v912
    %1191 = vmatpush2.bf16.msra.mxu0 %v911
    %1192 = vmatprep.subr.bf16.mxu0 %v904
    %1193 = vmatpush2.bf16.msra.mxu0 %v903
    %1194 = vmatprep.subr.bf16.mxu0 %v896
    %1195 = vmatpush2.bf16.msra.mxu0 %v895
    %1196 = vmatprep.subr.bf16.mxu0 %v888
    %1197 = vmatpush2.bf16.msra.mxu0 %v887
    %1198 = vmatprep.subr.bf16.mxu0 %v880
    %1199 = vmatpush2.bf16.msra.mxu0 %v879
    %1200 = vmatprep.subr.bf16.mxu0 %v872
    %1201 = vmatpush2.bf16.msra.mxu0 %v871
    %1202 = vmatprep.subr.bf16.mxu0 %v864
    %1203 = vmatpush2.bf16.msra.mxu0 %v863
    %1204 = vmatprep.mubr.bf16.mxu0 %v238
    %1205 = vmatmul.mubr.bf16.gmra.mxu0 %v237
    %v1206 = vpop.f32.mrf.mxu0
    %v1207 = vadd.f32 %v396, %v1206
    %v1208 = vpop.f32.mrf.mxu0
    %v1209 = vadd.f32 %v400, %v1208
    %v1210 = vpop.f32.mrf.mxu0
    %v1211 = vpop.f32.mrf.mxu0
    %1212 = vdwg.mxu0
    %v1213 = vld [vmem:[%s7] sm:$0xf]
    %v1214 = vld [vmem:[%s7 + $0x4] sm:$0xf]
    %v1215 = vld [vmem:[%s7 + $0x8] sm:$0xf]
    %v1216 = vld [vmem:[%s7 + $0xc] sm:$0xf]
    %v1221 = vunpack.c.l.b16 %v1213
    %v1222 = vunpack.c.l.b16 %v1214
    %v1223 = vunpack.c.l.b16 %v1215
    %v1224 = vunpack.c.l.b16 %v1216
    %v1225 = vpack.c.b16 %v1222, %v1221
    %v1226 = vpack.c.b16 %v1224, %v1223
    %v1230 = vsel %vm190, 0, 0
    %1232 = vmatprep.subr.bf16.mxu0 0
    %1233 = vmatpush1.bf16.msra.mxu0 0
    %1234 = vmatprep.subr.bf16.mxu0 0
    %1235 = vmatpush1.bf16.msra.mxu0 0
    %1236 = vmatprep.subr.bf16.mxu0 0
    %1237 = vmatpush1.bf16.msra.mxu0 0
    %1238 = vmatprep.subr.bf16.mxu0 0
    %1239 = vmatpush1.bf16.msra.mxu0 0
    %1240 = vmatprep.subr.bf16.mxu0 0
    %1241 = vmatpush1.bf16.msra.mxu0 0
    %1242 = vmatprep.subr.bf16.mxu0 0
    %1243 = vmatpush1.bf16.msra.mxu0 0
    %1244 = vmatprep.subr.bf16.mxu0 0
    %1245 = vmatpush1.bf16.msra.mxu0 %v1226
    %1246 = vmatprep.subr.bf16.mxu0 0
    %1247 = vmatpush1.bf16.msra.mxu0 %v1225
    %1248 = vmatprep.subr.bf16.mxu0 0
    %1249 = vmatpush2.bf16.msra.mxu0 0
    %1250 = vmatprep.subr.bf16.mxu0 0
    %1251 = vmatpush2.bf16.msra.mxu0 0
    %1252 = vmatprep.subr.bf16.mxu0 0
    %1253 = vmatpush2.bf16.msra.mxu0 0
    %1254 = vmatprep.subr.bf16.mxu0 0
    %1255 = vmatpush2.bf16.msra.mxu0 0
    %1256 = vmatprep.subr.bf16.mxu0 0
    %1257 = vmatpush2.bf16.msra.mxu0 0
    %1258 = vmatprep.subr.bf16.mxu0 0
    %1259 = vmatpush2.bf16.msra.mxu0 0
    %1260 = vmatprep.subr.bf16.mxu0 0
    %1261 = vmatpush2.bf16.msra.mxu0 0
    %1262 = vmatprep.subr.bf16.mxu0 0
    %1263 = vmatpush2.bf16.msra.mxu0 0
    %1264 = vmatprep.mubr.bf16.mxu0 0
    %1265 = vmatmul.mubr.bf16.gmra.mxu0 %v1230
    %v1266 = vpop.f32.mrf.mxu0
    %v1267 = vadd.f32 0.0, %v1266
    %v1268 = vpop.f32.mrf.mxu0
    %v1269 = vpop.f32.mrf.mxu0
    %v1270 = vpop.f32.mrf.mxu0
    %1271 = vdwg.mxu0
    %v1272 = vadd.f32 %v1084, %v1267
    %v1273 = vxor.u32 %v1272, 2147483648
    %v1274 = vmul.f32 %v1273, 1.442695
    %v1275 = vpow.pop %v1274
    %v1276 = vadd.f32 %v1275, 1.0
    %v1277 = vrcp.pop %v1276
    %v1278 = vmul.f32 1.0, %v1277
    %v1279 = vmul.f32 %v1278, 2.0
    %v1280 = vsub.f32 %v1279, 1.0
    %v1281 = vmul.f32 %v1278, 0.0
    %1283 = vrot.lane.b32.xlu0 %v1280, 64
    %v1284 = vpop.permute.xlu0 %1283
    %v1286 = vmul.f32 %v1278, %v1284
    %1288 = vrot.lane.b32.xlu0 %v1286, 32
    %v1289 = vpop.permute.xlu0 %1288
    %v1291 = vadd.f32 %v1281, %v1289
    %v1292 = vtanh.pop %v1291
    %1294 = vrot.lane.b32.xlu0 %v1292, 64
    %v1295 = vpop.permute.xlu0 %1294
    %v1297 = vmul.f32 %v1278, %v1295
    %1299 = vrot.lane.b32.xlu0 %v1297, 32
    %v1300 = vpop.permute.xlu0 %1299
    %1302 = vst.msk [vmem:[#allocation2] sm:$0xff] %vm190, %v1300
    %v1303 = vpack.c.bf16 %v1297, %v1297
    %1305 = vrot.lane.b32.xlu0 %v1303, 32
    %v1306 = vpop.permute.xlu0 %1305
    %v1308 = vsel %vm190, %v1306, 0
    %1310 = vmatprep.subr.bf16.mxu0 0
    %1311 = vmatpush1.bf16.msra.mxu0 0
    %1312 = vmatprep.subr.bf16.mxu0 0
    %1313 = vmatpush1.bf16.msra.mxu0 0
    %1314 = vmatprep.subr.bf16.mxu0 0
    %1315 = vmatpush1.bf16.msra.mxu0 0
    %1316 = vmatprep.subr.bf16.mxu0 0
    %1317 = vmatpush1.bf16.msra.mxu0 0
    %1318 = vmatprep.subr.bf16.mxu0 0
    %1319 = vmatpush1.bf16.msra.mxu0 0
    %1320 = vmatprep.subr.bf16.mxu0 0
    %1321 = vmatpush1.bf16.msra.mxu0 0
    %1322 = vmatprep.subr.bf16.mxu0 0
    %1323 = vmatpush1.bf16.msra.mxu0 %v1226
    %1324 = vmatprep.subr.bf16.mxu0 0
    %1325 = vmatpush1.bf16.msra.mxu0 %v1225
    %1326 = vmatprep.subr.bf16.mxu0 0
    %1327 = vmatpush2.bf16.msra.mxu0 0
    %1328 = vmatprep.subr.bf16.mxu0 0
    %1329 = vmatpush2.bf16.msra.mxu0 0
    %1330 = vmatprep.subr.bf16.mxu0 0
    %1331 = vmatpush2.bf16.msra.mxu0 0
    %1332 = vmatprep.subr.bf16.mxu0 0
    %1333 = vmatpush2.bf16.msra.mxu0 0
    %1334 = vmatprep.subr.bf16.mxu0 0
    %1335 = vmatpush2.bf16.msra.mxu0 0
    %1336 = vmatprep.subr.bf16.mxu0 0
    %1337 = vmatpush2.bf16.msra.mxu0 0
    %1338 = vmatprep.subr.bf16.mxu0 0
    %1339 = vmatpush2.bf16.msra.mxu0 0
    %1340 = vmatprep.subr.bf16.mxu0 0
    %1341 = vmatpush2.bf16.msra.mxu0 0
    %1342 = vmatprep.mubr.bf16.mxu0 0
    %1343 = vmatmul.mubr.bf16.gmra.mxu0 %v1308
    %v1344 = vpop.f32.mrf.mxu0
    %v1345 = vadd.f32 0.0, %v1344
    %v1346 = vpop.f32.mrf.mxu0
    %v1347 = vpop.f32.mrf.mxu0
    %v1348 = vpop.f32.mrf.mxu0
    %1349 = vdwg.mxu0
    %v1350 = vadd.f32 %v1086, %v1345
    %v1351 = vxor.u32 %v1350, 2147483648
    %v1352 = vmul.f32 %v1351, 1.442695
    %v1353 = vpow.pop %v1352
    %v1354 = vadd.f32 %v1353, 1.0
    %v1355 = vrcp.pop %v1354
    %v1356 = vmul.f32 1.0, %v1355
    %v1357 = vmul.f32 %v1356, 2.0
    %v1358 = vsub.f32 %v1357, 1.0
    %v1359 = vmul.f32 %v1356, %v1291
    %1361 = vrot.lane.b32.xlu0 %v1358, 64
    %v1362 = vpop.permute.xlu0 %1361
    %v1364 = vmul.f32 %v1356, %v1362
    %1366 = vrot.lane.b32.xlu0 %v1364, 32
    %v1367 = vpop.permute.xlu0 %1366
    %v1369 = vadd.f32 %v1359, %v1367
    %v1370 = vtanh.pop %v1369
    %1372 = vrot.lane.b32.xlu0 %v1370, 64
    %v1373 = vpop.permute.xlu0 %1372
    %v1375 = vmul.f32 %v1356, %v1373
    %1377 = vrot.lane.b32.xlu0 %v1375, 64
    %v1378 = vpop.permute.xlu0 %1377
    %vm1380 = vcmask 523520
    %1381 = vst.msk [vmem:[#allocation2] sm:$0xff] %vm1380, %v1378
    %v1382 = vpack.c.bf16 %v1375, %v1375
    %1384 = vrot.lane.b32.xlu0 %v1382, 32
    %v1385 = vpop.permute.xlu0 %1384
    %v1387 = vsel %vm190, %v1385, 0
    %1389 = vmatprep.subr.bf16.mxu0 0
    %1390 = vmatpush1.bf16.msra.mxu0 0
    %1391 = vmatprep.subr.bf16.mxu0 0
    %1392 = vmatpush1.bf16.msra.mxu0 0
    %1393 = vmatprep.subr.bf16.mxu0 0
    %1394 = vmatpush1.bf16.msra.mxu0 0
    %1395 = vmatprep.subr.bf16.mxu0 0
    %1396 = vmatpush1.bf16.msra.mxu0 0
    %1397 = vmatprep.subr.bf16.mxu0 0
    %1398 = vmatpush1.bf16.msra.mxu0 0
    %1399 = vmatprep.subr.bf16.mxu0 0
    %1400 = vmatpush1.bf16.msra.mxu0 0
    %1401 = vmatprep.subr.bf16.mxu0 0
    %1402 = vmatpush1.bf16.msra.mxu0 %v1226
    %1403 = vmatprep.subr.bf16.mxu0 0
    %1404 = vmatpush1.bf16.msra.mxu0 %v1225
    %1405 = vmatprep.subr.bf16.mxu0 0
    %1406 = vmatpush2.bf16.msra.mxu0 0
    %1407 = vmatprep.subr.bf16.mxu0 0
    %1408 = vmatpush2.bf16.msra.mxu0 0
    %1409 = vmatprep.subr.bf16.mxu0 0
    %1410 = vmatpush2.bf16.msra.mxu0 0
    %1411 = vmatprep.subr.bf16.mxu0 0
    %1412 = vmatpush2.bf16.msra.mxu0 0
    %1413 = vmatprep.subr.bf16.mxu0 0
    %1414 = vmatpush2.bf16.msra.mxu0 0
    %1415 = vmatprep.subr.bf16.mxu0 0
    %1416 = vmatpush2.bf16.msra.mxu0 0
    %1417 = vmatprep.subr.bf16.mxu0 0
    %1418 = vmatpush2.bf16.msra.mxu0 0
    %1419 = vmatprep.subr.bf16.mxu0 0
    %1420 = vmatpush2.bf16.msra.mxu0 0
    %1421 = vmatprep.mubr.bf16.mxu0 0
    %1422 = vmatmul.mubr.bf16.gmra.mxu0 %v1387
    %v1423 = vpop.f32.mrf.mxu0
    %v1424 = vadd.f32 0.0, %v1423
    %v1425 = vpop.f32.mrf.mxu0
    %v1426 = vpop.f32.mrf.mxu0
    %v1427 = vpop.f32.mrf.mxu0
    %1428 = vdwg.mxu0
    %v1429 = vadd.f32 %v1125, %v1424
    %v1430 = vxor.u32 %v1429, 2147483648
    %v1431 = vmul.f32 %v1430, 1.442695
    %v1432 = vpow.pop %v1431
    %v1433 = vadd.f32 %v1432, 1.0
    %v1434 = vrcp.pop %v1433
    %v1435 = vmul.f32 1.0, %v1434
    %v1436 = vmul.f32 %v1435, 2.0
    %v1437 = vsub.f32 %v1436, 1.0
    %v1438 = vmul.f32 %v1435, %v1369
    %1440 = vrot.lane.b32.xlu0 %v1437, 64
    %v1441 = vpop.permute.xlu0 %1440
    %v1443 = vmul.f32 %v1435, %v1441
    %1445 = vrot.lane.b32.xlu0 %v1443, 32
    %v1446 = vpop.permute.xlu0 %1445
    %v1448 = vadd.f32 %v1438, %v1446
    %v1449 = vtanh.pop %v1448
    %1451 = vrot.lane.b32.xlu0 %v1449, 64
    %v1452 = vpop.permute.xlu0 %1451
    %v1454 = vmul.f32 %v1435, %v1452
    %1456 = vrot.lane.b32.xlu0 %v1454, 96
    %v1457 = vpop.permute.xlu0 %1456
    %vm1459 = vcmask 785920
    %1460 = vst.msk [vmem:[#allocation2] sm:$0xff] %vm1459, %v1457
    %v1461 = vpack.c.bf16 %v1454, %v1454
    %1463 = vrot.lane.b32.xlu0 %v1461, 32
    %v1464 = vpop.permute.xlu0 %1463
    %v1466 = vsel %vm190, %v1464, 0
    %1468 = vmatprep.subr.bf16.mxu0 0
    %1469 = vmatpush1.bf16.msra.mxu0 0
    %1470 = vmatprep.subr.bf16.mxu0 0
    %1471 = vmatpush1.bf16.msra.mxu0 0
    %1472 = vmatprep.subr.bf16.mxu0 0
    %1473 = vmatpush1.bf16.msra.mxu0 0
    %1474 = vmatprep.subr.bf16.mxu0 0
    %1475 = vmatpush1.bf16.msra.mxu0 0
    %1476 = vmatprep.subr.bf16.mxu0 0
    %1477 = vmatpush1.bf16.msra.mxu0 0
    %1478 = vmatprep.subr.bf16.mxu0 0
    %1479 = vmatpush1.bf16.msra.mxu0 0
    %1480 = vmatprep.subr.bf16.mxu0 0
    %1481 = vmatpush1.bf16.msra.mxu0 %v1226
    %1482 = vmatprep.subr.bf16.mxu0 0
    %1483 = vmatpush1.bf16.msra.mxu0 %v1225
    %1484 = vmatprep.subr.bf16.mxu0 0
    %1485 = vmatpush2.bf16.msra.mxu0 0
    %1486 = vmatprep.subr.bf16.mxu0 0
    %1487 = vmatpush2.bf16.msra.mxu0 0
    %1488 = vmatprep.subr.bf16.mxu0 0
    %1489 = vmatpush2.bf16.msra.mxu0 0
    %1490 = vmatprep.subr.bf16.mxu0 0
    %1491 = vmatpush2.bf16.msra.mxu0 0
    %1492 = vmatprep.subr.bf16.mxu0 0
    %1493 = vmatpush2.bf16.msra.mxu0 0
    %1494 = vmatprep.subr.bf16.mxu0 0
    %1495 = vmatpush2.bf16.msra.mxu0 0
    %1496 = vmatprep.subr.bf16.mxu0 0
    %1497 = vmatpush2.bf16.msra.mxu0 0
    %1498 = vmatprep.subr.bf16.mxu0 0
    %1499 = vmatpush2.bf16.msra.mxu0 0
    %1500 = vmatprep.mubr.bf16.mxu0 0
    %1501 = vmatmul.mubr.bf16.gmra.mxu0 %v1466
    %v1502 = vpop.f32.mrf.mxu0
    %v1503 = vadd.f32 0.0, %v1502
    %v1504 = vpop.f32.mrf.mxu0
    %v1505 = vpop.f32.mrf.mxu0
    %v1506 = vpop.f32.mrf.mxu0
    %1507 = vdwg.mxu0
    %v1508 = vadd.f32 %v1127, %v1503
    %v1509 = vxor.u32 %v1508, 2147483648
    %v1510 = vmul.f32 %v1509, 1.442695
    %v1511 = vpow.pop %v1510
    %v1512 = vadd.f32 %v1511, 1.0
    %v1513 = vrcp.pop %v1512
    %v1514 = vmul.f32 1.0, %v1513
    %v1515 = vmul.f32 %v1514, 2.0
    %v1516 = vsub.f32 %v1515, 1.0
    %v1517 = vmul.f32 %v1514, %v1448
    %1519 = vrot.lane.b32.xlu0 %v1516, 64
    %v1520 = vpop.permute.xlu0 %1519
    %v1522 = vmul.f32 %v1514, %v1520
    %1524 = vrot.lane.b32.xlu0 %v1522, 32
    %v1525 = vpop.permute.xlu0 %1524
    %v1527 = vadd.f32 %v1517, %v1525
    %v1528 = vtanh.pop %v1527
    %1530 = vrot.lane.b32.xlu0 %v1528, 64
    %v1531 = vpop.permute.xlu0 %1530
    %v1533 = vmul.f32 %v1514, %v1531
    %vm1534 = vcmask 1048320
    %1535 = vst.msk [vmem:[#allocation2] sm:$0xff] %vm1534, %v1533
    %v1536 = vpack.c.bf16 %v1533, %v1533
    %1538 = vrot.lane.b32.xlu0 %v1536, 32
    %v1539 = vpop.permute.xlu0 %1538
    %v1541 = vsel %vm190, %v1539, 0
    %1543 = vmatprep.subr.bf16.mxu0 0
    %1544 = vmatpush1.bf16.msra.mxu0 0
    %1545 = vmatprep.subr.bf16.mxu0 0
    %1546 = vmatpush1.bf16.msra.mxu0 0
    %1547 = vmatprep.subr.bf16.mxu0 0
    %1548 = vmatpush1.bf16.msra.mxu0 0
    %1549 = vmatprep.subr.bf16.mxu0 0
    %1550 = vmatpush1.bf16.msra.mxu0 0
    %1551 = vmatprep.subr.bf16.mxu0 0
    %1552 = vmatpush1.bf16.msra.mxu0 0
    %1553 = vmatprep.subr.bf16.mxu0 0
    %1554 = vmatpush1.bf16.msra.mxu0 0
    %1555 = vmatprep.subr.bf16.mxu0 0
    %1556 = vmatpush1.bf16.msra.mxu0 %v1226
    %1557 = vmatprep.subr.bf16.mxu0 0
    %1558 = vmatpush1.bf16.msra.mxu0 %v1225
    %1559 = vmatprep.subr.bf16.mxu0 0
    %1560 = vmatpush2.bf16.msra.mxu0 0
    %1561 = vmatprep.subr.bf16.mxu0 0
    %1562 = vmatpush2.bf16.msra.mxu0 0
    %1563 = vmatprep.subr.bf16.mxu0 0
    %1564 = vmatpush2.bf16.msra.mxu0 0
    %1565 = vmatprep.subr.bf16.mxu0 0
    %1566 = vmatpush2.bf16.msra.mxu0 0
    %1567 = vmatprep.subr.bf16.mxu0 0
    %1568 = vmatpush2.bf16.msra.mxu0 0
    %1569 = vmatprep.subr.bf16.mxu0 0
    %1570 = vmatpush2.bf16.msra.mxu0 0
    %1571 = vmatprep.subr.bf16.mxu0 0
    %1572 = vmatpush2.bf16.msra.mxu0 0
    %1573 = vmatprep.subr.bf16.mxu0 0
    %1574 = vmatpush2.bf16.msra.mxu0 0
    %1575 = vmatprep.mubr.bf16.mxu0 0
    %1576 = vmatmul.mubr.bf16.gmra.mxu0 %v1541
    %v1577 = vpop.f32.mrf.mxu0
    %v1578 = vadd.f32 0.0, %v1577
    %v1579 = vpop.f32.mrf.mxu0
    %v1580 = vpop.f32.mrf.mxu0
    %v1581 = vpop.f32.mrf.mxu0
    %1582 = vdwg.mxu0
    %v1583 = vadd.f32 %v1166, %v1578
    %v1584 = vxor.u32 %v1583, 2147483648
    %v1585 = vmul.f32 %v1584, 1.442695
    %v1586 = vpow.pop %v1585
    %v1587 = vadd.f32 %v1586, 1.0
    %v1588 = vrcp.pop %v1587
    %v1589 = vmul.f32 1.0, %v1588
    %v1590 = vmul.f32 %v1589, 2.0
    %v1591 = vsub.f32 %v1590, 1.0
    %v1592 = vmul.f32 %v1589, %v1527
    %1594 = vrot.lane.b32.xlu0 %v1591, 64
    %v1595 = vpop.permute.xlu0 %1594
    %v1597 = vmul.f32 %v1589, %v1595
    %1599 = vrot.lane.b32.xlu0 %v1597, 32
    %v1600 = vpop.permute.xlu0 %1599
    %v1602 = vadd.f32 %v1592, %v1600
    %v1603 = vtanh.pop %v1602
    %1605 = vrot.lane.b32.xlu0 %v1603, 64
    %v1606 = vpop.permute.xlu0 %1605
    %v1608 = vmul.f32 %v1589, %v1606
    %1610 = vrot.lane.b32.xlu0 %v1608, 32
    %v1611 = vpop.permute.xlu0 %1610
    %1613 = vst.msk [vmem:[#allocation2 + $0x8] sm:$0xff] %vm190, %v1611
    %v1614 = vpack.c.bf16 %v1608, %v1608
    %1616 = vrot.lane.b32.xlu0 %v1614, 32
    %v1617 = vpop.permute.xlu0 %1616
    %v1619 = vsel %vm190, %v1617, 0
    %1621 = vmatprep.subr.bf16.mxu0 0
    %1622 = vmatpush1.bf16.msra.mxu0 0
    %1623 = vmatprep.subr.bf16.mxu0 0
    %1624 = vmatpush1.bf16.msra.mxu0 0
    %1625 = vmatprep.subr.bf16.mxu0 0
    %1626 = vmatpush1.bf16.msra.mxu0 0
    %1627 = vmatprep.subr.bf16.mxu0 0
    %1628 = vmatpush1.bf16.msra.mxu0 0
    %1629 = vmatprep.subr.bf16.mxu0 0
    %1630 = vmatpush1.bf16.msra.mxu0 0
    %1631 = vmatprep.subr.bf16.mxu0 0
    %1632 = vmatpush1.bf16.msra.mxu0 0
    %1633 = vmatprep.subr.bf16.mxu0 0
    %1634 = vmatpush1.bf16.msra.mxu0 %v1226
    %1635 = vmatprep.subr.bf16.mxu0 0
    %1636 = vmatpush1.bf16.msra.mxu0 %v1225
    %1637 = vmatprep.subr.bf16.mxu0 0
    %1638 = vmatpush2.bf16.msra.mxu0 0
    %1639 = vmatprep.subr.bf16.mxu0 0
    %1640 = vmatpush2.bf16.msra.mxu0 0
    %1641 = vmatprep.subr.bf16.mxu0 0
    %1642 = vmatpush2.bf16.msra.mxu0 0
    %1643 = vmatprep.subr.bf16.mxu0 0
    %1644 = vmatpush2.bf16.msra.mxu0 0
    %1645 = vmatprep.subr.bf16.mxu0 0
    %1646 = vmatpush2.bf16.msra.mxu0 0
    %1647 = vmatprep.subr.bf16.mxu0 0
    %1648 = vmatpush2.bf16.msra.mxu0 0
    %1649 = vmatprep.subr.bf16.mxu0 0
    %1650 = vmatpush2.bf16.msra.mxu0 0
    %1651 = vmatprep.subr.bf16.mxu0 0
    %1652 = vmatpush2.bf16.msra.mxu0 0
    %1653 = vmatprep.mubr.bf16.mxu0 0
    %1654 = vmatmul.mubr.bf16.gmra.mxu0 %v1619
    %v1655 = vpop.f32.mrf.mxu0
    %v1656 = vadd.f32 0.0, %v1655
    %v1657 = vpop.f32.mrf.mxu0
    %v1658 = vpop.f32.mrf.mxu0
    %v1659 = vpop.f32.mrf.mxu0
    %1660 = vdwg.mxu0
    %v1661 = vadd.f32 %v1168, %v1656
    %v1662 = vxor.u32 %v1661, 2147483648
    %v1663 = vmul.f32 %v1662, 1.442695
    %v1664 = vpow.pop %v1663
    %v1665 = vadd.f32 %v1664, 1.0
    %v1666 = vrcp.pop %v1665
    %v1667 = vmul.f32 1.0, %v1666
    %v1668 = vmul.f32 %v1667, 2.0
    %v1669 = vsub.f32 %v1668, 1.0
    %v1670 = vmul.f32 %v1667, %v1602
    %1672 = vrot.lane.b32.xlu0 %v1669, 64
    %v1673 = vpop.permute.xlu0 %1672
    %v1675 = vmul.f32 %v1667, %v1673
    %1677 = vrot.lane.b32.xlu0 %v1675, 32
    %v1678 = vpop.permute.xlu0 %1677
    %v1680 = vadd.f32 %v1670, %v1678
    %v1681 = vtanh.pop %v1680
    %1683 = vrot.lane.b32.xlu0 %v1681, 64
    %v1684 = vpop.permute.xlu0 %1683
    %v1686 = vmul.f32 %v1667, %v1684
    %1688 = vrot.lane.b32.xlu0 %v1686, 64
    %v1689 = vpop.permute.xlu0 %1688
    %1691 = vst.msk [vmem:[#allocation2 + $0x8] sm:$0xff] %vm1380, %v1689
    %v1692 = vpack.c.bf16 %v1686, %v1686
    %1694 = vrot.lane.b32.xlu0 %v1692, 32
    %v1695 = vpop.permute.xlu0 %1694
    %v1697 = vsel %vm190, %v1695, 0
    %1699 = vmatprep.subr.bf16.mxu0 0
    %1700 = vmatpush1.bf16.msra.mxu0 0
    %1701 = vmatprep.subr.bf16.mxu0 0
    %1702 = vmatpush1.bf16.msra.mxu0 0
    %1703 = vmatprep.subr.bf16.mxu0 0
    %1704 = vmatpush1.bf16.msra.mxu0 0
    %1705 = vmatprep.subr.bf16.mxu0 0
    %1706 = vmatpush1.bf16.msra.mxu0 0
    %1707 = vmatprep.subr.bf16.mxu0 0
    %1708 = vmatpush1.bf16.msra.mxu0 0
    %1709 = vmatprep.subr.bf16.mxu0 0
    %1710 = vmatpush1.bf16.msra.mxu0 0
    %1711 = vmatprep.subr.bf16.mxu0 0
    %1712 = vmatpush1.bf16.msra.mxu0 %v1226
    %1713 = vmatprep.subr.bf16.mxu0 0
    %1714 = vmatpush1.bf16.msra.mxu0 %v1225
    %1715 = vmatprep.subr.bf16.mxu0 0
    %1716 = vmatpush2.bf16.msra.mxu0 0
    %1717 = vmatprep.subr.bf16.mxu0 0
    %1718 = vmatpush2.bf16.msra.mxu0 0
    %1719 = vmatprep.subr.bf16.mxu0 0
    %1720 = vmatpush2.bf16.msra.mxu0 0
    %1721 = vmatprep.subr.bf16.mxu0 0
    %1722 = vmatpush2.bf16.msra.mxu0 0
    %1723 = vmatprep.subr.bf16.mxu0 0
    %1724 = vmatpush2.bf16.msra.mxu0 0
    %1725 = vmatprep.subr.bf16.mxu0 0
    %1726 = vmatpush2.bf16.msra.mxu0 0
    %1727 = vmatprep.subr.bf16.mxu0 0
    %1728 = vmatpush2.bf16.msra.mxu0 0
    %1729 = vmatprep.subr.bf16.mxu0 0
    %1730 = vmatpush2.bf16.msra.mxu0 0
    %1731 = vmatprep.mubr.bf16.mxu0 0
    %1732 = vmatmul.mubr.bf16.gmra.mxu0 %v1697
    %v1733 = vpop.f32.mrf.mxu0
    %v1734 = vadd.f32 0.0, %v1733
    %v1735 = vpop.f32.mrf.mxu0
    %v1736 = vpop.f32.mrf.mxu0
    %v1737 = vpop.f32.mrf.mxu0
    %1738 = vdwg.mxu0
    %v1739 = vadd.f32 %v1207, %v1734
    %v1740 = vxor.u32 %v1739, 2147483648
    %v1741 = vmul.f32 %v1740, 1.442695
    %v1742 = vpow.pop %v1741
    %v1743 = vadd.f32 %v1742, 1.0
    %v1744 = vrcp.pop %v1743
    %v1745 = vmul.f32 1.0, %v1744
    %v1746 = vmul.f32 %v1745, 2.0
    %v1747 = vsub.f32 %v1746, 1.0
    %v1748 = vmul.f32 %v1745, %v1680
    %1750 = vrot.lane.b32.xlu0 %v1747, 64
    %v1751 = vpop.permute.xlu0 %1750
    %v1753 = vmul.f32 %v1745, %v1751
    %1755 = vrot.lane.b32.xlu0 %v1753, 32
    %v1756 = vpop.permute.xlu0 %1755
    %v1758 = vadd.f32 %v1748, %v1756
    %v1759 = vtanh.pop %v1758
    %1761 = vrot.lane.b32.xlu0 %v1759, 64
    %v1762 = vpop.permute.xlu0 %1761
    %v1764 = vmul.f32 %v1745, %v1762
    %1766 = vrot.lane.b32.xlu0 %v1764, 96
    %v1767 = vpop.permute.xlu0 %1766
    %1769 = vst.msk [vmem:[#allocation2 + $0x8] sm:$0xff] %vm1459, %v1767
    %v1770 = vpack.c.bf16 %v1764, %v1764
    %1772 = vrot.lane.b32.xlu0 %v1770, 32
    %v1773 = vpop.permute.xlu0 %1772
    %v1775 = vsel %vm190, %v1773, 0
    %1777 = vmatprep.subr.bf16.mxu0 0
    %1778 = vmatpush1.bf16.msra.mxu0 0
    %1779 = vmatprep.subr.bf16.mxu0 0
    %1780 = vmatpush1.bf16.msra.mxu0 0
    %1781 = vmatprep.subr.bf16.mxu0 0
    %1782 = vmatpush1.bf16.msra.mxu0 0
    %1783 = vmatprep.subr.bf16.mxu0 0
    %1784 = vmatpush1.bf16.msra.mxu0 0
    %1785 = vmatprep.subr.bf16.mxu0 0
    %1786 = vmatpush1.bf16.msra.mxu0 0
    %1787 = vmatprep.subr.bf16.mxu0 0
    %1788 = vmatpush1.bf16.msra.mxu0 0
    %1789 = vmatprep.subr.bf16.mxu0 0
    %1790 = vmatpush1.bf16.msra.mxu0 %v1226
    %1791 = vmatprep.subr.bf16.mxu0 0
    %1792 = vmatpush1.bf16.msra.mxu0 %v1225
    %1793 = vmatprep.subr.bf16.mxu0 0
    %1794 = vmatpush2.bf16.msra.mxu0 0
    %1795 = vmatprep.subr.bf16.mxu0 0
    %1796 = vmatpush2.bf16.msra.mxu0 0
    %1797 = vmatprep.subr.bf16.mxu0 0
    %1798 = vmatpush2.bf16.msra.mxu0 0
    %1799 = vmatprep.subr.bf16.mxu0 0
    %1800 = vmatpush2.bf16.msra.mxu0 0
    %1801 = vmatprep.subr.bf16.mxu0 0
    %1802 = vmatpush2.bf16.msra.mxu0 0
    %1803 = vmatprep.subr.bf16.mxu0 0
    %1804 = vmatpush2.bf16.msra.mxu0 0
    %1805 = vmatprep.subr.bf16.mxu0 0
    %1806 = vmatpush2.bf16.msra.mxu0 0
    %1807 = vmatprep.subr.bf16.mxu0 0
    %1808 = vmatpush2.bf16.msra.mxu0 0
    %1809 = vmatprep.mubr.bf16.mxu0 0
    %1810 = vmatmul.mubr.bf16.gmra.mxu0 %v1775
    %v1811 = vpop.f32.mrf.mxu0
    %v1812 = vadd.f32 0.0, %v1811
    %v1813 = vpop.f32.mrf.mxu0
    %v1814 = vpop.f32.mrf.mxu0
    %v1815 = vpop.f32.mrf.mxu0
    %1816 = vdwg.mxu0
    %v1817 = vadd.f32 %v1209, %v1812
    %v1818 = vxor.u32 %v1817, 2147483648
    %v1819 = vmul.f32 %v1818, 1.442695
    %v1820 = vpow.pop %v1819
    %v1821 = vadd.f32 %v1820, 1.0
    %v1822 = vrcp.pop %v1821
    %v1823 = vmul.f32 1.0, %v1822
    %v1824 = vmul.f32 %v1823, 2.0
    %v1825 = vsub.f32 %v1824, 1.0
    %v1826 = vmul.f32 %v1823, %v1758
    %1828 = vrot.lane.b32.xlu0 %v1825, 64
    %v1829 = vpop.permute.xlu0 %1828
    %v1831 = vmul.f32 %v1823, %v1829
    %1833 = vrot.lane.b32.xlu0 %v1831, 32
    %v1834 = vpop.permute.xlu0 %1833
    %v1836 = vadd.f32 %v1826, %v1834
    %v1837 = vtanh.pop %v1836
    %1839 = vrot.lane.b32.xlu0 %v1837, 64
    %v1840 = vpop.permute.xlu0 %1839
    %v1842 = vmul.f32 %v1823, %v1840
    %1843 = vst.msk [vmem:[#allocation2 + $0x8] sm:$0xff] %vm1534, %v1842
    %v1844 = vld [vmem:[#allocation2] sm:$0xff]
    %v1845 = vld [vmem:[#allocation2 + $0x8] sm:$0xff]
    %v1846 = vld [vmem:[%s1] sm:$0xff]
    %v1847 = vpack.c.bf16 %v1846, %v1846
    %v1848 = vld [vmem:[%s8] sm:$0x7]
    %v1849 = vld [vmem:[%s9] sm:$0x1]
    %v1851 = vlaneseq
    %v1852 = vshrl.u32 %v1851, 7
    %v1853 = vsub.s32 0, %v1852
    %v1854 = vrot.slane %v1849, %v1853
    %vm1856 = vcmask 48128
    %v1858 = vsel %vm1856, %v1847, 0
    %vm1860 = vcmask 1042432
    %v1862 = vsel %vm1860, %v1848, 0
    %1864 = vmatprep.subr.bf16.mxu0 0
    %1865 = vmatpush1.bf16.msra.mxu0 0
    %1866 = vmatprep.subr.bf16.mxu0 0
    %1867 = vmatpush1.bf16.msra.mxu0 0
    %1868 = vmatprep.subr.bf16.mxu0 0
    %1869 = vmatpush1.bf16.msra.mxu0 0
    %1870 = vmatprep.subr.bf16.mxu0 0
    %1871 = vmatpush1.bf16.msra.mxu0 0
    %1872 = vmatprep.subr.bf16.mxu0 0
    %1873 = vmatpush1.bf16.msra.mxu0 0
    %1874 = vmatprep.subr.bf16.mxu0 0
    %1875 = vmatpush1.bf16.msra.mxu0 0
    %1876 = vmatprep.subr.bf16.mxu0 0
    %1877 = vmatpush1.bf16.msra.mxu0 0
    %1878 = vmatprep.subr.bf16.mxu0 0
    %1879 = vmatpush1.bf16.msra.mxu0 %v1862
    %1880 = vmatprep.subr.bf16.mxu0 0
    %1881 = vmatpush2.bf16.msra.mxu0 0
    %1882 = vmatprep.subr.bf16.mxu0 0
    %1883 = vmatpush2.bf16.msra.mxu0 0
    %1884 = vmatprep.subr.bf16.mxu0 0
    %1885 = vmatpush2.bf16.msra.mxu0 0
    %1886 = vmatprep.subr.bf16.mxu0 0
    %1887 = vmatpush2.bf16.msra.mxu0 0
    %1888 = vmatprep.subr.bf16.mxu0 0
    %1889 = vmatpush2.bf16.msra.mxu0 0
    %1890 = vmatprep.subr.bf16.mxu0 0
    %1891 = vmatpush2.bf16.msra.mxu0 0
    %1892 = vmatprep.subr.bf16.mxu0 0
    %1893 = vmatpush2.bf16.msra.mxu0 0
    %1894 = vmatprep.subr.bf16.mxu0 0
    %1895 = vmatpush2.bf16.msra.mxu0 0
    %1896 = vmatprep.mubr.bf16.mxu0 0
    %1897 = vmatmul.mubr.bf16.gmra.mxu0 %v1858
    %v1898 = vpop.f32.mrf.mxu0
    %v1899 = vadd.f32 %v1854, %v1898
    %v1900 = vpop.f32.mrf.mxu0
    %v1901 = vpop.f32.mrf.mxu0
    %v1902 = vpop.f32.mrf.mxu0
    %1903 = vdwg.mxu0
    %v1904 = vmax.f32 %v1899, 0.0
    %v1905 = vpack.c.bf16 %v1904, %v1904
    %v1906 = vld [vmem:[%s10] sm:$0xf]
    %v1907 = vld [vmem:[%s10 + $0x4] sm:$0xf]
    %v1908 = vld [vmem:[%s10 + $0x8] sm:$0xf]
    %v1909 = vld [vmem:[%s10 + $0xc] sm:$0xf]
    %v1910 = vld [vmem:[%s11] sm:$0x1]
    %v1912 = vlaneseq
    %v1913 = vshrl.u32 %v1912, 7
    %v1914 = vsub.s32 0, %v1913
    %v1915 = vrot.slane %v1910, %v1914
    %v1921 = vunpack.c.l.b16 %v1906
    %v1922 = vunpack.c.l.b16 %v1907
    %v1923 = vunpack.c.l.b16 %v1908
    %v1924 = vunpack.c.l.b16 %v1909
    %v1925 = vpack.c.b16 %v1922, %v1921
    %v1926 = vpack.c.b16 %v1924, %v1923
    %v1930 = vsel %vm190, %v1905, 0
    %1932 = vmatprep.subr.bf16.mxu0 0
    %1933 = vmatpush1.bf16.msra.mxu0 0
    %1934 = vmatprep.subr.bf16.mxu0 0
    %1935 = vmatpush1.bf16.msra.mxu0 0
    %1936 = vmatprep.subr.bf16.mxu0 0
    %1937 = vmatpush1.bf16.msra.mxu0 0
    %1938 = vmatprep.subr.bf16.mxu0 0
    %1939 = vmatpush1.bf16.msra.mxu0 0
    %1940 = vmatprep.subr.bf16.mxu0 0
    %1941 = vmatpush1.bf16.msra.mxu0 0
    %1942 = vmatprep.subr.bf16.mxu0 0
    %1943 = vmatpush1.bf16.msra.mxu0 0
    %1944 = vmatprep.subr.bf16.mxu0 0
    %1945 = vmatpush1.bf16.msra.mxu0 %v1926
    %1946 = vmatprep.subr.bf16.mxu0 0
    %1947 = vmatpush1.bf16.msra.mxu0 %v1925
    %1948 = vmatprep.subr.bf16.mxu0 0
    %1949 = vmatpush2.bf16.msra.mxu0 0
    %1950 = vmatprep.subr.bf16.mxu0 0
    %1951 = vmatpush2.bf16.msra.mxu0 0
    %1952 = vmatprep.subr.bf16.mxu0 0
    %1953 = vmatpush2.bf16.msra.mxu0 0
    %1954 = vmatprep.subr.bf16.mxu0 0
    %1955 = vmatpush2.bf16.msra.mxu0 0
    %1956 = vmatprep.subr.bf16.mxu0 0
    %1957 = vmatpush2.bf16.msra.mxu0 0
    %1958 = vmatprep.subr.bf16.mxu0 0
    %1959 = vmatpush2.bf16.msra.mxu0 0
    %1960 = vmatprep.subr.bf16.mxu0 0
    %1961 = vmatpush2.bf16.msra.mxu0 0
    %1962 = vmatprep.subr.bf16.mxu0 0
    %1963 = vmatpush2.bf16.msra.mxu0 0
    %1964 = vmatprep.mubr.bf16.mxu0 0
    %1965 = vmatmul.mubr.bf16.gmra.mxu0 %v1930
    %v1966 = vpop.f32.mrf.mxu0
    %v1967 = vadd.f32 %v1915, %v1966
    %v1968 = vpop.f32.mrf.mxu0
    %v1969 = vpop.f32.mrf.mxu0
    %v1970 = vpop.f32.mrf.mxu0
    %1971 = vdwg.mxu0
    %v1972 = vmax.f32 %v1967, 0.0
    %v1973 = vpack.c.bf16 %v1972, %v1972
    %v1974 = vld [vmem:[%s12] sm:$0xf]
    %v1975 = vld [vmem:[%s12 + $0x4] sm:$0xf]
    %v1976 = vld [vmem:[%s12 + $0x8] sm:$0xf]
    %v1977 = vld [vmem:[%s12 + $0xc] sm:$0xf]
    %v1978 = vld [vmem:[%s13] sm:$0x1]
    %v1980 = vlaneseq
    %v1981 = vshrl.u32 %v1980, 7
    %v1982 = vsub.s32 0, %v1981
    %v1983 = vrot.slane %v1978, %v1982
    %v1989 = vunpack.c.l.b16 %v1974
    %v1990 = vunpack.c.l.b16 %v1975
    %v1991 = vunpack.c.l.b16 %v1976
    %v1992 = vunpack.c.l.b16 %v1977
    %v1993 = vpack.c.b16 %v1990, %v1989
    %v1994 = vpack.c.b16 %v1992, %v1991
    %v1998 = vsel %vm190, %v1973, 0
    %2000 = vmatprep.subr.bf16.mxu0 0
    %2001 = vmatpush1.bf16.msra.mxu0 0
    %2002 = vmatprep.subr.bf16.mxu0 0
    %2003 = vmatpush1.bf16.msra.mxu0 0
    %2004 = vmatprep.subr.bf16.mxu0 0
    %2005 = vmatpush1.bf16.msra.mxu0 0
    %2006 = vmatprep.subr.bf16.mxu0 0
    %2007 = vmatpush1.bf16.msra.mxu0 0
    %2008 = vmatprep.subr.bf16.mxu0 0
    %2009 = vmatpush1.bf16.msra.mxu0 0
    %2010 = vmatprep.subr.bf16.mxu0 0
    %2011 = vmatpush1.bf16.msra.mxu0 0
    %2012 = vmatprep.subr.bf16.mxu0 0
    %2013 = vmatpush1.bf16.msra.mxu0 %v1994
    %2014 = vmatprep.subr.bf16.mxu0 0
    %2015 = vmatpush1.bf16.msra.mxu0 %v1993
    %2016 = vmatprep.subr.bf16.mxu0 0
    %2017 = vmatpush2.bf16.msra.mxu0 0
    %2018 = vmatprep.subr.bf16.mxu0 0
    %2019 = vmatpush2.bf16.msra.mxu0 0
    %2020 = vmatprep.subr.bf16.mxu0 0
    %2021 = vmatpush2.bf16.msra.mxu0 0
    %2022 = vmatprep.subr.bf16.mxu0 0
    %2023 = vmatpush2.bf16.msra.mxu0 0
    %2024 = vmatprep.subr.bf16.mxu0 0
    %2025 = vmatpush2.bf16.msra.mxu0 0
    %2026 = vmatprep.subr.bf16.mxu0 0
    %2027 = vmatpush2.bf16.msra.mxu0 0
    %2028 = vmatprep.subr.bf16.mxu0 0
    %2029 = vmatpush2.bf16.msra.mxu0 0
    %2030 = vmatprep.subr.bf16.mxu0 0
    %2031 = vmatpush2.bf16.msra.mxu0 0
    %2032 = vmatprep.mubr.bf16.mxu0 0
    %2033 = vmatmul.mubr.bf16.gmra.mxu0 %v1998
    %v2034 = vpop.f32.mrf.mxu0
    %v2035 = vadd.f32 %v1983, %v2034
    %v2036 = vpop.f32.mrf.mxu0
    %v2037 = vpop.f32.mrf.mxu0
    %v2038 = vpop.f32.mrf.mxu0
    %2039 = vdwg.mxu0
    %v2040 = vpack.c.bf16 %v1844, %v1844
    %v2041 = vpack.c.bf16 %v1845, %v1845
    %v2042 = vld [vmem:[%s14] sm:$0xff]
    %v2043 = vld [vmem:[%s14 + $0x8] sm:$0xff]
    %v2044 = vld [vmem:[%s14 + $0x10] sm:$0xff]
    %v2045 = vld [vmem:[%s14 + $0x18] sm:$0xff]
    %v2046 = vld [vmem:[%s14 + $0x20] sm:$0xff]
    %v2047 = vld [vmem:[%s14 + $0x28] sm:$0xff]
    %v2048 = vld [vmem:[%s14 + $0x30] sm:$0xff]
    %v2049 = vld [vmem:[%s14 + $0x38] sm:$0xff]
    %v2050 = vld [vmem:[%s14 + $0x40] sm:$0xff]
    %v2051 = vld [vmem:[%s14 + $0x48] sm:$0xff]
    %v2052 = vld [vmem:[%s14 + $0x50] sm:$0xff]
    %v2053 = vld [vmem:[%s14 + $0x58] sm:$0xff]
    %v2054 = vld [vmem:[%s14 + $0x60] sm:$0xff]
    %v2055 = vld [vmem:[%s14 + $0x68] sm:$0xff]
    %v2056 = vld [vmem:[%s14 + $0x70] sm:$0xff]
    %v2057 = vld [vmem:[%s14 + $0x78] sm:$0xff]
    %v2058 = vld [vmem:[%s14 + $0x80] sm:$0xff]
    %v2059 = vld [vmem:[%s14 + $0x88] sm:$0xff]
    %v2060 = vld [vmem:[%s14 + $0x90] sm:$0xff]
    %v2061 = vld [vmem:[%s14 + $0x98] sm:$0xff]
    %v2062 = vld [vmem:[%s14 + $0xa0] sm:$0xff]
    %v2063 = vld [vmem:[%s14 + $0xa8] sm:$0xff]
    %v2064 = vld [vmem:[%s14 + $0xb0] sm:$0xff]
    %v2065 = vld [vmem:[%s14 + $0xb8] sm:$0xff]
    %v2066 = vld [vmem:[%s14 + $0xc0] sm:$0xff]
    %v2067 = vld [vmem:[%s14 + $0xc8] sm:$0xff]
    %v2068 = vld [vmem:[%s14 + $0xd0] sm:$0xff]
    %v2069 = vld [vmem:[%s14 + $0xd8] sm:$0xff]
    %v2070 = vld [vmem:[%s14 + $0xe0] sm:$0xff]
    %v2071 = vld [vmem:[%s14 + $0xe8] sm:$0xff]
    %v2072 = vld [vmem:[%s14 + $0xf0] sm:$0xff]
    %v2073 = vld [vmem:[%s14 + $0xf8] sm:$0xff]
    %v2074 = vld [vmem:[#allocation5] sm:$0x3]
    %v2076 = vlaneseq
    %v2077 = vshrl.u32 %v2076, 7
    %v2078 = vsub.s32 0, %v2077
    %v2079 = vrot.slane %v2074, %v2078
    %v2080 = vlaneseq
    %v2081 = vshrl.u32 %v2080, 7
    %v2082 = vsub.s32 1, %v2081
    %v2083 = vrot.slane %v2074, %v2082
    %v2118 = vunpack.c.l.b16 %v2042
    %v2119 = vunpack.c.h.b16 %v2042
    %v2120 = vunpack.c.l.b16 %v2043
    %v2121 = vunpack.c.h.b16 %v2043
    %v2122 = vunpack.c.l.b16 %v2044
    %v2123 = vunpack.c.h.b16 %v2044
    %v2124 = vunpack.c.l.b16 %v2045
    %v2125 = vunpack.c.h.b16 %v2045
    %v2126 = vunpack.c.l.b16 %v2046
    %v2127 = vunpack.c.h.b16 %v2046
    %v2128 = vunpack.c.l.b16 %v2047
    %v2129 = vunpack.c.h.b16 %v2047
    %v2130 = vunpack.c.l.b16 %v2048
    %v2131 = vunpack.c.h.b16 %v2048
    %v2132 = vunpack.c.l.b16 %v2049
    %v2133 = vunpack.c.h.b16 %v2049
    %v2134 = vunpack.c.l.b16 %v2050
    %v2135 = vunpack.c.h.b16 %v2050
    %v2136 = vunpack.c.l.b16 %v2051
    %v2137 = vunpack.c.h.b16 %v2051
    %v2138 = vunpack.c.l.b16 %v2052
    %v2139 = vunpack.c.h.b16 %v2052
    %v2140 = vunpack.c.l.b16 %v2053
    %v2141 = vunpack.c.h.b16 %v2053
    %v2142 = vunpack.c.l.b16 %v2054
    %v2143 = vunpack.c.h.b16 %v2054
    %v2144 = vunpack.c.l.b16 %v2055
    %v2145 = vunpack.c.h.b16 %v2055
    %v2146 = vunpack.c.l.b16 %v2056
    %v2147 = vunpack.c.h.b16 %v2056
    %v2148 = vunpack.c.l.b16 %v2057
    %v2149 = vunpack.c.h.b16 %v2057
    %v2150 = vunpack.c.l.b16 %v2058
    %v2151 = vunpack.c.h.b16 %v2058
    %v2152 = vunpack.c.l.b16 %v2059
    %v2153 = vunpack.c.h.b16 %v2059
    %v2154 = vunpack.c.l.b16 %v2060
    %v2155 = vunpack.c.h.b16 %v2060
    %v2156 = vunpack.c.l.b16 %v2061
    %v2157 = vunpack.c.h.b16 %v2061
    %v2158 = vunpack.c.l.b16 %v2062
    %v2159 = vunpack.c.h.b16 %v2062
    %v2160 = vunpack.c.l.b16 %v2063
    %v2161 = vunpack.c.h.b16 %v2063
    %v2162 = vunpack.c.l.b16 %v2064
    %v2163 = vunpack.c.h.b16 %v2064
    %v2164 = vunpack.c.l.b16 %v2065
    %v2165 = vunpack.c.h.b16 %v2065
    %v2166 = vunpack.c.l.b16 %v2066
    %v2167 = vunpack.c.h.b16 %v2066
    %v2168 = vunpack.c.l.b16 %v2067
    %v2169 = vunpack.c.h.b16 %v2067
    %v2170 = vunpack.c.l.b16 %v2068
    %v2171 = vunpack.c.h.b16 %v2068
    %v2172 = vunpack.c.l.b16 %v2069
    %v2173 = vunpack.c.h.b16 %v2069
    %v2174 = vunpack.c.l.b16 %v2070
    %v2175 = vunpack.c.h.b16 %v2070
    %v2176 = vunpack.c.l.b16 %v2071
    %v2177 = vunpack.c.h.b16 %v2071
    %v2178 = vunpack.c.l.b16 %v2072
    %v2179 = vunpack.c.h.b16 %v2072
    %v2180 = vunpack.c.l.b16 %v2073
    %v2181 = vunpack.c.h.b16 %v2073
    %v2182 = vpack.c.b16 %v2120, %v2118
    %v2183 = vpack.c.b16 %v2121, %v2119
    %v2184 = vpack.c.b16 %v2124, %v2122
    %v2185 = vpack.c.b16 %v2125, %v2123
    %v2186 = vpack.c.b16 %v2128, %v2126
    %v2187 = vpack.c.b16 %v2129, %v2127
    %v2188 = vpack.c.b16 %v2132, %v2130
    %v2189 = vpack.c.b16 %v2133, %v2131
    %v2190 = vpack.c.b16 %v2136, %v2134
    %v2191 = vpack.c.b16 %v2137, %v2135
    %v2192 = vpack.c.b16 %v2140, %v2138
    %v2193 = vpack.c.b16 %v2141, %v2139
    %v2194 = vpack.c.b16 %v2144, %v2142
    %v2195 = vpack.c.b16 %v2145, %v2143
    %v2196 = vpack.c.b16 %v2148, %v2146
    %v2197 = vpack.c.b16 %v2149, %v2147
    %v2198 = vpack.c.b16 %v2152, %v2150
    %v2199 = vpack.c.b16 %v2153, %v2151
    %v2200 = vpack.c.b16 %v2156, %v2154
    %v2201 = vpack.c.b16 %v2157, %v2155
    %v2202 = vpack.c.b16 %v2160, %v2158
    %v2203 = vpack.c.b16 %v2161, %v2159
    %v2204 = vpack.c.b16 %v2164, %v2162
    %v2205 = vpack.c.b16 %v2165, %v2163
    %v2206 = vpack.c.b16 %v2168, %v2166
    %v2207 = vpack.c.b16 %v2169, %v2167
    %v2208 = vpack.c.b16 %v2172, %v2170
    %v2209 = vpack.c.b16 %v2173, %v2171
    %v2210 = vpack.c.b16 %v2176, %v2174
    %v2211 = vpack.c.b16 %v2177, %v2175
    %v2212 = vpack.c.b16 %v2180, %v2178
    %v2213 = vpack.c.b16 %v2181, %v2179
    %2246 = vmatprep.subr.bf16.mxu0 %v2197
    %2247 = vmatpush1.bf16.msra.mxu0 %v2196
    %2248 = vmatprep.subr.bf16.mxu0 %v2195
    %2249 = vmatpush1.bf16.msra.mxu0 %v2194
    %2250 = vmatprep.subr.bf16.mxu0 %v2193
    %2251 = vmatpush1.bf16.msra.mxu0 %v2192
    %2252 = vmatprep.subr.bf16.mxu0 %v2191
    %2253 = vmatpush1.bf16.msra.mxu0 %v2190
    %2254 = vmatprep.subr.bf16.mxu0 %v2189
    %2255 = vmatpush1.bf16.msra.mxu0 %v2188
    %2256 = vmatprep.subr.bf16.mxu0 %v2187
    %2257 = vmatpush1.bf16.msra.mxu0 %v2186
    %2258 = vmatprep.subr.bf16.mxu0 %v2185
    %2259 = vmatpush1.bf16.msra.mxu0 %v2184
    %2260 = vmatprep.subr.bf16.mxu0 %v2183
    %2261 = vmatpush1.bf16.msra.mxu0 %v2182
    %2262 = vmatprep.subr.bf16.mxu0 %v2213
    %2263 = vmatpush2.bf16.msra.mxu0 %v2212
    %2264 = vmatprep.subr.bf16.mxu0 %v2211
    %2265 = vmatpush2.bf16.msra.mxu0 %v2210
    %2266 = vmatprep.subr.bf16.mxu0 %v2209
    %2267 = vmatpush2.bf16.msra.mxu0 %v2208
    %2268 = vmatprep.subr.bf16.mxu0 %v2207
    %2269 = vmatpush2.bf16.msra.mxu0 %v2206
    %2270 = vmatprep.subr.bf16.mxu0 %v2205
    %2271 = vmatpush2.bf16.msra.mxu0 %v2204
    %2272 = vmatprep.subr.bf16.mxu0 %v2203
    %2273 = vmatpush2.bf16.msra.mxu0 %v2202
    %2274 = vmatprep.subr.bf16.mxu0 %v2201
    %2275 = vmatpush2.bf16.msra.mxu0 %v2200
    %2276 = vmatprep.subr.bf16.mxu0 %v2199
    %2277 = vmatpush2.bf16.msra.mxu0 %v2198
    %2278 = vmatprep.mubr.bf16.mxu0 %v2041
    %2279 = vmatmul.mubr.bf16.gmra.mxu0 %v2040
    %v2280 = vpop.f32.mrf.mxu0
    %v2281 = vadd.f32 %v2079, %v2280
    %v2282 = vpop.f32.mrf.mxu0
    %v2283 = vadd.f32 %v2083, %v2282
    %v2284 = vpop.f32.mrf.mxu0
    %v2285 = vpop.f32.mrf.mxu0
    %2286 = vdwg.mxu0
    %v2287 = vpack.c.bf16 %v2035, %v2035
    %v2288 = vld [vmem:[%s16] sm:$0xff]
    %v2289 = vld [vmem:[%s16 + $0x8] sm:$0xff]
    %v2290 = vld [vmem:[%s16 + $0x10] sm:$0xff]
    %v2291 = vld [vmem:[%s16 + $0x18] sm:$0xff]
    %v2292 = vld [vmem:[#allocation7] sm:$0x3]
    %v2294 = vlaneseq
    %v2295 = vshrl.u32 %v2294, 7
    %v2296 = vsub.s32 0, %v2295
    %v2297 = vrot.slane %v2292, %v2296
    %v2298 = vlaneseq
    %v2299 = vshrl.u32 %v2298, 7
    %v2300 = vsub.s32 1, %v2299
    %v2301 = vrot.slane %v2292, %v2300
    %v2308 = vunpack.c.l.b16 %v2288
    %v2309 = vunpack.c.h.b16 %v2288
    %v2310 = vunpack.c.l.b16 %v2289
    %v2311 = vunpack.c.h.b16 %v2289
    %v2312 = vunpack.c.l.b16 %v2290
    %v2313 = vunpack.c.h.b16 %v2290
    %v2314 = vunpack.c.l.b16 %v2291
    %v2315 = vunpack.c.h.b16 %v2291
    %v2316 = vpack.c.b16 %v2310, %v2308
    %v2317 = vpack.c.b16 %v2311, %v2309
    %v2318 = vpack.c.b16 %v2314, %v2312
    %v2319 = vpack.c.b16 %v2315, %v2313
    %v2325 = vsel %vm190, %v2287, 0
    %2327 = vmatprep.subr.bf16.mxu0 0
    %2328 = vmatpush1.bf16.msra.mxu0 0
    %2329 = vmatprep.subr.bf16.mxu0 0
    %2330 = vmatpush1.bf16.msra.mxu0 0
    %2331 = vmatprep.subr.bf16.mxu0 0
    %2332 = vmatpush1.bf16.msra.mxu0 0
    %2333 = vmatprep.subr.bf16.mxu0 0
    %2334 = vmatpush1.bf16.msra.mxu0 0
    %2335 = vmatprep.subr.bf16.mxu0 0
    %2336 = vmatpush1.bf16.msra.mxu0 0
    %2337 = vmatprep.subr.bf16.mxu0 0
    %2338 = vmatpush1.bf16.msra.mxu0 0
    %2339 = vmatprep.subr.bf16.mxu0 %v2319
    %2340 = vmatpush1.bf16.msra.mxu0 %v2318
    %2341 = vmatprep.subr.bf16.mxu0 %v2317
    %2342 = vmatpush1.bf16.msra.mxu0 %v2316
    %2343 = vmatprep.subr.bf16.mxu0 0
    %2344 = vmatpush2.bf16.msra.mxu0 0
    %2345 = vmatprep.subr.bf16.mxu0 0
    %2346 = vmatpush2.bf16.msra.mxu0 0
    %2347 = vmatprep.subr.bf16.mxu0 0
    %2348 = vmatpush2.bf16.msra.mxu0 0
    %2349 = vmatprep.subr.bf16.mxu0 0
    %2350 = vmatpush2.bf16.msra.mxu0 0
    %2351 = vmatprep.subr.bf16.mxu0 0
    %2352 = vmatpush2.bf16.msra.mxu0 0
    %2353 = vmatprep.subr.bf16.mxu0 0
    %2354 = vmatpush2.bf16.msra.mxu0 0
    %2355 = vmatprep.subr.bf16.mxu0 0
    %2356 = vmatpush2.bf16.msra.mxu0 0
    %2357 = vmatprep.subr.bf16.mxu0 0
    %2358 = vmatpush2.bf16.msra.mxu0 0
    %2359 = vmatprep.mubr.bf16.mxu0 0
    %2360 = vmatmul.mubr.bf16.gmra.mxu0 %v2325
    %v2361 = vpop.f32.mrf.mxu0
    %v2362 = vadd.f32 %v2297, %v2361
    %v2363 = vpop.f32.mrf.mxu0
    %v2364 = vadd.f32 %v2301, %v2363
    %v2365 = vpop.f32.mrf.mxu0
    %v2366 = vpop.f32.mrf.mxu0
    %2367 = vdwg.mxu0
    %v2368 = vadd.f32 %v2281, %v2362
    %v2369 = vadd.f32 %v2283, %v2364
    %v2370 = vpack.c.bf16 %v2368, %v2368
    %v2371 = vpack.c.bf16 %v2369, %v2369
    %v2372 = vld [vmem:[#allocation8] sm:$0xff]
    %v2373 = vld [vmem:[#allocation8 + $0x8] sm:$0xff]
    %v2374 = vld [vmem:[#allocation8 + $0x10] sm:$0xff]
    %v2375 = vld [vmem:[#allocation8 + $0x18] sm:$0xff]
    %v2376 = vld [vmem:[#allocation8 + $0x20] sm:$0xff]
    %v2377 = vld [vmem:[#allocation8 + $0x28] sm:$0xff]
    %v2378 = vld [vmem:[#allocation8 + $0x30] sm:$0xff]
    %v2379 = vld [vmem:[#allocation8 + $0x38] sm:$0xff]
    %v2380 = vld [vmem:[#allocation8 + $0x40] sm:$0xff]
    %v2381 = vld [vmem:[#allocation8 + $0x48] sm:$0xff]
    %v2382 = vld [vmem:[#allocation8 + $0x50] sm:$0xff]
    %v2383 = vld [vmem:[#allocation8 + $0x58] sm:$0xff]
    %v2384 = vld [vmem:[#allocation8 + $0x60] sm:$0xff]
    %v2385 = vld [vmem:[#allocation8 + $0x68] sm:$0xff]
    %v2386 = vld [vmem:[#allocation8 + $0x70] sm:$0xff]
    %v2387 = vld [vmem:[#allocation8 + $0x78] sm:$0xff]
    %v2388 = vld [vmem:[#allocation8 + $0x80] sm:$0xff]
    %v2389 = vld [vmem:[#allocation8 + $0x88] sm:$0xff]
    %v2390 = vld [vmem:[#allocation8 + $0x90] sm:$0xff]
    %v2391 = vld [vmem:[#allocation8 + $0x98] sm:$0xff]
    %v2392 = vld [vmem:[#allocation8 + $0xa0] sm:$0xff]
    %v2393 = vld [vmem:[#allocation8 + $0xa8] sm:$0xff]
    %v2394 = vld [vmem:[#allocation8 + $0xb0] sm:$0xff]
    %v2395 = vld [vmem:[#allocation8 + $0xb8] sm:$0xff]
    %v2396 = vld [vmem:[#allocation8 + $0xc0] sm:$0xff]
    %v2397 = vld [vmem:[#allocation8 + $0xc8] sm:$0xff]
    %v2398 = vld [vmem:[#allocation8 + $0xd0] sm:$0xff]
    %v2399 = vld [vmem:[#allocation8 + $0xd8] sm:$0xff]
    %v2400 = vld [vmem:[#allocation8 + $0xe0] sm:$0xff]
    %v2401 = vld [vmem:[#allocation8 + $0xe8] sm:$0xff]
    %v2402 = vld [vmem:[#allocation8 + $0xf0] sm:$0xff]
    %v2403 = vld [vmem:[#allocation8 + $0xf8] sm:$0xff]
    %v2404 = vld [vmem:[#allocation10] sm:$0x3]
    %v2406 = vlaneseq
    %v2407 = vshrl.u32 %v2406, 7
    %v2408 = vsub.s32 0, %v2407
    %v2409 = vrot.slane %v2404, %v2408
    %v2410 = vlaneseq
    %v2411 = vshrl.u32 %v2410, 7
    %v2412 = vsub.s32 1, %v2411
    %v2413 = vrot.slane %v2404, %v2412
    %v2448 = vunpack.c.l.b16 %v2372
    %v2449 = vunpack.c.h.b16 %v2372
    %v2450 = vunpack.c.l.b16 %v2373
    %v2451 = vunpack.c.h.b16 %v2373
    %v2452 = vunpack.c.l.b16 %v2374
    %v2453 = vunpack.c.h.b16 %v2374
    %v2454 = vunpack.c.l.b16 %v2375
    %v2455 = vunpack.c.h.b16 %v2375
    %v2456 = vunpack.c.l.b16 %v2376
    %v2457 = vunpack.c.h.b16 %v2376
    %v2458 = vunpack.c.l.b16 %v2377
    %v2459 = vunpack.c.h.b16 %v2377
    %v2460 = vunpack.c.l.b16 %v2378
    %v2461 = vunpack.c.h.b16 %v2378
    %v2462 = vunpack.c.l.b16 %v2379
    %v2463 = vunpack.c.h.b16 %v2379
    %v2464 = vunpack.c.l.b16 %v2380
    %v2465 = vunpack.c.h.b16 %v2380
    %v2466 = vunpack.c.l.b16 %v2381
    %v2467 = vunpack.c.h.b16 %v2381
    %v2468 = vunpack.c.l.b16 %v2382
    %v2469 = vunpack.c.h.b16 %v2382
    %v2470 = vunpack.c.l.b16 %v2383
    %v2471 = vunpack.c.h.b16 %v2383
    %v2472 = vunpack.c.l.b16 %v2384
    %v2473 = vunpack.c.h.b16 %v2384
    %v2474 = vunpack.c.l.b16 %v2385
    %v2475 = vunpack.c.h.b16 %v2385
    %v2476 = vunpack.c.l.b16 %v2386
    %v2477 = vunpack.c.h.b16 %v2386
    %v2478 = vunpack.c.l.b16 %v2387
    %v2479 = vunpack.c.h.b16 %v2387
    %v2480 = vunpack.c.l.b16 %v2388
    %v2481 = vunpack.c.h.b16 %v2388
    %v2482 = vunpack.c.l.b16 %v2389
    %v2483 = vunpack.c.h.b16 %v2389
    %v2484 = vunpack.c.l.b16 %v2390
    %v2485 = vunpack.c.h.b16 %v2390
    %v2486 = vunpack.c.l.b16 %v2391
    %v2487 = vunpack.c.h.b16 %v2391
    %v2488 = vunpack.c.l.b16 %v2392
    %v2489 = vunpack.c.h.b16 %v2392
    %v2490 = vunpack.c.l.b16 %v2393
    %v2491 = vunpack.c.h.b16 %v2393
    %v2492 = vunpack.c.l.b16 %v2394
    %v2493 = vunpack.c.h.b16 %v2394
    %v2494 = vunpack.c.l.b16 %v2395
    %v2495 = vunpack.c.h.b16 %v2395
    %v2496 = vunpack.c.l.b16 %v2396
    %v2497 = vunpack.c.h.b16 %v2396
    %v2498 = vunpack.c.l.b16 %v2397
    %v2499 = vunpack.c.h.b16 %v2397
    %v2500 = vunpack.c.l.b16 %v2398
    %v2501 = vunpack.c.h.b16 %v2398
    %v2502 = vunpack.c.l.b16 %v2399
    %v2503 = vunpack.c.h.b16 %v2399
    %v2504 = vunpack.c.l.b16 %v2400
    %v2505 = vunpack.c.h.b16 %v2400
    %v2506 = vunpack.c.l.b16 %v2401
    %v2507 = vunpack.c.h.b16 %v2401
    %v2508 = vunpack.c.l.b16 %v2402
    %v2509 = vunpack.c.h.b16 %v2402
    %v2510 = vunpack.c.l.b16 %v2403
    %v2511 = vunpack.c.h.b16 %v2403
    %v2512 = vpack.c.b16 %v2450, %v2448
    %v2513 = vpack.c.b16 %v2451, %v2449
    %v2514 = vpack.c.b16 %v2454, %v2452
    %v2515 = vpack.c.b16 %v2455, %v2453
    %v2516 = vpack.c.b16 %v2458, %v2456
    %v2517 = vpack.c.b16 %v2459, %v2457
    %v2518 = vpack.c.b16 %v2462, %v2460
    %v2519 = vpack.c.b16 %v2463, %v2461
    %v2520 = vpack.c.b16 %v2466, %v2464
    %v2521 = vpack.c.b16 %v2467, %v2465
    %v2522 = vpack.c.b16 %v2470, %v2468
    %v2523 = vpack.c.b16 %v2471, %v2469
    %v2524 = vpack.c.b16 %v2474, %v2472
    %v2525 = vpack.c.b16 %v2475, %v2473
    %v2526 = vpack.c.b16 %v2478, %v2476
    %v2527 = vpack.c.b16 %v2479, %v2477
    %v2528 = vpack.c.b16 %v2482, %v2480
    %v2529 = vpack.c.b16 %v2483, %v2481
    %v2530 = vpack.c.b16 %v2486, %v2484
    %v2531 = vpack.c.b16 %v2487, %v2485
    %v2532 = vpack.c.b16 %v2490, %v2488
    %v2533 = vpack.c.b16 %v2491, %v2489
    %v2534 = vpack.c.b16 %v2494, %v2492
    %v2535 = vpack.c.b16 %v2495, %v2493
    %v2536 = vpack.c.b16 %v2498, %v2496
    %v2537 = vpack.c.b16 %v2499, %v2497
    %v2538 = vpack.c.b16 %v2502, %v2500
    %v2539 = vpack.c.b16 %v2503, %v2501
    %v2540 = vpack.c.b16 %v2506, %v2504
    %v2541 = vpack.c.b16 %v2507, %v2505
    %v2542 = vpack.c.b16 %v2510, %v2508
    %v2543 = vpack.c.b16 %v2511, %v2509
    %2576 = vmatprep.subr.bf16.mxu0 %v2527
    %2577 = vmatpush1.bf16.msra.mxu0 %v2526
    %2578 = vmatprep.subr.bf16.mxu0 %v2525
    %2579 = vmatpush1.bf16.msra.mxu0 %v2524
    %2580 = vmatprep.subr.bf16.mxu0 %v2523
    %2581 = vmatpush1.bf16.msra.mxu0 %v2522
    %2582 = vmatprep.subr.bf16.mxu0 %v2521
    %2583 = vmatpush1.bf16.msra.mxu0 %v2520
    %2584 = vmatprep.subr.bf16.mxu0 %v2519
    %2585 = vmatpush1.bf16.msra.mxu0 %v2518
    %2586 = vmatprep.subr.bf16.mxu0 %v2517
    %2587 = vmatpush1.bf16.msra.mxu0 %v2516
    %2588 = vmatprep.subr.bf16.mxu0 %v2515
    %2589 = vmatpush1.bf16.msra.mxu0 %v2514
    %2590 = vmatprep.subr.bf16.mxu0 %v2513
    %2591 = vmatpush1.bf16.msra.mxu0 %v2512
    %2592 = vmatprep.subr.bf16.mxu0 %v2543
    %2593 = vmatpush2.bf16.msra.mxu0 %v2542
    %2594 = vmatprep.subr.bf16.mxu0 %v2541
    %2595 = vmatpush2.bf16.msra.mxu0 %v2540
    %2596 = vmatprep.subr.bf16.mxu0 %v2539
    %2597 = vmatpush2.bf16.msra.mxu0 %v2538
    %2598 = vmatprep.subr.bf16.mxu0 %v2537
    %2599 = vmatpush2.bf16.msra.mxu0 %v2536
    %2600 = vmatprep.subr.bf16.mxu0 %v2535
    %2601 = vmatpush2.bf16.msra.mxu0 %v2534
    %2602 = vmatprep.subr.bf16.mxu0 %v2533
    %2603 = vmatpush2.bf16.msra.mxu0 %v2532
    %2604 = vmatprep.subr.bf16.mxu0 %v2531
    %2605 = vmatpush2.bf16.msra.mxu0 %v2530
    %2606 = vmatprep.subr.bf16.mxu0 %v2529
    %2607 = vmatpush2.bf16.msra.mxu0 %v2528
    %2608 = vmatprep.mubr.bf16.mxu0 %v2371
    %2609 = vmatmul.mubr.bf16.gmra.mxu0 %v2370
    %v2610 = vpop.f32.mrf.mxu0
    %v2611 = vadd.f32 %v2409, %v2610
    %v2612 = vpop.f32.mrf.mxu0
    %v2613 = vadd.f32 %v2413, %v2612
    %v2614 = vpop.f32.mrf.mxu0
    %v2615 = vpop.f32.mrf.mxu0
    %2616 = vdwg.mxu0
    %v2617 = vmul.f32 %v2611, %v2281
    %v2618 = vmul.f32 %v2613, %v2283
    %v2619 = vsub.f32 1.0, %v2611
    %v2620 = vsub.f32 1.0, %v2613
    %v2621 = vmul.f32 %v2619, %v2362
    %v2622 = vmul.f32 %v2620, %v2364
    %v2623 = vpack.c.bf16 %v2617, %v2617
    %v2624 = vpack.c.bf16 %v2618, %v2618
    %v2625 = vpack.c.bf16 %v2621, %v2621
    %v2626 = vpack.c.bf16 %v2622, %v2622
    %v2627 = vld [vmem:[%s20] sm:$0xf]
    %v2628 = vld [vmem:[%s20 + $0x4] sm:$0xf]
    %v2629 = vld [vmem:[%s20 + $0x8] sm:$0xf]
    %v2630 = vld [vmem:[%s20 + $0xc] sm:$0xf]
    %v2631 = vld [vmem:[%s20 + $0x10] sm:$0xf]
    %v2632 = vld [vmem:[%s20 + $0x14] sm:$0xf]
    %v2633 = vld [vmem:[%s20 + $0x18] sm:$0xf]
    %v2634 = vld [vmem:[%s20 + $0x1c] sm:$0xf]
    %v2635 = vld [vmem:[%s20 + $0x20] sm:$0xf]
    %v2636 = vld [vmem:[%s20 + $0x24] sm:$0xf]
    %v2637 = vld [vmem:[%s20 + $0x28] sm:$0xf]
    %v2638 = vld [vmem:[%s20 + $0x2c] sm:$0xf]
    %v2639 = vld [vmem:[%s20 + $0x30] sm:$0xf]
    %v2640 = vld [vmem:[%s20 + $0x34] sm:$0xf]
    %v2641 = vld [vmem:[%s20 + $0x38] sm:$0xf]
    %v2642 = vld [vmem:[%s20 + $0x3c] sm:$0xf]
    %v2643 = vld [vmem:[%s20 + $0x40] sm:$0xf]
    %v2644 = vld [vmem:[%s20 + $0x44] sm:$0xf]
    %v2645 = vld [vmem:[%s20 + $0x48] sm:$0xf]
    %v2646 = vld [vmem:[%s20 + $0x4c] sm:$0xf]
    %v2647 = vld [vmem:[%s20 + $0x50] sm:$0xf]
    %v2648 = vld [vmem:[%s20 + $0x54] sm:$0xf]
    %v2649 = vld [vmem:[%s20 + $0x58] sm:$0xf]
    %v2650 = vld [vmem:[%s20 + $0x5c] sm:$0xf]
    %v2651 = vld [vmem:[%s20 + $0x60] sm:$0xf]
    %v2652 = vld [vmem:[%s20 + $0x64] sm:$0xf]
    %v2653 = vld [vmem:[%s20 + $0x68] sm:$0xf]
    %v2654 = vld [vmem:[%s20 + $0x6c] sm:$0xf]
    %v2655 = vld [vmem:[%s20 + $0x70] sm:$0xf]
    %v2656 = vld [vmem:[%s20 + $0x74] sm:$0xf]
    %v2657 = vld [vmem:[%s20 + $0x78] sm:$0xf]
    %v2658 = vld [vmem:[%s20 + $0x7c] sm:$0xf]
    %v2659 = vld [vmem:[%s20 + $0x80] sm:$0xf]
    %v2660 = vld [vmem:[%s20 + $0x84] sm:$0xf]
    %v2661 = vld [vmem:[%s20 + $0x88] sm:$0xf]
    %v2662 = vld [vmem:[%s20 + $0x8c] sm:$0xf]
    %v2663 = vld [vmem:[%s20 + $0x90] sm:$0xf]
    %v2664 = vld [vmem:[%s20 + $0x94] sm:$0xf]
    %v2665 = vld [vmem:[%s20 + $0x98] sm:$0xf]
    %v2666 = vld [vmem:[%s20 + $0x9c] sm:$0xf]
    %v2667 = vld [vmem:[%s20 + $0xa0] sm:$0xf]
    %v2668 = vld [vmem:[%s20 + $0xa4] sm:$0xf]
    %v2669 = vld [vmem:[%s20 + $0xa8] sm:$0xf]
    %v2670 = vld [vmem:[%s20 + $0xac] sm:$0xf]
    %v2671 = vld [vmem:[%s20 + $0xb0] sm:$0xf]
    %v2672 = vld [vmem:[%s20 + $0xb4] sm:$0xf]
    %v2673 = vld [vmem:[%s20 + $0xb8] sm:$0xf]
    %v2674 = vld [vmem:[%s20 + $0xbc] sm:$0xf]
    %v2675 = vld [vmem:[%s20 + $0xc0] sm:$0xf]
    %v2676 = vld [vmem:[%s20 + $0xc4] sm:$0xf]
    %v2677 = vld [vmem:[%s20 + $0xc8] sm:$0xf]
    %v2678 = vld [vmem:[%s20 + $0xcc] sm:$0xf]
    %v2679 = vld [vmem:[%s20 + $0xd0] sm:$0xf]
    %v2680 = vld [vmem:[%s20 + $0xd4] sm:$0xf]
    %v2681 = vld [vmem:[%s20 + $0xd8] sm:$0xf]
    %v2682 = vld [vmem:[%s20 + $0xdc] sm:$0xf]
    %v2683 = vld [vmem:[%s20 + $0xe0] sm:$0xf]
    %v2684 = vld [vmem:[%s20 + $0xe4] sm:$0xf]
    %v2685 = vld [vmem:[%s20 + $0xe8] sm:$0xf]
    %v2686 = vld [vmem:[%s20 + $0xec] sm:$0xf]
    %v2687 = vld [vmem:[%s20 + $0xf0] sm:$0xf]
    %v2688 = vld [vmem:[%s20 + $0xf4] sm:$0xf]
    %v2689 = vld [vmem:[%s20 + $0xf8] sm:$0xf]
    %v2690 = vld [vmem:[%s20 + $0xfc] sm:$0xf]
    %v2691 = vld [vmem:[#allocation11] sm:$0x1]
    %v2693 = vlaneseq
    %v2694 = vshrl.u32 %v2693, 7
    %v2695 = vsub.s32 0, %v2694
    %v2696 = vrot.slane %v2691, %v2695
    %v2762 = vunpack.c.l.b16 %v2627
    %v2763 = vunpack.c.l.b16 %v2628
    %v2764 = vunpack.c.l.b16 %v2629
    %v2765 = vunpack.c.l.b16 %v2630
    %v2766 = vunpack.c.l.b16 %v2631
    %v2767 = vunpack.c.l.b16 %v2632
    %v2768 = vunpack.c.l.b16 %v2633
    %v2769 = vunpack.c.l.b16 %v2634
    %v2770 = vunpack.c.l.b16 %v2635
    %v2771 = vunpack.c.l.b16 %v2636
    %v2772 = vunpack.c.l.b16 %v2637
    %v2773 = vunpack.c.l.b16 %v2638
    %v2774 = vunpack.c.l.b16 %v2639
    %v2775 = vunpack.c.l.b16 %v2640
    %v2776 = vunpack.c.l.b16 %v2641
    %v2777 = vunpack.c.l.b16 %v2642
    %v2778 = vunpack.c.l.b16 %v2643
    %v2779 = vunpack.c.l.b16 %v2644
    %v2780 = vunpack.c.l.b16 %v2645
    %v2781 = vunpack.c.l.b16 %v2646
    %v2782 = vunpack.c.l.b16 %v2647
    %v2783 = vunpack.c.l.b16 %v2648
    %v2784 = vunpack.c.l.b16 %v2649
    %v2785 = vunpack.c.l.b16 %v2650
    %v2786 = vunpack.c.l.b16 %v2651
    %v2787 = vunpack.c.l.b16 %v2652
    %v2788 = vunpack.c.l.b16 %v2653
    %v2789 = vunpack.c.l.b16 %v2654
    %v2790 = vunpack.c.l.b16 %v2655
    %v2791 = vunpack.c.l.b16 %v2656
    %v2792 = vunpack.c.l.b16 %v2657
    %v2793 = vunpack.c.l.b16 %v2658
    %v2794 = vunpack.c.l.b16 %v2659
    %v2795 = vunpack.c.l.b16 %v2660
    %v2796 = vunpack.c.l.b16 %v2661
    %v2797 = vunpack.c.l.b16 %v2662
    %v2798 = vunpack.c.l.b16 %v2663
    %v2799 = vunpack.c.l.b16 %v2664
    %v2800 = vunpack.c.l.b16 %v2665
    %v2801 = vunpack.c.l.b16 %v2666
    %v2802 = vunpack.c.l.b16 %v2667
    %v2803 = vunpack.c.l.b16 %v2668
    %v2804 = vunpack.c.l.b16 %v2669
    %v2805 = vunpack.c.l.b16 %v2670
    %v2806 = vunpack.c.l.b16 %v2671
    %v2807 = vunpack.c.l.b16 %v2672
    %v2808 = vunpack.c.l.b16 %v2673
    %v2809 = vunpack.c.l.b16 %v2674
    %v2810 = vunpack.c.l.b16 %v2675
    %v2811 = vunpack.c.l.b16 %v2676
    %v2812 = vunpack.c.l.b16 %v2677
    %v2813 = vunpack.c.l.b16 %v2678
    %v2814 = vunpack.c.l.b16 %v2679
    %v2815 = vunpack.c.l.b16 %v2680
    %v2816 = vunpack.c.l.b16 %v2681
    %v2817 = vunpack.c.l.b16 %v2682
    %v2818 = vunpack.c.l.b16 %v2683
    %v2819 = vunpack.c.l.b16 %v2684
    %v2820 = vunpack.c.l.b16 %v2685
    %v2821 = vunpack.c.l.b16 %v2686
    %v2822 = vunpack.c.l.b16 %v2687
    %v2823 = vunpack.c.l.b16 %v2688
    %v2824 = vunpack.c.l.b16 %v2689
    %v2825 = vunpack.c.l.b16 %v2690
    %v2826 = vpack.c.b16 %v2763, %v2762
    %v2827 = vpack.c.b16 %v2765, %v2764
    %v2828 = vpack.c.b16 %v2767, %v2766
    %v2829 = vpack.c.b16 %v2769, %v2768
    %v2830 = vpack.c.b16 %v2771, %v2770
    %v2831 = vpack.c.b16 %v2773, %v2772
    %v2832 = vpack.c.b16 %v2775, %v2774
    %v2833 = vpack.c.b16 %v2777, %v2776
    %v2834 = vpack.c.b16 %v2779, %v2778
    %v2835 = vpack.c.b16 %v2781, %v2780
    %v2836 = vpack.c.b16 %v2783, %v2782
    %v2837 = vpack.c.b16 %v2785, %v2784
    %v2838 = vpack.c.b16 %v2787, %v2786
    %v2839 = vpack.c.b16 %v2789, %v2788
    %v2840 = vpack.c.b16 %v2791, %v2790
    %v2841 = vpack.c.b16 %v2793, %v2792
    %v2842 = vpack.c.b16 %v2795, %v2794
    %v2843 = vpack.c.b16 %v2797, %v2796
    %v2844 = vpack.c.b16 %v2799, %v2798
    %v2845 = vpack.c.b16 %v2801, %v2800
    %v2846 = vpack.c.b16 %v2803, %v2802
    %v2847 = vpack.c.b16 %v2805, %v2804
    %v2848 = vpack.c.b16 %v2807, %v2806
    %v2849 = vpack.c.b16 %v2809, %v2808
    %v2850 = vpack.c.b16 %v2811, %v2810
    %v2851 = vpack.c.b16 %v2813, %v2812
    %v2852 = vpack.c.b16 %v2815, %v2814
    %v2853 = vpack.c.b16 %v2817, %v2816
    %v2854 = vpack.c.b16 %v2819, %v2818
    %v2855 = vpack.c.b16 %v2821, %v2820
    %v2856 = vpack.c.b16 %v2823, %v2822
    %v2857 = vpack.c.b16 %v2825, %v2824
    %2890 = vmatprep.subr.bf16.mxu0 0
    %2891 = vmatpush1.bf16.msra.mxu0 %v2833
    %2892 = vmatprep.subr.bf16.mxu0 0
    %2893 = vmatpush1.bf16.msra.mxu0 %v2832
    %2894 = vmatprep.subr.bf16.mxu0 0
    %2895 = vmatpush1.bf16.msra.mxu0 %v2831
    %2896 = vmatprep.subr.bf16.mxu0 0
    %2897 = vmatpush1.bf16.msra.mxu0 %v2830
    %2898 = vmatprep.subr.bf16.mxu0 0
    %2899 = vmatpush1.bf16.msra.mxu0 %v2829
    %2900 = vmatprep.subr.bf16.mxu0 0
    %2901 = vmatpush1.bf16.msra.mxu0 %v2828
    %2902 = vmatprep.subr.bf16.mxu0 0
    %2903 = vmatpush1.bf16.msra.mxu0 %v2827
    %2904 = vmatprep.subr.bf16.mxu0 0
    %2905 = vmatpush1.bf16.msra.mxu0 %v2826
    %2906 = vmatprep.subr.bf16.mxu0 0
    %2907 = vmatpush2.bf16.msra.mxu0 %v2841
    %2908 = vmatprep.subr.bf16.mxu0 0
    %2909 = vmatpush2.bf16.msra.mxu0 %v2840
    %2910 = vmatprep.subr.bf16.mxu0 0
    %2911 = vmatpush2.bf16.msra.mxu0 %v2839
    %2912 = vmatprep.subr.bf16.mxu0 0
    %2913 = vmatpush2.bf16.msra.mxu0 %v2838
    %2914 = vmatprep.subr.bf16.mxu0 0
    %2915 = vmatpush2.bf16.msra.mxu0 %v2837
    %2916 = vmatprep.subr.bf16.mxu0 0
    %2917 = vmatpush2.bf16.msra.mxu0 %v2836
    %2918 = vmatprep.subr.bf16.mxu0 0
    %2919 = vmatpush2.bf16.msra.mxu0 %v2835
    %2920 = vmatprep.subr.bf16.mxu0 0
    %2921 = vmatpush2.bf16.msra.mxu0 %v2834
    %2922 = vmatprep.mubr.bf16.mxu0 %v2624
    %2923 = vmatmul.mubr.bf16.gmra.mxu0 %v2623
    %v2924 = vpop.f32.mrf.mxu0
    %v2925 = vadd.f32 %v2696, %v2924
    %v2926 = vpop.f32.mrf.mxu0
    %v2927 = vpop.f32.mrf.mxu0
    %v2928 = vpop.f32.mrf.mxu0
    %2929 = vdwg.mxu0
    %2930 = vmatprep.subr.bf16.mxu0 0
    %2931 = vmatpush1.bf16.msra.mxu0 %v2849
    %2932 = vmatprep.subr.bf16.mxu0 0
    %2933 = vmatpush1.bf16.msra.mxu0 %v2848
    %2934 = vmatprep.subr.bf16.mxu0 0
    %2935 = vmatpush1.bf16.msra.mxu0 %v2847
    %2936 = vmatprep.subr.bf16.mxu0 0
    %2937 = vmatpush1.bf16.msra.mxu0 %v2846
    %2938 = vmatprep.subr.bf16.mxu0 0
    %2939 = vmatpush1.bf16.msra.mxu0 %v2845
    %2940 = vmatprep.subr.bf16.mxu0 0
    %2941 = vmatpush1.bf16.msra.mxu0 %v2844
    %2942 = vmatprep.subr.bf16.mxu0 0
    %2943 = vmatpush1.bf16.msra.mxu0 %v2843
    %2944 = vmatprep.subr.bf16.mxu0 0
    %2945 = vmatpush1.bf16.msra.mxu0 %v2842
    %2946 = vmatprep.subr.bf16.mxu0 0
    %2947 = vmatpush2.bf16.msra.mxu0 %v2857
    %2948 = vmatprep.subr.bf16.mxu0 0
    %2949 = vmatpush2.bf16.msra.mxu0 %v2856
    %2950 = vmatprep.subr.bf16.mxu0 0
    %2951 = vmatpush2.bf16.msra.mxu0 %v2855
    %2952 = vmatprep.subr.bf16.mxu0 0
    %2953 = vmatpush2.bf16.msra.mxu0 %v2854
    %2954 = vmatprep.subr.bf16.mxu0 0
    %2955 = vmatpush2.bf16.msra.mxu0 %v2853
    %2956 = vmatprep.subr.bf16.mxu0 0
    %2957 = vmatpush2.bf16.msra.mxu0 %v2852
    %2958 = vmatprep.subr.bf16.mxu0 0
    %2959 = vmatpush2.bf16.msra.mxu0 %v2851
    %2960 = vmatprep.subr.bf16.mxu0 0
    %2961 = vmatpush2.bf16.msra.mxu0 %v2850
    %2962 = vmatprep.mubr.bf16.mxu0 %v2626
    %2963 = vmatmul.mubr.bf16.gmra.mxu0 %v2625
    %v2964 = vpop.f32.mrf.mxu0
    %v2965 = vadd.f32 %v2925, %v2964
    %v2966 = vpop.f32.mrf.mxu0
    %v2967 = vpop.f32.mrf.mxu0
    %v2968 = vpop.f32.mrf.mxu0
    %2969 = vdwg.mxu0
    %v2970 = vmax.f32 %v2965, 0.0
    %v2971 = vpack.c.bf16 %v2970, %v2970
    %v2972 = vld [vmem:[%s22] sm:$0xf]
    %v2973 = vld [vmem:[%s22 + $0x4] sm:$0xf]
    %v2974 = vld [vmem:[%s22 + $0x8] sm:$0xf]
    %v2975 = vld [vmem:[%s22 + $0xc] sm:$0xf]
    %v2976 = vld [vmem:[%s23] sm:$0x1]
    %v2978 = vlaneseq
    %v2979 = vshrl.u32 %v2978, 7
    %v2980 = vsub.s32 0, %v2979
    %v2981 = vrot.slane %v2976, %v2980
    %v2987 = vunpack.c.l.b16 %v2972
    %v2988 = vunpack.c.l.b16 %v2973
    %v2989 = vunpack.c.l.b16 %v2974
    %v2990 = vunpack.c.l.b16 %v2975
    %v2991 = vpack.c.b16 %v2988, %v2987
    %v2992 = vpack.c.b16 %v2990, %v2989
    %v2996 = vsel %vm190, %v2971, 0
    %2998 = vmatprep.subr.bf16.mxu0 0
    %2999 = vmatpush1.bf16.msra.mxu0 0
    %3000 = vmatprep.subr.bf16.mxu0 0
    %3001 = vmatpush1.bf16.msra.mxu0 0
    %3002 = vmatprep.subr.bf16.mxu0 0
    %3003 = vmatpush1.bf16.msra.mxu0 0
    %3004 = vmatprep.subr.bf16.mxu0 0
    %3005 = vmatpush1.bf16.msra.mxu0 0
    %3006 = vmatprep.subr.bf16.mxu0 0
    %3007 = vmatpush1.bf16.msra.mxu0 0
    %3008 = vmatprep.subr.bf16.mxu0 0
    %3009 = vmatpush1.bf16.msra.mxu0 0
    %3010 = vmatprep.subr.bf16.mxu0 0
    %3011 = vmatpush1.bf16.msra.mxu0 %v2992
    %3012 = vmatprep.subr.bf16.mxu0 0
    %3013 = vmatpush1.bf16.msra.mxu0 %v2991
    %3014 = vmatprep.subr.bf16.mxu0 0
    %3015 = vmatpush2.bf16.msra.mxu0 0
    %3016 = vmatprep.subr.bf16.mxu0 0
    %3017 = vmatpush2.bf16.msra.mxu0 0
    %3018 = vmatprep.subr.bf16.mxu0 0
    %3019 = vmatpush2.bf16.msra.mxu0 0
    %3020 = vmatprep.subr.bf16.mxu0 0
    %3021 = vmatpush2.bf16.msra.mxu0 0
    %3022 = vmatprep.subr.bf16.mxu0 0
    %3023 = vmatpush2.bf16.msra.mxu0 0
    %3024 = vmatprep.subr.bf16.mxu0 0
    %3025 = vmatpush2.bf16.msra.mxu0 0
    %3026 = vmatprep.subr.bf16.mxu0 0
    %3027 = vmatpush2.bf16.msra.mxu0 0
    %3028 = vmatprep.subr.bf16.mxu0 0
    %3029 = vmatpush2.bf16.msra.mxu0 0
    %3030 = vmatprep.mubr.bf16.mxu0 0
    %3031 = vmatmul.mubr.bf16.gmra.mxu0 %v2996
    %v3032 = vpop.f32.mrf.mxu0
    %v3033 = vadd.f32 %v2981, %v3032
    %v3034 = vpop.f32.mrf.mxu0
    %v3035 = vpop.f32.mrf.mxu0
    %v3036 = vpop.f32.mrf.mxu0
    %3037 = vdwg.mxu0
    %v3038 = vld [vmem:[%s2] sm:$0xff]
    %v3039 = vlaneseq
    %v3040 = vand.u32 %v3039, 127
    %3041 = vset.pattern.permute.xlu0 0
    %3042 = vperm.xlu0 %3041, %v3038
    %v3043 = vpop.permute.xlu0 %3042
    %vm3044 = vcmp.eq.s32.totalorder %v3040, %v3043
    %v3045 = vsel %vm3044, %v3033, 0.0
    %vm3046 = vcmask 23552
    %v3047 = vsel %vm3046, %v3045, 0.0
    %3048 = vadd.xlane.f32.xlu0 %v3047
    %v3049 = vpop.xlane.xlu0 %3048
    %3050 = vst [vmem:[%s24] sm:$0xff] %v3049
    // Predicated region
    $region122: #{fwd.1} parent=1 // pred_check
      _
    $region123: #{fwd.1} parent=1 // pred_check_branch
      %3052 = sbr.rel (0) target = $region125
    $region124: #{fwd.1} parent=1 // pred_region
      _
    $region125: #{fwd.1} parent=1 // pred_fallthru
      _
    // Predicated region
    $region126: #{fwd.1} parent=1 // pred_check
      _
    $region127: #{fwd.1} parent=1 // pred_check_branch
      %3054 = sbr.rel (0) target = $region129
    $region128: #{fwd.1} parent=1 // pred_region
      _
    $region129: #{fwd.1} parent=1 // pred_fallthru
      _
    %3055 = vsyncpa [#allocation4], 1
    %3056 = vsyncpa [#allocation6], 1
    %3057 = vsyncpa [#allocation9], 1
    %3058 = vsyncpa [#allocation12], 1

</llo_original>
